<compile_context>
chip_gen: v5e
topology: v5e:2x2
jax: 0.10.0
libtpu: 0.0.40
codegen_flags: <defaults>
</compile_context>

<pallas_src>
import functools

import numpy as np
import jax
import jax.numpy as jnp
from jax.experimental import pallas as pl
from jax.experimental.pallas import tpu as pltpu


# ----------------------------------------------------------------------------
# Fused Pallas kernel
# ----------------------------------------------------------------------------
def _decoder_block_kernel(
    x_ref, skip_ref, g_ref,                 # (1,Cin,HxWx), (1,Cl,HW), (1,Cg,HgWg)
    wup_ref, pup_ref, bup_ref,              # (4,Cout,Cin), (4,HxWx,HW), (Cout,1)
    wg_ref, bg_ref,                         # (F_int,Cg), (F_int,1)   [BN folded]
    wx_ref, bx_ref,                         # (F_int,Cl), (F_int,1)   [BN folded]
    wpsi_ref, bpsi_ref, rg_ref,             # (F_int,1), (1,1), (HgWg,HW)
    wc1_ref, bc1_ref,                       # (9,Cout,Cout+Cl), (Cout,1)  [BN folded]
    wc2_ref, bc2_ref,                       # (9,Cout,Cout),    (Cout,1)  [BN folded]
    em_ref,                                 # (2,HW) row-edge masks for dw = -1 / +1
    o_ref,                                  # (1,Cout,HW)
    pad_ref,                                # VMEM scratch (Cout+Cl, HW + 2*PADL)
    *, H, W, Cout, Cl, PADL,
):
    f32 = jnp.float32
    HW = H * W

    x = x_ref[0]          # (Cin, Hx*Wx)
    skip = skip_ref[0]    # (Cl,  HW)
    g = g_ref[0]          # (Cg,  Hg*Wg)

    # ---- ConvTranspose2d(k=2,s=2) + bilinear resize to skip size (folded into pup)
    up = jnp.zeros((Cout, HW), f32)
    for k in range(4):
        yk = jnp.dot(wup_ref[k], x, preferred_element_type=f32)        # (Cout, HxWx)
        up = up + jnp.dot(yk, pup_ref[k], preferred_element_type=f32)  # (Cout, HW)
    up = up + bup_ref[...]

    # ---- attention gate: skip * sigmoid(psi(relu(resize(BN(Wg g)) + BN(Wx skip))))
    g1 = jnp.dot(wg_ref[...], g, preferred_element_type=f32) + bg_ref[...]
    g1 = jnp.dot(g1, rg_ref[...], preferred_element_type=f32)   # bilinear resize of g1
    x1 = jnp.dot(wx_ref[...], skip, preferred_element_type=f32) + bx_ref[...]
    a = jnp.maximum(g1 + x1, 0.0)
    # 1-channel psi conv as VPU multiply + cross-sublane reduce (keeps the MXU free)
    p = jnp.sum(a * wpsi_ref[...], axis=0, keepdims=True) + bpsi_ref[...]
    p = jax.nn.sigmoid(p)                                        # (1, HW)
    skip_att = skip * p                                          # (Cl, HW)

    # ---- channel concat + both 3x3 convs, entirely in VMEM -----------------------
    # Re-zero only the lane halo each step (scratch is per-core and may start dirty;
    # the data region is fully overwritten below, so this is both cheap and safe
    # under megacore grid sharding).
    zero_halo = jnp.zeros((Cout + Cl, PADL), f32)
    pad_ref[0:Cout + Cl, 0:PADL] = zero_halo
    pad_ref[0:Cout + Cl, PADL + HW:PADL + HW + PADL] = zero_halo

    pad_ref[0:Cout, PADL:PADL + HW] = up                 # torch.cat((up, skip_att), 1)
    pad_ref[Cout:Cout + Cl, PADL:PADL + HW] = skip_att

    def conv3x3_bn_relu(n_in, w_ref, b_ref):
        acc = jnp.zeros((Cout, HW), f32)
        for kh in range(3):
            for kw in range(3):
                dh, dw = kh - 1, kw - 1
                sh = dh * W + dw
                xs = pad_ref[0:n_in, PADL + sh:PADL + sh + HW]
                if dw == -1:                       # mask wrap across image rows
                    xs = xs * em_ref[0:1, :]
                elif dw == 1:
                    xs = xs * em_ref[1:2, :]
                acc = acc + jnp.dot(w_ref[kh * 3 + kw], xs,
                                    preferred_element_type=f32)
        return jnp.maximum(acc + b_ref[...], 0.0)      # folded BN affine + ReLU

    h = conv3x3_bn_relu(Cout + Cl, wc1_ref, bc1_ref)
    # Dropout2d(p=0.0) is the identity.
    pad_ref[0:Cout, PADL:PADL + HW] = h
    h = conv3x3_bn_relu(Cout, wc2_ref, bc2_ref)

    o_ref[0] = h.astype(o_ref.dtype)


# ----------------------------------------------------------------------------
# Shape-only spatial operators (numpy -> baked constants) + BN folding
# ----------------------------------------------------------------------------
def _bilinear_matrix(out_size, in_size):
    """1-D interpolation matrix matching F.interpolate(bilinear, align_corners=False)."""
    i = np.arange(out_size, dtype=np.float64)
    src = np.clip((i + 0.5) * (in_size / out_size) - 0.5, 0.0, in_size - 1)
    lo = np.floor(src).astype(np.int64)
    hi = np.minimum(lo + 1, in_size - 1)
    w_hi = src - lo
    m = np.zeros((out_size, in_size), np.float64)
    m[np.arange(out_size), lo] += 1.0 - w_hi
    m[np.arange(out_size), hi] += w_hi
    return m


def _resize_matrix(in_hw, out_hw):
    """(Hi*Wi, Ho*Wo) matrix applying the bilinear resize on a row-major flat spatial axis."""
    (hi, wi), (ho, wo) = in_hw, out_hw
    if (hi, wi) == (ho, wo):
        return np.eye(hi * wi, dtype=np.float32)
    mh = _bilinear_matrix(ho, hi)            # (Ho, Hi)
    mw = _bilinear_matrix(wo, wi)            # (Wo, Wi)
    r = np.einsum("oh,pw->hwop", mh, mw).reshape(hi * wi, ho * wo)
    return np.ascontiguousarray(r, dtype=np.float32)


def _upconv_spatial_taps(in_hw, out_hw):
    """(4, Hx*Wx, Ho*Wo): scatter ConvTranspose2d(k=2,s=2) tap (kh,kw) outputs to
    positions (2h+kh, 2w+kw), fused with the bilinear resize to out_hw."""
    hx, wx = in_hw
    r = _resize_matrix((2 * hx, 2 * wx), out_hw)
    hh, ww = np.meshgrid(np.arange(hx), np.arange(wx), indexing="ij")
    taps = [r[((2 * hh + kh) * (2 * wx) + (2 * ww + kw)).reshape(-1)]
            for kh in range(2) for kw in range(2)]
    return np.stack(taps).astype(np.float32)


def fold_bn(conv_bias, gamma, beta, mean, var, eps=1e-5):
    """Fold conv bias + eval-mode BatchNorm into per-channel (scale, shift)."""
    scale = gamma / jnp.sqrt(var + eps)
    shift = beta + (conv_bias - mean) * scale
    return scale, shift


# ----------------------------------------------------------------------------
# Parameters (deterministic, synthetic, PyTorch layouts)
# ----------------------------------------------------------------------------
def init_params(key, in_ch, out_ch, skip_ch, gate_ch):
    f_int = skip_ch // 2
    keys = iter(jax.random.split(key, 64))

    def nrm(shape, s=0.1):
        return s * jax.random.normal(next(keys), shape, jnp.float32)

    def bn(c):
        return dict(
            gamma=jax.random.uniform(next(keys), (c,), jnp.float32, 0.5, 1.5),
            beta=nrm((c,)),
            mean=nrm((c,)),
            var=jax.random.uniform(next(keys), (c,), jnp.float32, 0.5, 1.5),
        )

    p = {}
    # ConvTranspose2d(in_ch, out_ch, 2, 2): weight (in_ch, out_ch, 2, 2)
    p["up_w"] = nrm((in_ch, out_ch, 2, 2))
    p["up_b"] = nrm((out_ch,))
    # Attention block (1x1 convs), conv weights stored as (O, I)
    p["wg_w"] = nrm((f_int, gate_ch)); p["wg_b"] = nrm((f_int,)); p["wg_bn"] = bn(f_int)
    p["wx_w"] = nrm((f_int, skip_ch)); p["wx_b"] = nrm((f_int,)); p["wx_bn"] = bn(f_int)
    p["psi_w"] = nrm((1, f_int));      p["psi_b"] = nrm((1,));    p["psi_bn"] = bn(1)
    # DoubleConvDropout (PyTorch OIHW)
    p["c1_w"] = nrm((out_ch, out_ch + skip_ch, 3, 3)); p["c1_b"] = nrm((out_ch,)); p["c1_bn"] = bn(out_ch)
    p["c2_w"] = nrm((out_ch, out_ch, 3, 3));           p["c2_b"] = nrm((out_ch,)); p["c2_bn"] = bn(out_ch)
    return p


# ----------------------------------------------------------------------------
# Forward pass (matches AttentionDecoderBlock.forward in eval mode, NCHW in / NCHW out)
# ----------------------------------------------------------------------------
def attention_decoder_block(params, x_nchw, skip_nchw, g_nchw):
    B, Cin, Hx, Wx = x_nchw.shape
    _, Cl, Hs, Ws = skip_nchw.shape
    _, Cg, Hg, Wg = g_nchw.shape
    Cout = params["up_b"].shape[0]
    f_int = params["wg_b"].shape[0]
    HW = Hs * Ws

    # NCHW -> (B, C, H*W): pure reshapes (no transposes), lane-dense spatial axis.
    x = x_nchw.reshape(B, Cin, Hx * Wx)
    skip = skip_nchw.reshape(B, Cl, HW)
    g = g_nchw.reshape(B, Cg, Hg * Wg)

    # Shape-only spatial operators, baked as constants.
    pup = jnp.asarray(_upconv_spatial_taps((Hx, Wx), (Hs, Ws)))      # (4, HxWx, HW)
    rg = jnp.asarray(_resize_matrix((Hg, Wg), (Hs, Ws)))             # (HgWg, HW)
    w_idx = np.arange(HW) % Ws
    emask = jnp.asarray(np.stack([(w_idx >= 1), (w_idx <= Ws - 2)]).astype(np.float32))

    # Fold eval-mode BatchNorm into weights / biases (host side, tiny).
    wup = jnp.stack([params["up_w"][:, :, kh, kw].T
                     for kh in range(2) for kw in range(2)])          # (4, Cout, Cin)
    bup = params["up_b"].reshape(Cout, 1)

    sg, tg = fold_bn(params["wg_b"], **params["wg_bn"])
    sx, tx = fold_bn(params["wx_b"], **params["wx_bn"])
    sp, tp = fold_bn(params["psi_b"], **params["psi_bn"])
    w_g = sg[:, None] * params["wg_w"];  b_g = tg.reshape(f_int, 1)
    w_x = sx[:, None] * params["wx_w"];  b_x = tx.reshape(f_int, 1)
    w_psi = (sp * params["psi_w"]).reshape(f_int, 1)
    b_psi = tp.reshape(1, 1)

    s1, t1 = fold_bn(params["c1_b"], **params["c1_bn"])
    s2, t2 = fold_bn(params["c2_b"], **params["c2_bn"])
    wc1 = jnp.stack([s1[:, None] * params["c1_w"][:, :, kh, kw]
                     for kh in range(3) for kw in range(3)])          # (9, Cout, Cout+Cl)
    bc1 = t1.reshape(Cout, 1)
    wc2 = jnp.stack([s2[:, None] * params["c2_w"][:, :, kh, kw]
                     for kh in range(3) for kw in range(3)])          # (9, Cout, Cout)
    bc2 = t2.reshape(Cout, 1)

    padl = max(128, -(-(Ws + 1) // 128) * 128)   # 128-aligned halo >= W+1 lanes

    def batch_spec(c, hw):
        return pl.BlockSpec((1, c, hw), lambda b: (b, 0, 0))

    def const_spec(a):
        nd = a.ndim
        return pl.BlockSpec(a.shape, lambda b: (0,) * nd)

    weights = (wup, pup, bup, w_g, b_g, w_x, b_x, w_psi, b_psi, rg,
               wc1, bc1, wc2, bc2, emask)
    kernel = functools.partial(_decoder_block_kernel, H=Hs, W=Ws,
                               Cout=Cout, Cl=Cl, PADL=padl)
    out = pl.pallas_call(
        kernel,
        out_shape=jax.ShapeDtypeStruct((B, Cout, HW), jnp.float32),
        grid=(B,),
        in_specs=[batch_spec(Cin, Hx * Wx), batch_spec(Cl, HW),
                  batch_spec(Cg, Hg * Wg)] + [const_spec(w) for w in weights],
        out_specs=pl.BlockSpec((1, Cout, HW), lambda b: (b, 0, 0)),
        scratch_shapes=[pltpu.VMEM((Cout + Cl, HW + 2 * padl), jnp.float32)],
        compiler_params=pltpu.CompilerParams(dimension_semantics=("parallel",)),
    )(x, skip, g, *weights)

    # TODO(synk): for large H*W (> a few thousand) split the per-image tile along H
    # with a 1-row halo; at these sizes one image easily fits VMEM.
    return out.reshape(B, Cout, Hs, Ws)                 # already NCHW


# ----------------------------------------------------------------------------
# Pure-JAX reference (independent path: einsum convT, jax.image.resize, lax conv)
# ----------------------------------------------------------------------------
def _bn_eval(x, bn, eps=1e-5):
    g = bn["gamma"][None, :, None, None]; b = bn["beta"][None, :, None, None]
    m = bn["mean"][None, :, None, None];  v = bn["var"][None, :, None, None]
    return (x - m) / jnp.sqrt(v + eps) * g + b


def reference_forward(params, x, skip, g):
    B, Cin, Hx, Wx = x.shape
    _, Cl, Hs, Ws = skip.shape
    Cout = params["up_b"].shape[0]

    # ConvTranspose2d(k=2, s=2)
    y = jnp.einsum("bchw,cokl->bohkwl", x, params["up_w"])
    y = y.reshape(B, Cout, 2 * Hx, 2 * Wx) + params["up_b"][None, :, None, None]
    if (2 * Hx, 2 * Wx) != (Hs, Ws):
        y = jax.image.resize(y, (B, Cout, Hs, Ws), method="bilinear")

    def conv1x1(a, w, b):
        return jnp.einsum("bchw,oc->bohw", a, w) + b[None, :, None, None]

    g1 = _bn_eval(conv1x1(g, params["wg_w"], params["wg_b"]), params["wg_bn"])
    x1 = _bn_eval(conv1x1(skip, params["wx_w"], params["wx_b"]), params["wx_bn"])
    if g1.shape[2:] != x1.shape[2:]:
        g1 = jax.image.resize(g1, (B, g1.shape[1], Hs, Ws), method="bilinear")
    a = jax.nn.relu(g1 + x1)
    psi = jax.nn.sigmoid(_bn_eval(conv1x1(a, params["psi_w"], params["psi_b"]),
                                  params["psi_bn"]))
    skip_att = skip * psi

    h = jnp.concatenate([y, skip_att], axis=1)

    def conv3x3(a, w, b):
        return jax.lax.conv_general_dilated(
            a, w, (1, 1), "SAME",
            dimension_numbers=("NCHW", "OIHW", "NCHW")) + b[None, :, None, None]

    h = jax.nn.relu(_bn_eval(conv3x3(h, params["c1_w"], params["c1_b"]), params["c1_bn"]))
    h = jax.nn.relu(_bn_eval(conv3x3(h, params["c2_w"], params["c2_b"]), params["c2_bn"]))
    return h


# ----------------------------------------------------------------------------
if __name__ == "__main__":
    key = jax.random.PRNGKey(0)
    k_par, kx, ks, kg = jax.random.split(key, 4)

    # AttentionDecoderBlock(in_channels=8, out_channels=8, skip_channels=8, gate_channels=8)
    in_ch, out_ch, skip_ch, gate_ch = 8, 8, 8, 8
    B, Hx, Wx = 2, 8, 8      # decoder feature (upsampled 2x by the transposed conv)
    Hs, Ws = 16, 16          # skip-connection spatial size
    Hg, Wg = 8, 8            # gate spatial size (exercises the bilinear resize of g1)

    params = init_params(k_par, in_ch, out_ch, skip_ch, gate_ch)
    x = jax.random.normal(kx, (B, in_ch, Hx, Wx), jnp.float32)
    skip = jax.random.normal(ks, (B, skip_ch, Hs, Ws), jnp.float32)
    g = jax.random.normal(kg, (B, gate_ch, Hg, Wg), jnp.float32)

    out = jax.jit(attention_decoder_block)(params, x, skip, g)
    out = jax.block_until_ready(out)
    assert out.shape == (B, out_ch, Hs, Ws), out.shape
    assert bool(jnp.all(jnp.isfinite(out)))

    with jax.default_matmul_precision("float32"):
        ref = reference_forward(params, x, skip, g)
    ref = jax.block_until_ready(ref)
    np.testing.assert_allclose(np.asarray(out), np.asarray(ref), rtol=1e-2, atol=1e-2)

    print("KERNEL_OK")
</pallas_src>

<mosaic_0001>
module attributes {stable_mosaic.version = 11 : i64} {
  func.func @_decoder_block_kernel(%arg0: i32, %arg1: memref<1x8x64xf32, #tpu.memory_space<vmem>>, %arg2: memref<1x8x256xf32, #tpu.memory_space<vmem>>, %arg3: memref<1x8x64xf32, #tpu.memory_space<vmem>>, %arg4: memref<4x8x8xf32, #tpu.memory_space<vmem>>, %arg5: memref<4x64x256xf32, #tpu.memory_space<vmem>>, %arg6: memref<8x1xf32, #tpu.memory_space<vmem>>, %arg7: memref<4x8xf32, #tpu.memory_space<vmem>>, %arg8: memref<4x1xf32, #tpu.memory_space<vmem>>, %arg9: memref<4x8xf32, #tpu.memory_space<vmem>>, %arg10: memref<4x1xf32, #tpu.memory_space<vmem>>, %arg11: memref<4x1xf32, #tpu.memory_space<vmem>>, %arg12: memref<1x1xf32, #tpu.memory_space<vmem>>, %arg13: memref<64x256xf32, #tpu.memory_space<vmem>>, %arg14: memref<9x8x16xf32, #tpu.memory_space<vmem>>, %arg15: memref<8x1xf32, #tpu.memory_space<vmem>>, %arg16: memref<9x8x8xf32, #tpu.memory_space<vmem>>, %arg17: memref<8x1xf32, #tpu.memory_space<vmem>>, %arg18: memref<2x256xf32, #tpu.memory_space<vmem>>, %arg19: memref<1x8x256xf32, #tpu.memory_space<vmem>>, %arg20: memref<16x512xf32, #tpu.memory_space<vmem>>) attributes {dimension_semantics = [#tpu.dimension_semantics<parallel>], iteration_bounds = array<i64: 2>, scalar_prefetch = 0 : i64, scratch_operands = 1 : i64, tpu.core_type = #tpu.core_type<tc>, window_params = [{transform_indices = @transform_0, window_bounds = array<i64: 1, 8, 64>}, {transform_indices = @transform_1, window_bounds = array<i64: 1, 8, 256>}, {transform_indices = @transform_2, window_bounds = array<i64: 1, 8, 64>}, {pipeline_mode = #tpu.pipeline_mode<synchronous>, transform_indices = @transform_3, window_bounds = array<i64: 4, 8, 8>}, {pipeline_mode = #tpu.pipeline_mode<synchronous>, transform_indices = @transform_4, window_bounds = array<i64: 4, 64, 256>}, {pipeline_mode = #tpu.pipeline_mode<synchronous>, transform_indices = @transform_5, window_bounds = array<i64: 8, 1>}, {pipeline_mode = #tpu.pipeline_mode<synchronous>, transform_indices = @transform_6, window_bounds = array<i64: 4, 8>}, {pipeline_mode = #tpu.pipeline_mode<synchronous>, transform_indices = @transform_7, window_bounds = array<i64: 4, 1>}, {pipeline_mode = #tpu.pipeline_mode<synchronous>, transform_indices = @transform_8, window_bounds = array<i64: 4, 8>}, {pipeline_mode = #tpu.pipeline_mode<synchronous>, transform_indices = @transform_9, window_bounds = array<i64: 4, 1>}, {pipeline_mode = #tpu.pipeline_mode<synchronous>, transform_indices = @transform_10, window_bounds = array<i64: 4, 1>}, {pipeline_mode = #tpu.pipeline_mode<synchronous>, transform_indices = @transform_11, window_bounds = array<i64: 1, 1>}, {pipeline_mode = #tpu.pipeline_mode<synchronous>, transform_indices = @transform_12, window_bounds = array<i64: 64, 256>}, {pipeline_mode = #tpu.pipeline_mode<synchronous>, transform_indices = @transform_13, window_bounds = array<i64: 9, 8, 16>}, {pipeline_mode = #tpu.pipeline_mode<synchronous>, transform_indices = @transform_14, window_bounds = array<i64: 8, 1>}, {pipeline_mode = #tpu.pipeline_mode<synchronous>, transform_indices = @transform_15, window_bounds = array<i64: 9, 8, 8>}, {pipeline_mode = #tpu.pipeline_mode<synchronous>, transform_indices = @transform_16, window_bounds = array<i64: 8, 1>}, {pipeline_mode = #tpu.pipeline_mode<synchronous>, transform_indices = @transform_17, window_bounds = array<i64: 2, 256>}, {transform_indices = @transform_18, window_bounds = array<i64: 1, 8, 256>}]} {
    %c0 = arith.constant 0 : index
    %c0_0 = arith.constant 0 : index
    %c0_1 = arith.constant 0 : index
    %0 = vector.load %arg1[%c0, %c0_0, %c0_1] : memref<1x8x64xf32, #tpu.memory_space<vmem>>, vector<1x8x64xf32>
    %1 = vector.shape_cast %0 : vector<1x8x64xf32> to vector<8x64xf32>
    %c0_2 = arith.constant 0 : index
    %c0_3 = arith.constant 0 : index
    %c0_4 = arith.constant 0 : index
    %2 = vector.load %arg2[%c0_2, %c0_3, %c0_4] : memref<1x8x256xf32, #tpu.memory_space<vmem>>, vector<1x8x256xf32>
    %3 = vector.shape_cast %2 : vector<1x8x256xf32> to vector<8x256xf32>
    %c0_5 = arith.constant 0 : index
    %c0_6 = arith.constant 0 : index
    %c0_7 = arith.constant 0 : index
    %4 = vector.load %arg3[%c0_5, %c0_6, %c0_7] : memref<1x8x64xf32, #tpu.memory_space<vmem>>, vector<1x8x64xf32>
    %5 = vector.shape_cast %4 : vector<1x8x64xf32> to vector<8x64xf32>
    %cst = arith.constant 0.000000e+00 : f32
    %6 = vector.broadcast %cst : f32 to vector<8x256xf32>
    %c0_8 = arith.constant 0 : index
    %c0_9 = arith.constant 0 : index
    %c0_10 = arith.constant 0 : index
    %7 = vector.load %arg4[%c0_8, %c0_9, %c0_10] : memref<4x8x8xf32, #tpu.memory_space<vmem>>, vector<1x8x8xf32>
    %8 = vector.shape_cast %7 : vector<1x8x8xf32> to vector<8x8xf32>
    %cst_11 = arith.constant dense<0.000000e+00> : vector<8x64xf32>
    %9 = tpu.matmul %8, %1, %cst_11 {dimension_numbers = #tpu.dot_dimension_numbers<[1], [0], [0], [1], [0, 0, 1, 1], [], []>} : vector<8x8xf32>, vector<8x64xf32>, vector<8x64xf32> -> vector<8x64xf32>
    %c0_12 = arith.constant 0 : index
    %c0_13 = arith.constant 0 : index
    %c0_14 = arith.constant 0 : index
    %10 = vector.load %arg5[%c0_12, %c0_13, %c0_14] : memref<4x64x256xf32, #tpu.memory_space<vmem>>, vector<1x64x256xf32>
    %11 = vector.shape_cast %10 : vector<1x64x256xf32> to vector<64x256xf32>
    %cst_15 = arith.constant dense<0.000000e+00> : vector<8x256xf32>
    %12 = tpu.matmul %9, %11, %cst_15 {dimension_numbers = #tpu.dot_dimension_numbers<[1], [0], [0], [1], [0, 0, 1, 1], [], []>} : vector<8x64xf32>, vector<64x256xf32>, vector<8x256xf32> -> vector<8x256xf32>
    %13 = arith.addf %6, %12 : vector<8x256xf32>
    %c1 = arith.constant 1 : index
    %c0_16 = arith.constant 0 : index
    %c0_17 = arith.constant 0 : index
    %14 = vector.load %arg4[%c1, %c0_16, %c0_17] : memref<4x8x8xf32, #tpu.memory_space<vmem>>, vector<1x8x8xf32>
    %15 = vector.shape_cast %14 : vector<1x8x8xf32> to vector<8x8xf32>
    %cst_18 = arith.constant dense<0.000000e+00> : vector<8x64xf32>
    %16 = tpu.matmul %15, %1, %cst_18 {dimension_numbers = #tpu.dot_dimension_numbers<[1], [0], [0], [1], [0, 0, 1, 1], [], []>} : vector<8x8xf32>, vector<8x64xf32>, vector<8x64xf32> -> vector<8x64xf32>
    %c1_19 = arith.constant 1 : index
    %c0_20 = arith.constant 0 : index
    %c0_21 = arith.constant 0 : index
    %17 = vector.load %arg5[%c1_19, %c0_20, %c0_21] : memref<4x64x256xf32, #tpu.memory_space<vmem>>, vector<1x64x256xf32>
    %18 = vector.shape_cast %17 : vector<1x64x256xf32> to vector<64x256xf32>
    %cst_22 = arith.constant dense<0.000000e+00> : vector<8x256xf32>
    %19 = tpu.matmul %16, %18, %cst_22 {dimension_numbers = #tpu.dot_dimension_numbers<[1], [0], [0], [1], [0, 0, 1, 1], [], []>} : vector<8x64xf32>, vector<64x256xf32>, vector<8x256xf32> -> vector<8x256xf32>
    %20 = arith.addf %13, %19 : vector<8x256xf32>
    %c2 = arith.constant 2 : index
    %c0_23 = arith.constant 0 : index
    %c0_24 = arith.constant 0 : index
    %21 = vector.load %arg4[%c2, %c0_23, %c0_24] : memref<4x8x8xf32, #tpu.memory_space<vmem>>, vector<1x8x8xf32>
    %22 = vector.shape_cast %21 : vector<1x8x8xf32> to vector<8x8xf32>
    %cst_25 = arith.constant dense<0.000000e+00> : vector<8x64xf32>
    %23 = tpu.matmul %22, %1, %cst_25 {dimension_numbers = #tpu.dot_dimension_numbers<[1], [0], [0], [1], [0, 0, 1, 1], [], []>} : vector<8x8xf32>, vector<8x64xf32>, vector<8x64xf32> -> vector<8x64xf32>
    %c2_26 = arith.constant 2 : index
    %c0_27 = arith.constant 0 : index
    %c0_28 = arith.constant 0 : index
    %24 = vector.load %arg5[%c2_26, %c0_27, %c0_28] : memref<4x64x256xf32, #tpu.memory_space<vmem>>, vector<1x64x256xf32>
    %25 = vector.shape_cast %24 : vector<1x64x256xf32> to vector<64x256xf32>
    %cst_29 = arith.constant dense<0.000000e+00> : vector<8x256xf32>
    %26 = tpu.matmul %23, %25, %cst_29 {dimension_numbers = #tpu.dot_dimension_numbers<[1], [0], [0], [1], [0, 0, 1, 1], [], []>} : vector<8x64xf32>, vector<64x256xf32>, vector<8x256xf32> -> vector<8x256xf32>
    %27 = arith.addf %20, %26 : vector<8x256xf32>
    %c3 = arith.constant 3 : index
    %c0_30 = arith.constant 0 : index
    %c0_31 = arith.constant 0 : index
    %28 = vector.load %arg4[%c3, %c0_30, %c0_31] : memref<4x8x8xf32, #tpu.memory_space<vmem>>, vector<1x8x8xf32>
    %29 = vector.shape_cast %28 : vector<1x8x8xf32> to vector<8x8xf32>
    %cst_32 = arith.constant dense<0.000000e+00> : vector<8x64xf32>
    %30 = tpu.matmul %29, %1, %cst_32 {dimension_numbers = #tpu.dot_dimension_numbers<[1], [0], [0], [1], [0, 0, 1, 1], [], []>} : vector<8x8xf32>, vector<8x64xf32>, vector<8x64xf32> -> vector<8x64xf32>
    %c3_33 = arith.constant 3 : index
    %c0_34 = arith.constant 0 : index
    %c0_35 = arith.constant 0 : index
    %31 = vector.load %arg5[%c3_33, %c0_34, %c0_35] : memref<4x64x256xf32, #tpu.memory_space<vmem>>, vector<1x64x256xf32>
    %32 = vector.shape_cast %31 : vector<1x64x256xf32> to vector<64x256xf32>
    %cst_36 = arith.constant dense<0.000000e+00> : vector<8x256xf32>
    %33 = tpu.matmul %30, %32, %cst_36 {dimension_numbers = #tpu.dot_dimension_numbers<[1], [0], [0], [1], [0, 0, 1, 1], [], []>} : vector<8x64xf32>, vector<64x256xf32>, vector<8x256xf32> -> vector<8x256xf32>
    %34 = arith.addf %27, %33 : vector<8x256xf32>
    %c0_37 = arith.constant 0 : index
    %c0_38 = arith.constant 0 : index
    %35 = vector.load %arg6[%c0_37, %c0_38] : memref<8x1xf32, #tpu.memory_space<vmem>>, vector<8x1xf32>
    %36 = vector.broadcast %35 : vector<8x1xf32> to vector<8x256xf32>
    %37 = arith.addf %34, %36 : vector<8x256xf32>
    %c0_39 = arith.constant 0 : index
    %c0_40 = arith.constant 0 : index
    %38 = vector.load %arg7[%c0_39, %c0_40] : memref<4x8xf32, #tpu.memory_space<vmem>>, vector<4x8xf32>
    %cst_41 = arith.constant dense<0.000000e+00> : vector<4x64xf32>
    %39 = tpu.matmul %38, %5, %cst_41 {dimension_numbers = #tpu.dot_dimension_numbers<[1], [0], [0], [1], [0, 0, 1, 1], [], []>} : vector<4x8xf32>, vector<8x64xf32>, vector<4x64xf32> -> vector<4x64xf32>
    %c0_42 = arith.constant 0 : index
    %c0_43 = arith.constant 0 : index
    %40 = vector.load %arg8[%c0_42, %c0_43] : memref<4x1xf32, #tpu.memory_space<vmem>>, vector<4x1xf32>
    %41 = vector.broadcast %40 : vector<4x1xf32> to vector<4x64xf32>
    %42 = arith.addf %39, %41 : vector<4x64xf32>
    %c0_44 = arith.constant 0 : index
    %c0_45 = arith.constant 0 : index
    %43 = vector.load %arg13[%c0_44, %c0_45] : memref<64x256xf32, #tpu.memory_space<vmem>>, vector<64x256xf32>
    %cst_46 = arith.constant dense<0.000000e+00> : vector<4x256xf32>
    %44 = tpu.matmul %42, %43, %cst_46 {dimension_numbers = #tpu.dot_dimension_numbers<[1], [0], [0], [1], [0, 0, 1, 1], [], []>} : vector<4x64xf32>, vector<64x256xf32>, vector<4x256xf32> -> vector<4x256xf32>
    %c0_47 = arith.constant 0 : index
    %c0_48 = arith.constant 0 : index
    %45 = vector.load %arg9[%c0_47, %c0_48] : memref<4x8xf32, #tpu.memory_space<vmem>>, vector<4x8xf32>
    %cst_49 = arith.constant dense<0.000000e+00> : vector<4x256xf32>
    %46 = tpu.matmul %45, %3, %cst_49 {dimension_numbers = #tpu.dot_dimension_numbers<[1], [0], [0], [1], [0, 0, 1, 1], [], []>} : vector<4x8xf32>, vector<8x256xf32>, vector<4x256xf32> -> vector<4x256xf32>
    %c0_50 = arith.constant 0 : index
    %c0_51 = arith.constant 0 : index
    %47 = vector.load %arg10[%c0_50, %c0_51] : memref<4x1xf32, #tpu.memory_space<vmem>>, vector<4x1xf32>
    %48 = vector.broadcast %47 : vector<4x1xf32> to vector<4x256xf32>
    %49 = arith.addf %46, %48 : vector<4x256xf32>
    %50 = arith.addf %44, %49 : vector<4x256xf32>
    %cst_52 = arith.constant 0.000000e+00 : f32
    %51 = vector.broadcast %cst_52 : f32 to vector<4x256xf32>
    %52 = arith.maximumf %50, %51 : vector<4x256xf32>
    %c0_53 = arith.constant 0 : index
    %c0_54 = arith.constant 0 : index
    %53 = vector.load %arg11[%c0_53, %c0_54] : memref<4x1xf32, #tpu.memory_space<vmem>>, vector<4x1xf32>
    %54 = vector.broadcast %53 : vector<4x1xf32> to vector<4x256xf32>
    %55 = arith.mulf %52, %54 : vector<4x256xf32>
    %cst_55 = arith.constant dense<0.000000e+00> : vector<256xf32>
    %56 = vector.multi_reduction <add>, %55, %cst_55 [0] : vector<4x256xf32> to vector<256xf32>
    %57 = vector.shape_cast %56 : vector<256xf32> to vector<1x256xf32>
    %c0_56 = arith.constant 0 : index
    %c0_57 = arith.constant 0 : index
    %58 = vector.load %arg12[%c0_56, %c0_57] : memref<1x1xf32, #tpu.memory_space<vmem>>, vector<1x1xf32>
    %59 = vector.broadcast %58 : vector<1x1xf32> to vector<1x256xf32>
    %60 = arith.addf %57, %59 : vector<1x256xf32>
    %61 = arith.negf %60 : vector<1x256xf32>
    %62 = math.exp %61 : vector<1x256xf32>
    %cst_58 = arith.constant 1.000000e+00 : f32
    %63 = vector.broadcast %cst_58 : f32 to vector<1x256xf32>
    %64 = arith.addf %63, %62 : vector<1x256xf32>
    %65 = arith.divf %63, %64 : vector<1x256xf32>
    %66 = vector.broadcast %65 : vector<1x256xf32> to vector<8x256xf32>
    %67 = arith.mulf %3, %66 : vector<8x256xf32>
    %cst_59 = arith.constant 0.000000e+00 : f32
    %68 = vector.broadcast %cst_59 : f32 to vector<16x128xf32>
    %c0_60 = arith.constant 0 : index
    %c0_61 = arith.constant 0 : index
    %69 = vector.load %arg20[%c0_60, %c0_61] : memref<16x512xf32, #tpu.memory_space<vmem>>, vector<16x128xf32>
    tpu.vector_store %arg20[%c0_60, %c0_61], %68 {strides = array<i32>} : memref<16x512xf32, #tpu.memory_space<vmem>>, vector<16x128xf32>,
    %c0_62 = arith.constant 0 : index
    %c384 = arith.constant 384 : index
    %70 = vector.load %arg20[%c0_62, %c384] : memref<16x512xf32, #tpu.memory_space<vmem>>, vector<16x128xf32>
    tpu.vector_store %arg20[%c0_62, %c384], %68 {strides = array<i32>} : memref<16x512xf32, #tpu.memory_space<vmem>>, vector<16x128xf32>,
    %c0_63 = arith.constant 0 : index
    %c128 = arith.constant 128 : index
    %71 = vector.load %arg20[%c0_63, %c128] : memref<16x512xf32, #tpu.memory_space<vmem>>, vector<8x256xf32>
    tpu.vector_store %arg20[%c0_63, %c128], %37 {strides = array<i32>} : memref<16x512xf32, #tpu.memory_space<vmem>>, vector<8x256xf32>,
    %c8 = arith.constant 8 : index
    %c128_64 = arith.constant 128 : index
    %72 = vector.load %arg20[%c8, %c128_64] : memref<16x512xf32, #tpu.memory_space<vmem>>, vector<8x256xf32>
    tpu.vector_store %arg20[%c8, %c128_64], %67 {strides = array<i32>} : memref<16x512xf32, #tpu.memory_space<vmem>>, vector<8x256xf32>,
    %cst_65 = arith.constant 0.000000e+00 : f32
    %73 = vector.broadcast %cst_65 : f32 to vector<8x256xf32>
    %c0_66 = arith.constant 0 : index
    %c111 = arith.constant 111 : index
    %74 = vector.load %arg20[%c0_66, %c111] : memref<16x512xf32, #tpu.memory_space<vmem>>, vector<16x256xf32>
    %c0_67 = arith.constant 0 : index
    %c0_68 = arith.constant 0 : index
    %75 = vector.load %arg18[%c0_67, %c0_68] : memref<2x256xf32, #tpu.memory_space<vmem>>, vector<1x256xf32>
    %76 = vector.broadcast %75 : vector<1x256xf32> to vector<16x256xf32>
    %77 = arith.mulf %74, %76 : vector<16x256xf32>
    %c0_69 = arith.constant 0 : index
    %c0_70 = arith.constant 0 : index
    %c0_71 = arith.constant 0 : index
    %78 = vector.load %arg14[%c0_69, %c0_70, %c0_71] : memref<9x8x16xf32, #tpu.memory_space<vmem>>, vector<1x8x16xf32>
    %79 = vector.shape_cast %78 : vector<1x8x16xf32> to vector<8x16xf32>
    %cst_72 = arith.constant dense<0.000000e+00> : vector<8x256xf32>
    %80 = tpu.matmul %79, %77, %cst_72 {dimension_numbers = #tpu.dot_dimension_numbers<[1], [0], [0], [1], [0, 0, 1, 1], [], []>} : vector<8x16xf32>, vector<16x256xf32>, vector<8x256xf32> -> vector<8x256xf32>
    %81 = arith.addf %73, %80 : vector<8x256xf32>
    %c0_73 = arith.constant 0 : index
    %c112 = arith.constant 112 : index
    %82 = vector.load %arg20[%c0_73, %c112] : memref<16x512xf32, #tpu.memory_space<vmem>>, vector<16x256xf32>
    %c1_74 = arith.constant 1 : index
    %c0_75 = arith.constant 0 : index
    %c0_76 = arith.constant 0 : index
    %83 = vector.load %arg14[%c1_74, %c0_75, %c0_76] : memref<9x8x16xf32, #tpu.memory_space<vmem>>, vector<1x8x16xf32>
    %84 = vector.shape_cast %83 : vector<1x8x16xf32> to vector<8x16xf32>
    %cst_77 = arith.constant dense<0.000000e+00> : vector<8x256xf32>
    %85 = tpu.matmul %84, %82, %cst_77 {dimension_numbers = #tpu.dot_dimension_numbers<[1], [0], [0], [1], [0, 0, 1, 1], [], []>} : vector<8x16xf32>, vector<16x256xf32>, vector<8x256xf32> -> vector<8x256xf32>
    %86 = arith.addf %81, %85 : vector<8x256xf32>
    %c0_78 = arith.constant 0 : index
    %c113 = arith.constant 113 : index
    %87 = vector.load %arg20[%c0_78, %c113] : memref<16x512xf32, #tpu.memory_space<vmem>>, vector<16x256xf32>
    %c1_79 = arith.constant 1 : index
    %c0_80 = arith.constant 0 : index
    %88 = vector.load %arg18[%c1_79, %c0_80] : memref<2x256xf32, #tpu.memory_space<vmem>>, vector<1x256xf32>
    %89 = vector.broadcast %88 : vector<1x256xf32> to vector<16x256xf32>
    %90 = arith.mulf %87, %89 : vector<16x256xf32>
    %c2_81 = arith.constant 2 : index
    %c0_82 = arith.constant 0 : index
    %c0_83 = arith.constant 0 : index
    %91 = vector.load %arg14[%c2_81, %c0_82, %c0_83] : memref<9x8x16xf32, #tpu.memory_space<vmem>>, vector<1x8x16xf32>
    %92 = vector.shape_cast %91 : vector<1x8x16xf32> to vector<8x16xf32>
    %cst_84 = arith.constant dense<0.000000e+00> : vector<8x256xf32>
    %93 = tpu.matmul %92, %90, %cst_84 {dimension_numbers = #tpu.dot_dimension_numbers<[1], [0], [0], [1], [0, 0, 1, 1], [], []>} : vector<8x16xf32>, vector<16x256xf32>, vector<8x256xf32> -> vector<8x256xf32>
    %94 = arith.addf %86, %93 : vector<8x256xf32>
    %c0_85 = arith.constant 0 : index
    %c127 = arith.constant 127 : index
    %95 = vector.load %arg20[%c0_85, %c127] : memref<16x512xf32, #tpu.memory_space<vmem>>, vector<16x256xf32>
    %c0_86 = arith.constant 0 : index
    %c0_87 = arith.constant 0 : index
    %96 = vector.load %arg18[%c0_86, %c0_87] : memref<2x256xf32, #tpu.memory_space<vmem>>, vector<1x256xf32>
    %97 = vector.broadcast %96 : vector<1x256xf32> to vector<16x256xf32>
    %98 = arith.mulf %95, %97 : vector<16x256xf32>
    %c3_88 = arith.constant 3 : index
    %c0_89 = arith.constant 0 : index
    %c0_90 = arith.constant 0 : index
    %99 = vector.load %arg14[%c3_88, %c0_89, %c0_90] : memref<9x8x16xf32, #tpu.memory_space<vmem>>, vector<1x8x16xf32>
    %100 = vector.shape_cast %99 : vector<1x8x16xf32> to vector<8x16xf32>
    %cst_91 = arith.constant dense<0.000000e+00> : vector<8x256xf32>
    %101 = tpu.matmul %100, %98, %cst_91 {dimension_numbers = #tpu.dot_dimension_numbers<[1], [0], [0], [1], [0, 0, 1, 1], [], []>} : vector<8x16xf32>, vector<16x256xf32>, vector<8x256xf32> -> vector<8x256xf32>
    %102 = arith.addf %94, %101 : vector<8x256xf32>
    %c0_92 = arith.constant 0 : index
    %c128_93 = arith.constant 128 : index
    %103 = vector.load %arg20[%c0_92, %c128_93] : memref<16x512xf32, #tpu.memory_space<vmem>>, vector<16x256xf32>
    %c4 = arith.constant 4 : index
    %c0_94 = arith.constant 0 : index
    %c0_95 = arith.constant 0 : index
    %104 = vector.load %arg14[%c4, %c0_94, %c0_95] : memref<9x8x16xf32, #tpu.memory_space<vmem>>, vector<1x8x16xf32>
    %105 = vector.shape_cast %104 : vector<1x8x16xf32> to vector<8x16xf32>
    %cst_96 = arith.constant dense<0.000000e+00> : vector<8x256xf32>
    %106 = tpu.matmul %105, %103, %cst_96 {dimension_numbers = #tpu.dot_dimension_numbers<[1], [0], [0], [1], [0, 0, 1, 1], [], []>} : vector<8x16xf32>, vector<16x256xf32>, vector<8x256xf32> -> vector<8x256xf32>
    %107 = arith.addf %102, %106 : vector<8x256xf32>
    %c0_97 = arith.constant 0 : index
    %c129 = arith.constant 129 : index
    %108 = vector.load %arg20[%c0_97, %c129] : memref<16x512xf32, #tpu.memory_space<vmem>>, vector<16x256xf32>
    %c1_98 = arith.constant 1 : index
    %c0_99 = arith.constant 0 : index
    %109 = vector.load %arg18[%c1_98, %c0_99] : memref<2x256xf32, #tpu.memory_space<vmem>>, vector<1x256xf32>
    %110 = vector.broadcast %109 : vector<1x256xf32> to vector<16x256xf32>
    %111 = arith.mulf %108, %110 : vector<16x256xf32>
    %c5 = arith.constant 5 : index
    %c0_100 = arith.constant 0 : index
    %c0_101 = arith.constant 0 : index
    %112 = vector.load %arg14[%c5, %c0_100, %c0_101] : memref<9x8x16xf32, #tpu.memory_space<vmem>>, vector<1x8x16xf32>
    %113 = vector.shape_cast %112 : vector<1x8x16xf32> to vector<8x16xf32>
    %cst_102 = arith.constant dense<0.000000e+00> : vector<8x256xf32>
    %114 = tpu.matmul %113, %111, %cst_102 {dimension_numbers = #tpu.dot_dimension_numbers<[1], [0], [0], [1], [0, 0, 1, 1], [], []>} : vector<8x16xf32>, vector<16x256xf32>, vector<8x256xf32> -> vector<8x256xf32>
    %115 = arith.addf %107, %114 : vector<8x256xf32>
    %c0_103 = arith.constant 0 : index
    %c143 = arith.constant 143 : index
    %116 = vector.load %arg20[%c0_103, %c143] : memref<16x512xf32, #tpu.memory_space<vmem>>, vector<16x256xf32>
    %c0_104 = arith.constant 0 : index
    %c0_105 = arith.constant 0 : index
    %117 = vector.load %arg18[%c0_104, %c0_105] : memref<2x256xf32, #tpu.memory_space<vmem>>, vector<1x256xf32>
    %118 = vector.broadcast %117 : vector<1x256xf32> to vector<16x256xf32>
    %119 = arith.mulf %116, %118 : vector<16x256xf32>
    %c6 = arith.constant 6 : index
    %c0_106 = arith.constant 0 : index
    %c0_107 = arith.constant 0 : index
    %120 = vector.load %arg14[%c6, %c0_106, %c0_107] : memref<9x8x16xf32, #tpu.memory_space<vmem>>, vector<1x8x16xf32>
    %121 = vector.shape_cast %120 : vector<1x8x16xf32> to vector<8x16xf32>
    %cst_108 = arith.constant dense<0.000000e+00> : vector<8x256xf32>
    %122 = tpu.matmul %121, %119, %cst_108 {dimension_numbers = #tpu.dot_dimension_numbers<[1], [0], [0], [1], [0, 0, 1, 1], [], []>} : vector<8x16xf32>, vector<16x256xf32>, vector<8x256xf32> -> vector<8x256xf32>
    %123 = arith.addf %115, %122 : vector<8x256xf32>
    %c0_109 = arith.constant 0 : index
    %c144 = arith.constant 144 : index
    %124 = vector.load %arg20[%c0_109, %c144] : memref<16x512xf32, #tpu.memory_space<vmem>>, vector<16x256xf32>
    %c7 = arith.constant 7 : index
    %c0_110 = arith.constant 0 : index
    %c0_111 = arith.constant 0 : index
    %125 = vector.load %arg14[%c7, %c0_110, %c0_111] : memref<9x8x16xf32, #tpu.memory_space<vmem>>, vector<1x8x16xf32>
    %126 = vector.shape_cast %125 : vector<1x8x16xf32> to vector<8x16xf32>
    %cst_112 = arith.constant dense<0.000000e+00> : vector<8x256xf32>
    %127 = tpu.matmul %126, %124, %cst_112 {dimension_numbers = #tpu.dot_dimension_numbers<[1], [0], [0], [1], [0, 0, 1, 1], [], []>} : vector<8x16xf32>, vector<16x256xf32>, vector<8x256xf32> -> vector<8x256xf32>
    %128 = arith.addf %123, %127 : vector<8x256xf32>
    %c0_113 = arith.constant 0 : index
    %c145 = arith.constant 145 : index
    %129 = vector.load %arg20[%c0_113, %c145] : memref<16x512xf32, #tpu.memory_space<vmem>>, vector<16x256xf32>
    %c1_114 = arith.constant 1 : index
    %c0_115 = arith.constant 0 : index
    %130 = vector.load %arg18[%c1_114, %c0_115] : memref<2x256xf32, #tpu.memory_space<vmem>>, vector<1x256xf32>
    %131 = vector.broadcast %130 : vector<1x256xf32> to vector<16x256xf32>
    %132 = arith.mulf %129, %131 : vector<16x256xf32>
    %c8_116 = arith.constant 8 : index
    %c0_117 = arith.constant 0 : index
    %c0_118 = arith.constant 0 : index
    %133 = vector.load %arg14[%c8_116, %c0_117, %c0_118] : memref<9x8x16xf32, #tpu.memory_space<vmem>>, vector<1x8x16xf32>
    %134 = vector.shape_cast %133 : vector<1x8x16xf32> to vector<8x16xf32>
    %cst_119 = arith.constant dense<0.000000e+00> : vector<8x256xf32>
    %135 = tpu.matmul %134, %132, %cst_119 {dimension_numbers = #tpu.dot_dimension_numbers<[1], [0], [0], [1], [0, 0, 1, 1], [], []>} : vector<8x16xf32>, vector<16x256xf32>, vector<8x256xf32> -> vector<8x256xf32>
    %136 = arith.addf %128, %135 : vector<8x256xf32>
    %c0_120 = arith.constant 0 : index
    %c0_121 = arith.constant 0 : index
    %137 = vector.load %arg15[%c0_120, %c0_121] : memref<8x1xf32, #tpu.memory_space<vmem>>, vector<8x1xf32>
    %138 = vector.broadcast %137 : vector<8x1xf32> to vector<8x256xf32>
    %139 = arith.addf %136, %138 : vector<8x256xf32>
    %cst_122 = arith.constant 0.000000e+00 : f32
    %140 = vector.broadcast %cst_122 : f32 to vector<8x256xf32>
    %141 = arith.maximumf %139, %140 : vector<8x256xf32>
    %c0_123 = arith.constant 0 : index
    %c128_124 = arith.constant 128 : index
    %142 = vector.load %arg20[%c0_123, %c128_124] : memref<16x512xf32, #tpu.memory_space<vmem>>, vector<8x256xf32>
    tpu.vector_store %arg20[%c0_123, %c128_124], %141 {strides = array<i32>} : memref<16x512xf32, #tpu.memory_space<vmem>>, vector<8x256xf32>,
    %cst_125 = arith.constant 0.000000e+00 : f32
    %143 = vector.broadcast %cst_125 : f32 to vector<8x256xf32>
    %c0_126 = arith.constant 0 : index
    %c111_127 = arith.constant 111 : index
    %144 = vector.load %arg20[%c0_126, %c111_127] : memref<16x512xf32, #tpu.memory_space<vmem>>, vector<8x256xf32>
    %c0_128 = arith.constant 0 : index
    %c0_129 = arith.constant 0 : index
    %145 = vector.load %arg18[%c0_128, %c0_129] : memref<2x256xf32, #tpu.memory_space<vmem>>, vector<1x256xf32>
    %146 = vector.broadcast %145 : vector<1x256xf32> to vector<8x256xf32>
    %147 = arith.mulf %144, %146 : vector<8x256xf32>
    %c0_130 = arith.constant 0 : index
    %c0_131 = arith.constant 0 : index
    %c0_132 = arith.constant 0 : index
    %148 = vector.load %arg16[%c0_130, %c0_131, %c0_132] : memref<9x8x8xf32, #tpu.memory_space<vmem>>, vector<1x8x8xf32>
    %149 = vector.shape_cast %148 : vector<1x8x8xf32> to vector<8x8xf32>
    %cst_133 = arith.constant dense<0.000000e+00> : vector<8x256xf32>
    %150 = tpu.matmul %149, %147, %cst_133 {dimension_numbers = #tpu.dot_dimension_numbers<[1], [0], [0], [1], [0, 0, 1, 1], [], []>} : vector<8x8xf32>, vector<8x256xf32>, vector<8x256xf32> -> vector<8x256xf32>
    %151 = arith.addf %143, %150 : vector<8x256xf32>
    %c0_134 = arith.constant 0 : index
    %c112_135 = arith.constant 112 : index
    %152 = vector.load %arg20[%c0_134, %c112_135] : memref<16x512xf32, #tpu.memory_space<vmem>>, vector<8x256xf32>
    %c1_136 = arith.constant 1 : index
    %c0_137 = arith.constant 0 : index
    %c0_138 = arith.constant 0 : index
    %153 = vector.load %arg16[%c1_136, %c0_137, %c0_138] : memref<9x8x8xf32, #tpu.memory_space<vmem>>, vector<1x8x8xf32>
    %154 = vector.shape_cast %153 : vector<1x8x8xf32> to vector<8x8xf32>
    %cst_139 = arith.constant dense<0.000000e+00> : vector<8x256xf32>
    %155 = tpu.matmul %154, %152, %cst_139 {dimension_numbers = #tpu.dot_dimension_numbers<[1], [0], [0], [1], [0, 0, 1, 1], [], []>} : vector<8x8xf32>, vector<8x256xf32>, vector<8x256xf32> -> vector<8x256xf32>
    %156 = arith.addf %151, %155 : vector<8x256xf32>
    %c0_140 = arith.constant 0 : index
    %c113_141 = arith.constant 113 : index
    %157 = vector.load %arg20[%c0_140, %c113_141] : memref<16x512xf32, #tpu.memory_space<vmem>>, vector<8x256xf32>
    %c1_142 = arith.constant 1 : index
    %c0_143 = arith.constant 0 : index
    %158 = vector.load %arg18[%c1_142, %c0_143] : memref<2x256xf32, #tpu.memory_space<vmem>>, vector<1x256xf32>
    %159 = vector.broadcast %158 : vector<1x256xf32> to vector<8x256xf32>
    %160 = arith.mulf %157, %159 : vector<8x256xf32>
    %c2_144 = arith.constant 2 : index
    %c0_145 = arith.constant 0 : index
    %c0_146 = arith.constant 0 : index
    %161 = vector.load %arg16[%c2_144, %c0_145, %c0_146] : memref<9x8x8xf32, #tpu.memory_space<vmem>>, vector<1x8x8xf32>
    %162 = vector.shape_cast %161 : vector<1x8x8xf32> to vector<8x8xf32>
    %cst_147 = arith.constant dense<0.000000e+00> : vector<8x256xf32>
    %163 = tpu.matmul %162, %160, %cst_147 {dimension_numbers = #tpu.dot_dimension_numbers<[1], [0], [0], [1], [0, 0, 1, 1], [], []>} : vector<8x8xf32>, vector<8x256xf32>, vector<8x256xf32> -> vector<8x256xf32>
    %164 = arith.addf %156, %163 : vector<8x256xf32>
    %c0_148 = arith.constant 0 : index
    %c127_149 = arith.constant 127 : index
    %165 = vector.load %arg20[%c0_148, %c127_149] : memref<16x512xf32, #tpu.memory_space<vmem>>, vector<8x256xf32>
    %c0_150 = arith.constant 0 : index
    %c0_151 = arith.constant 0 : index
    %166 = vector.load %arg18[%c0_150, %c0_151] : memref<2x256xf32, #tpu.memory_space<vmem>>, vector<1x256xf32>
    %167 = vector.broadcast %166 : vector<1x256xf32> to vector<8x256xf32>
    %168 = arith.mulf %165, %167 : vector<8x256xf32>
    %c3_152 = arith.constant 3 : index
    %c0_153 = arith.constant 0 : index
    %c0_154 = arith.constant 0 : index
    %169 = vector.load %arg16[%c3_152, %c0_153, %c0_154] : memref<9x8x8xf32, #tpu.memory_space<vmem>>, vector<1x8x8xf32>
    %170 = vector.shape_cast %169 : vector<1x8x8xf32> to vector<8x8xf32>
    %cst_155 = arith.constant dense<0.000000e+00> : vector<8x256xf32>
    %171 = tpu.matmul %170, %168, %cst_155 {dimension_numbers = #tpu.dot_dimension_numbers<[1], [0], [0], [1], [0, 0, 1, 1], [], []>} : vector<8x8xf32>, vector<8x256xf32>, vector<8x256xf32> -> vector<8x256xf32>
    %172 = arith.addf %164, %171 : vector<8x256xf32>
    %c0_156 = arith.constant 0 : index
    %c128_157 = arith.constant 128 : index
    %173 = vector.load %arg20[%c0_156, %c128_157] : memref<16x512xf32, #tpu.memory_space<vmem>>, vector<8x256xf32>
    %c4_158 = arith.constant 4 : index
    %c0_159 = arith.constant 0 : index
    %c0_160 = arith.constant 0 : index
    %174 = vector.load %arg16[%c4_158, %c0_159, %c0_160] : memref<9x8x8xf32, #tpu.memory_space<vmem>>, vector<1x8x8xf32>
    %175 = vector.shape_cast %174 : vector<1x8x8xf32> to vector<8x8xf32>
    %cst_161 = arith.constant dense<0.000000e+00> : vector<8x256xf32>
    %176 = tpu.matmul %175, %173, %cst_161 {dimension_numbers = #tpu.dot_dimension_numbers<[1], [0], [0], [1], [0, 0, 1, 1], [], []>} : vector<8x8xf32>, vector<8x256xf32>, vector<8x256xf32> -> vector<8x256xf32>
    %177 = arith.addf %172, %176 : vector<8x256xf32>
    %c0_162 = arith.constant 0 : index
    %c129_163 = arith.constant 129 : index
    %178 = vector.load %arg20[%c0_162, %c129_163] : memref<16x512xf32, #tpu.memory_space<vmem>>, vector<8x256xf32>
    %c1_164 = arith.constant 1 : index
    %c0_165 = arith.constant 0 : index
    %179 = vector.load %arg18[%c1_164, %c0_165] : memref<2x256xf32, #tpu.memory_space<vmem>>, vector<1x256xf32>
    %180 = vector.broadcast %179 : vector<1x256xf32> to vector<8x256xf32>
    %181 = arith.mulf %178, %180 : vector<8x256xf32>
    %c5_166 = arith.constant 5 : index
    %c0_167 = arith.constant 0 : index
    %c0_168 = arith.constant 0 : index
    %182 = vector.load %arg16[%c5_166, %c0_167, %c0_168] : memref<9x8x8xf32, #tpu.memory_space<vmem>>, vector<1x8x8xf32>
    %183 = vector.shape_cast %182 : vector<1x8x8xf32> to vector<8x8xf32>
    %cst_169 = arith.constant dense<0.000000e+00> : vector<8x256xf32>
    %184 = tpu.matmul %183, %181, %cst_169 {dimension_numbers = #tpu.dot_dimension_numbers<[1], [0], [0], [1], [0, 0, 1, 1], [], []>} : vector<8x8xf32>, vector<8x256xf32>, vector<8x256xf32> -> vector<8x256xf32>
    %185 = arith.addf %177, %184 : vector<8x256xf32>
    %c0_170 = arith.constant 0 : index
    %c143_171 = arith.constant 143 : index
    %186 = vector.load %arg20[%c0_170, %c143_171] : memref<16x512xf32, #tpu.memory_space<vmem>>, vector<8x256xf32>
    %c0_172 = arith.constant 0 : index
    %c0_173 = arith.constant 0 : index
    %187 = vector.load %arg18[%c0_172, %c0_173] : memref<2x256xf32, #tpu.memory_space<vmem>>, vector<1x256xf32>
    %188 = vector.broadcast %187 : vector<1x256xf32> to vector<8x256xf32>
    %189 = arith.mulf %186, %188 : vector<8x256xf32>
    %c6_174 = arith.constant 6 : index
    %c0_175 = arith.constant 0 : index
    %c0_176 = arith.constant 0 : index
    %190 = vector.load %arg16[%c6_174, %c0_175, %c0_176] : memref<9x8x8xf32, #tpu.memory_space<vmem>>, vector<1x8x8xf32>
    %191 = vector.shape_cast %190 : vector<1x8x8xf32> to vector<8x8xf32>
    %cst_177 = arith.constant dense<0.000000e+00> : vector<8x256xf32>
    %192 = tpu.matmul %191, %189, %cst_177 {dimension_numbers = #tpu.dot_dimension_numbers<[1], [0], [0], [1], [0, 0, 1, 1], [], []>} : vector<8x8xf32>, vector<8x256xf32>, vector<8x256xf32> -> vector<8x256xf32>
    %193 = arith.addf %185, %192 : vector<8x256xf32>
    %c0_178 = arith.constant 0 : index
    %c144_179 = arith.constant 144 : index
    %194 = vector.load %arg20[%c0_178, %c144_179] : memref<16x512xf32, #tpu.memory_space<vmem>>, vector<8x256xf32>
    %c7_180 = arith.constant 7 : index
    %c0_181 = arith.constant 0 : index
    %c0_182 = arith.constant 0 : index
    %195 = vector.load %arg16[%c7_180, %c0_181, %c0_182] : memref<9x8x8xf32, #tpu.memory_space<vmem>>, vector<1x8x8xf32>
    %196 = vector.shape_cast %195 : vector<1x8x8xf32> to vector<8x8xf32>
    %cst_183 = arith.constant dense<0.000000e+00> : vector<8x256xf32>
    %197 = tpu.matmul %196, %194, %cst_183 {dimension_numbers = #tpu.dot_dimension_numbers<[1], [0], [0], [1], [0, 0, 1, 1], [], []>} : vector<8x8xf32>, vector<8x256xf32>, vector<8x256xf32> -> vector<8x256xf32>
    %198 = arith.addf %193, %197 : vector<8x256xf32>
    %c0_184 = arith.constant 0 : index
    %c145_185 = arith.constant 145 : index
    %199 = vector.load %arg20[%c0_184, %c145_185] : memref<16x512xf32, #tpu.memory_space<vmem>>, vector<8x256xf32>
    %c1_186 = arith.constant 1 : index
    %c0_187 = arith.constant 0 : index
    %200 = vector.load %arg18[%c1_186, %c0_187] : memref<2x256xf32, #tpu.memory_space<vmem>>, vector<1x256xf32>
    %201 = vector.broadcast %200 : vector<1x256xf32> to vector<8x256xf32>
    %202 = arith.mulf %199, %201 : vector<8x256xf32>
    %c8_188 = arith.constant 8 : index
    %c0_189 = arith.constant 0 : index
    %c0_190 = arith.constant 0 : index
    %203 = vector.load %arg16[%c8_188, %c0_189, %c0_190] : memref<9x8x8xf32, #tpu.memory_space<vmem>>, vector<1x8x8xf32>
    %204 = vector.shape_cast %203 : vector<1x8x8xf32> to vector<8x8xf32>
    %cst_191 = arith.constant dense<0.000000e+00> : vector<8x256xf32>
    %205 = tpu.matmul %204, %202, %cst_191 {dimension_numbers = #tpu.dot_dimension_numbers<[1], [0], [0], [1], [0, 0, 1, 1], [], []>} : vector<8x8xf32>, vector<8x256xf32>, vector<8x256xf32> -> vector<8x256xf32>
    %206 = arith.addf %198, %205 : vector<8x256xf32>
    %c0_192 = arith.constant 0 : index
    %c0_193 = arith.constant 0 : index
    %207 = vector.load %arg17[%c0_192, %c0_193] : memref<8x1xf32, #tpu.memory_space<vmem>>, vector<8x1xf32>
    %208 = vector.broadcast %207 : vector<8x1xf32> to vector<8x256xf32>
    %209 = arith.addf %206, %208 : vector<8x256xf32>
    %cst_194 = arith.constant 0.000000e+00 : f32
    %210 = vector.broadcast %cst_194 : f32 to vector<8x256xf32>
    %211 = arith.maximumf %209, %210 : vector<8x256xf32>
    %c0_195 = arith.constant 0 : index
    %c0_196 = arith.constant 0 : index
    %c0_197 = arith.constant 0 : index
    %212 = vector.load %arg19[%c0_195, %c0_196, %c0_197] : memref<1x8x256xf32, #tpu.memory_space<vmem>>, vector<1x8x256xf32>
    %213 = vector.shape_cast %212 : vector<1x8x256xf32> to vector<8x256xf32>
    %214 = vector.shape_cast %211 : vector<8x256xf32> to vector<1x8x256xf32>
    tpu.vector_store %arg19[%c0_195, %c0_196, %c0_197], %214 {strides = array<i32>} : memref<1x8x256xf32, #tpu.memory_space<vmem>>, vector<1x8x256xf32>,
    return
  }
  func.func @transform_0(%arg0: i32) -> (i32, i32, i32) {
    %c0_i32 = arith.constant 0 : i32
    %c0_i32_0 = arith.constant 0 : i32
    %c0_i32_1 = arith.constant 0 : i32
    return %arg0, %c0_i32, %c0_i32_0 : i32, i32, i32
  }
  func.func @transform_1(%arg0: i32) -> (i32, i32, i32) {
    %c0_i32 = arith.constant 0 : i32
    %c0_i32_0 = arith.constant 0 : i32
    %c0_i32_1 = arith.constant 0 : i32
    return %arg0, %c0_i32, %c0_i32_0 : i32, i32, i32
  }
  func.func @transform_2(%arg0: i32) -> (i32, i32, i32) {
    %c0_i32 = arith.constant 0 : i32
    %c0_i32_0 = arith.constant 0 : i32
    %c0_i32_1 = arith.constant 0 : i32
    return %arg0, %c0_i32, %c0_i32_0 : i32, i32, i32
  }
  func.func @transform_3(%arg0: i32) -> (i32, i32, i32) {
    %c0_i32 = arith.constant 0 : i32
    %c0_i32_0 = arith.constant 0 : i32
    %c0_i32_1 = arith.constant 0 : i32
    %c0_i32_2 = arith.constant 0 : i32
    return %c0_i32, %c0_i32_0, %c0_i32_1 : i32, i32, i32
  }
  func.func @transform_4(%arg0: i32) -> (i32, i32, i32) {
    %c0_i32 = arith.constant 0 : i32
    %c0_i32_0 = arith.constant 0 : i32
    %c0_i32_1 = arith.constant 0 : i32
    %c0_i32_2 = arith.constant 0 : i32
    return %c0_i32, %c0_i32_0, %c0_i32_1 : i32, i32, i32
  }
  func.func @transform_5(%arg0: i32) -> (i32, i32) {
    %c0_i32 = arith.constant 0 : i32
    %c0_i32_0 = arith.constant 0 : i32
    %c0_i32_1 = arith.constant 0 : i32
    return %c0_i32, %c0_i32_0 : i32, i32
  }
  func.func @transform_6(%arg0: i32) -> (i32, i32) {
    %c0_i32 = arith.constant 0 : i32
    %c0_i32_0 = arith.constant 0 : i32
    %c0_i32_1 = arith.constant 0 : i32
    return %c0_i32, %c0_i32_0 : i32, i32
  }
  func.func @transform_7(%arg0: i32) -> (i32, i32) {
    %c0_i32 = arith.constant 0 : i32
    %c0_i32_0 = arith.constant 0 : i32
    %c0_i32_1 = arith.constant 0 : i32
    return %c0_i32, %c0_i32_0 : i32, i32
  }
  func.func @transform_8(%arg0: i32) -> (i32, i32) {
    %c0_i32 = arith.constant 0 : i32
    %c0_i32_0 = arith.constant 0 : i32
    %c0_i32_1 = arith.constant 0 : i32
    return %c0_i32, %c0_i32_0 : i32, i32
  }
  func.func @transform_9(%arg0: i32) -> (i32, i32) {
    %c0_i32 = arith.constant 0 : i32
    %c0_i32_0 = arith.constant 0 : i32
    %c0_i32_1 = arith.constant 0 : i32
    return %c0_i32, %c0_i32_0 : i32, i32
  }
  func.func @transform_10(%arg0: i32) -> (i32, i32) {
    %c0_i32 = arith.constant 0 : i32
    %c0_i32_0 = arith.constant 0 : i32
    %c0_i32_1 = arith.constant 0 : i32
    return %c0_i32, %c0_i32_0 : i32, i32
  }
  func.func @transform_11(%arg0: i32) -> (i32, i32) {
    %c0_i32 = arith.constant 0 : i32
    %c0_i32_0 = arith.constant 0 : i32
    %c0_i32_1 = arith.constant 0 : i32
    return %c0_i32, %c0_i32_0 : i32, i32
  }
  func.func @transform_12(%arg0: i32) -> (i32, i32) {
    %c0_i32 = arith.constant 0 : i32
    %c0_i32_0 = arith.constant 0 : i32
    %c0_i32_1 = arith.constant 0 : i32
    return %c0_i32, %c0_i32_0 : i32, i32
  }
  func.func @transform_13(%arg0: i32) -> (i32, i32, i32) {
    %c0_i32 = arith.constant 0 : i32
    %c0_i32_0 = arith.constant 0 : i32
    %c0_i32_1 = arith.constant 0 : i32
    %c0_i32_2 = arith.constant 0 : i32
    return %c0_i32, %c0_i32_0, %c0_i32_1 : i32, i32, i32
  }
  func.func @transform_14(%arg0: i32) -> (i32, i32) {
    %c0_i32 = arith.constant 0 : i32
    %c0_i32_0 = arith.constant 0 : i32
    %c0_i32_1 = arith.constant 0 : i32
    return %c0_i32, %c0_i32_0 : i32, i32
  }
  func.func @transform_15(%arg0: i32) -> (i32, i32, i32) {
    %c0_i32 = arith.constant 0 : i32
    %c0_i32_0 = arith.constant 0 : i32
    %c0_i32_1 = arith.constant 0 : i32
    %c0_i32_2 = arith.constant 0 : i32
    return %c0_i32, %c0_i32_0, %c0_i32_1 : i32, i32, i32
  }
  func.func @transform_16(%arg0: i32) -> (i32, i32) {
    %c0_i32 = arith.constant 0 : i32
    %c0_i32_0 = arith.constant 0 : i32
    %c0_i32_1 = arith.constant 0 : i32
    return %c0_i32, %c0_i32_0 : i32, i32
  }
  func.func @transform_17(%arg0: i32) -> (i32, i32) {
    %c0_i32 = arith.constant 0 : i32
    %c0_i32_0 = arith.constant 0 : i32
    %c0_i32_1 = arith.constant 0 : i32
    return %c0_i32, %c0_i32_0 : i32, i32
  }
  func.func @transform_18(%arg0: i32) -> (i32, i32, i32) {
    %c0_i32 = arith.constant 0 : i32
    %c0_i32_0 = arith.constant 0 : i32
    %c0_i32_1 = arith.constant 0 : i32
    return %arg0, %c0_i32, %c0_i32_0 : i32, i32, i32
  }
}

</mosaic_0001>

<llo_original>
// kernel: attention_decoder_block.1
$region0: #{attention_decoder_block.1}
  #allocation0 [shape = 'u32[]', space=smem, size = 0x4, offset = 0x4, fixed_abs, tag = 'smem constant byte address 0x4 - core index']
  #allocation1 [shape = 'u32[72,128]{1,0:T(1,128)}', space=vmem, size = 0x9000, scoped, tag = 'internal scratch']
  #allocation2 [shape = 'f32[16,512]{1,0:T(8,128)}', space=vmem, size = 0x8000, scoped, tag = 'scratch operand']
  #allocation3 [shape = 'f32[1,1]{1,0:T(1,128)S(1)}', space=vmem, size = 0x200, scoped, tag = 'scoped memory for attention_decoder_block.1']
  %s0 = inlined_call_operand.vmem [shape: f32[2,8,64], index: 0, kind: input, shape index: {}]
  %s1 = inlined_call_operand.vmem [shape: f32[2,8,256], index: 1, kind: input, shape index: {}]
  %s2 = inlined_call_operand.vmem [shape: f32[2,8,64], index: 2, kind: input, shape index: {}]
  %s3 = inlined_call_operand.vmem [shape: f32[4,8,8], index: 3, kind: input, shape index: {}]
  %s4 = inlined_call_operand.hbm [shape: f32[4,64,256], index: 4, kind: input, shape index: {}]
  %s5 = inlined_call_operand.vmem [shape: f32[8,1], index: 5, kind: input, shape index: {}]
  %s6 = inlined_call_operand.vmem [shape: f32[4,8], index: 6, kind: input, shape index: {}]
  %s7 = inlined_call_operand.vmem [shape: f32[4,1], index: 7, kind: input, shape index: {}]
  %s8 = inlined_call_operand.vmem [shape: f32[4,8], index: 8, kind: input, shape index: {}]
  %s9 = inlined_call_operand.vmem [shape: f32[4,1], index: 9, kind: input, shape index: {}]
  %s10 = inlined_call_operand.vmem [shape: f32[4,1], index: 10, kind: input, shape index: {}]
  %s11 = inlined_call_operand.<no memory space> [shape: f32[1,1], index: 11, kind: input, shape index: {}]
  %s12 = inlined_call_operand.vmem [shape: f32[64,256], index: 12, kind: input, shape index: {}]
  %s13 = inlined_call_operand.vmem [shape: f32[9,8,16], index: 13, kind: input, shape index: {}]
  %s14 = inlined_call_operand.vmem [shape: f32[8,1], index: 14, kind: input, shape index: {}]
  %s15 = inlined_call_operand.vmem [shape: f32[9,8,8], index: 15, kind: input, shape index: {}]
  %s16 = inlined_call_operand.vmem [shape: f32[8,1], index: 16, kind: input, shape index: {}]
  %s17 = inlined_call_operand.vmem [shape: f32[2,256], index: 17, kind: input, shape index: {}]
  %s18 = inlined_call_operand.vmem [shape: f32[2,8,256], index: 18, kind: output, shape index: {}]
  %s19 = sld [smem:[#allocation0]]
  $region109: #{attention_decoder_block.1} parent=0
    _
  %s21 = ssub.s32 1, %s19
  %s22 = scalar_select 0, %s21, %s19
  %v23 = vstv %s11
  %24 = vst [vmem:[#allocation3] sm:$0x1] %v23
  $region1: #{attention_decoder_block.1} parent=0
    #allocation4 [shape = 'u8[262144]{0}', space=vmem, size = 0x40000, scoped, tag = 'input window, operand 4, single buffered']
    #allocation5 [shape = 's32[2]{0}', space=sflag, size = 0x8, scoped, tag = 'scoped memory for attention_decoder_block.1']
    %25 = vsyncpa [#allocation5], 0
    loop: start=0, step=1, limit=4
    $region2: #{attention_decoder_block.1} parent=1 // loop_pre_header
      _
    $region3: #{attention_decoder_block.1} parent=1 // loop_header
      %s27 = sphi 0, %s31
      %p28 = scmp.ge.s32.totalorder %s27, 4
      %s37 = sphi 0, %s39
      %s40 = sphi 0, %s37
      %s41 = sphi 0, %s40
      %s57 = sphi 0, %s41
      %s63 = sphi 0, %s65
      %s66 = sphi 0, %s63
      %s67 = sphi 0, %s66
      %s83 = sphi 0, %s67
      %s89 = sphi 0, %s91
      %s92 = sphi 0, %s89
      %s93 = sphi 0, %s92
      %s109 = sphi 0, %s93
      %s113 = sphi 0, %s113
      %s115 = sphi 0, %s113
      %s116 = sphi 0, %s115
      %s130 = sphi 0, %s116
      %s134 = sphi 0, %s134
      %s136 = sphi 0, %s134
      %s137 = sphi 0, %s136
      %s151 = sphi 0, %s137
      %s155 = sphi 0, %s155
      %s157 = sphi 0, %s155
      %s158 = sphi 0, %s157
      %s172 = sphi 0, %s158
      %s176 = sphi 0, %s176
      %s178 = sphi 0, %s176
      %s179 = sphi 0, %s178
      %s193 = sphi 0, %s179
      %s197 = sphi 0, %s197
      %s199 = sphi 0, %s197
      %s200 = sphi 0, %s199
      %s214 = sphi 0, %s200
      %s218 = sphi 0, %s218
      %s220 = sphi 0, %s218
      %s221 = sphi 0, %s220
      %s235 = sphi 0, %s221
      %s239 = sphi 0, %s239
      %s241 = sphi 0, %s239
      %s242 = sphi 0, %s241
      %s256 = sphi 0, %s242
      %s260 = sphi 0, %s260
      %s262 = sphi 0, %s260
      %s263 = sphi 0, %s262
      %s277 = sphi 0, %s263
      %s281 = sphi 0, %s281
      %s283 = sphi 0, %s281
      %s284 = sphi 0, %s283
      %s298 = sphi 0, %s284
      %s302 = sphi 0, %s302
      %s304 = sphi 0, %s302
      %s305 = sphi 0, %s304
      %s319 = sphi 0, %s305
      %s323 = sphi 0, %s323
      %s325 = sphi 0, %s323
      %s326 = sphi 0, %s325
      %s340 = sphi 0, %s326
      %s344 = sphi 0, %s344
      %s346 = sphi 0, %s344
      %s347 = sphi 0, %s346
      %s361 = sphi 0, %s347
      %s365 = sphi 0, %s365
      %s367 = sphi 0, %s365
      %s368 = sphi 0, %s367
      %s382 = sphi 0, %s368
      %s386 = sphi 0, %s386
      %s388 = sphi 0, %s386
      %s389 = sphi 0, %s388
      %s403 = sphi 0, %s389
      %s407 = sphi 0, %s407
      %s409 = sphi 0, %s407
      %s410 = sphi 0, %s409
      %s424 = sphi 0, %s410
      %s430 = sphi 0, %s432
      %s433 = sphi 0, %s430
      %s434 = sphi 0, %s433
      %s450 = sphi 0, %s434
    $region4: #{attention_decoder_block.1} parent=1 // loop_header_branch
      %30 = sbr.rel (%p28) target = $region8
    $region5: #{attention_decoder_block.1} parent=1 // loop_body
      %s32 = ssub.s32 %s27, 1
      %s33 = ssub.s32 %s27, 2
      %s34 = sadd.s32 %s27, 1
      %s35 = ssub.s32 %s27, %s34
      %p36 = scmp.eq.s32.totalorder %s35, 0
      %s38 = sadd.s32 %s37, 1
      %s39 = scalar_select %p36, %s37, %s38
      %p42 = pneg %p36
      %p43 = scmp.eq.s32.totalorder %s27, 1
      %p44 = por %p42, %p43
      %p45 = scmp.ne.s32.totalorder %s37, %s40
      %p46 = scmp.eq.s32.totalorder %s27, 0
      %p47 = por %p45, %p46
      %p48 = scmp.ne.s32.totalorder %s37, %s40
      %p49 = scmp.eq.s32.totalorder %s32, 1
      %p50 = por %p48, %p49
      %p51 = scmp.ne.s32.totalorder %s40, %s41
      %p52 = scmp.eq.s32.totalorder %s32, 0
      %p53 = por %p51, %p52
      %p54 = scmp.ne.s32.totalorder %s40, %s41
      %p55 = scmp.eq.s32.totalorder %s33, 1
      %p56 = por %p54, %p55
      %p58 = scmp.ne.s32.totalorder %s41, %s57
      %p59 = scmp.eq.s32.totalorder %s33, 0
      %p60 = por %p58, %p59
      %s61 = ssub.s32 %s27, %s34
      %p62 = scmp.eq.s32.totalorder %s61, 0
      %s64 = sadd.s32 %s63, 1
      %s65 = scalar_select %p62, %s63, %s64
      %p68 = pneg %p62
      %p69 = scmp.eq.s32.totalorder %s27, 1
      %p70 = por %p68, %p69
      %p71 = scmp.ne.s32.totalorder %s63, %s66
      %p72 = scmp.eq.s32.totalorder %s27, 0
      %p73 = por %p71, %p72
      %p74 = scmp.ne.s32.totalorder %s63, %s66
      %p75 = scmp.eq.s32.totalorder %s32, 1
      %p76 = por %p74, %p75
      %p77 = scmp.ne.s32.totalorder %s66, %s67
      %p78 = scmp.eq.s32.totalorder %s32, 0
      %p79 = por %p77, %p78
      %p80 = scmp.ne.s32.totalorder %s66, %s67
      %p81 = scmp.eq.s32.totalorder %s33, 1
      %p82 = por %p80, %p81
      %p84 = scmp.ne.s32.totalorder %s67, %s83
      %p85 = scmp.eq.s32.totalorder %s33, 0
      %p86 = por %p84, %p85
      %s87 = ssub.s32 %s27, %s34
      %p88 = scmp.eq.s32.totalorder %s87, 0
      %s90 = sadd.s32 %s89, 1
      %s91 = scalar_select %p88, %s89, %s90
      %p94 = pneg %p88
      %p95 = scmp.eq.s32.totalorder %s27, 1
      %p96 = por %p94, %p95
      %p97 = scmp.ne.s32.totalorder %s89, %s92
      %p98 = scmp.eq.s32.totalorder %s27, 0
      %p99 = por %p97, %p98
      %p100 = scmp.ne.s32.totalorder %s89, %s92
      %p101 = scmp.eq.s32.totalorder %s32, 1
      %p102 = por %p100, %p101
      %p103 = scmp.ne.s32.totalorder %s92, %s93
      %p104 = scmp.eq.s32.totalorder %s32, 0
      %p105 = por %p103, %p104
      %p106 = scmp.ne.s32.totalorder %s92, %s93
      %p107 = scmp.eq.s32.totalorder %s33, 1
      %p108 = por %p106, %p107
      %p110 = scmp.ne.s32.totalorder %s93, %s109
      %p111 = scmp.eq.s32.totalorder %s33, 0
      %p112 = por %p110, %p111
      %s114 = sadd.s32 %s113, 1
      %p117 = scmp.eq.s32.totalorder %s27, 1
      %p118 = scmp.ne.s32.totalorder %s113, %s115
      %p119 = scmp.eq.s32.totalorder %s27, 0
      %p120 = por %p118, %p119
      %p121 = scmp.ne.s32.totalorder %s113, %s115
      %p122 = scmp.eq.s32.totalorder %s32, 1
      %p123 = por %p121, %p122
      %p124 = scmp.ne.s32.totalorder %s115, %s116
      %p125 = scmp.eq.s32.totalorder %s32, 0
      %p126 = por %p124, %p125
      %p127 = scmp.ne.s32.totalorder %s115, %s116
      %p128 = scmp.eq.s32.totalorder %s33, 1
      %p129 = por %p127, %p128
      %p131 = scmp.ne.s32.totalorder %s116, %s130
      %p132 = scmp.eq.s32.totalorder %s33, 0
      %p133 = por %p131, %p132
      %s135 = sadd.s32 %s134, 1
      %p138 = scmp.eq.s32.totalorder %s27, 1
      %p139 = scmp.ne.s32.totalorder %s134, %s136
      %p140 = scmp.eq.s32.totalorder %s27, 0
      %p141 = por %p139, %p140
      %p142 = scmp.ne.s32.totalorder %s134, %s136
      %p143 = scmp.eq.s32.totalorder %s32, 1
      %p144 = por %p142, %p143
      %p145 = scmp.ne.s32.totalorder %s136, %s137
      %p146 = scmp.eq.s32.totalorder %s32, 0
      %p147 = por %p145, %p146
      %p148 = scmp.ne.s32.totalorder %s136, %s137
      %p149 = scmp.eq.s32.totalorder %s33, 1
      %p150 = por %p148, %p149
      %p152 = scmp.ne.s32.totalorder %s137, %s151
      %p153 = scmp.eq.s32.totalorder %s33, 0
      %p154 = por %p152, %p153
      %s156 = sadd.s32 %s155, 1
      %p159 = scmp.eq.s32.totalorder %s27, 1
      %p160 = scmp.ne.s32.totalorder %s155, %s157
      %p161 = scmp.eq.s32.totalorder %s27, 0
      %p162 = por %p160, %p161
      %p163 = scmp.ne.s32.totalorder %s155, %s157
      %p164 = scmp.eq.s32.totalorder %s32, 1
      %p165 = por %p163, %p164
      %p166 = scmp.ne.s32.totalorder %s157, %s158
      %p167 = scmp.eq.s32.totalorder %s32, 0
      %p168 = por %p166, %p167
      %p169 = scmp.ne.s32.totalorder %s157, %s158
      %p170 = scmp.eq.s32.totalorder %s33, 1
      %p171 = por %p169, %p170
      %p173 = scmp.ne.s32.totalorder %s158, %s172
      %p174 = scmp.eq.s32.totalorder %s33, 0
      %p175 = por %p173, %p174
      %s177 = sadd.s32 %s176, 1
      %p180 = scmp.eq.s32.totalorder %s27, 1
      %p181 = scmp.ne.s32.totalorder %s176, %s178
      %p182 = scmp.eq.s32.totalorder %s27, 0
      %p183 = por %p181, %p182
      %p184 = scmp.ne.s32.totalorder %s176, %s178
      %p185 = scmp.eq.s32.totalorder %s32, 1
      %p186 = por %p184, %p185
      %p187 = scmp.ne.s32.totalorder %s178, %s179
      %p188 = scmp.eq.s32.totalorder %s32, 0
      %p189 = por %p187, %p188
      %p190 = scmp.ne.s32.totalorder %s178, %s179
      %p191 = scmp.eq.s32.totalorder %s33, 1
      %p192 = por %p190, %p191
      %p194 = scmp.ne.s32.totalorder %s179, %s193
      %p195 = scmp.eq.s32.totalorder %s33, 0
      %p196 = por %p194, %p195
      %s198 = sadd.s32 %s197, 1
      %p201 = scmp.eq.s32.totalorder %s27, 1
      %p202 = scmp.ne.s32.totalorder %s197, %s199
      %p203 = scmp.eq.s32.totalorder %s27, 0
      %p204 = por %p202, %p203
      %p205 = scmp.ne.s32.totalorder %s197, %s199
      %p206 = scmp.eq.s32.totalorder %s32, 1
      %p207 = por %p205, %p206
      %p208 = scmp.ne.s32.totalorder %s199, %s200
      %p209 = scmp.eq.s32.totalorder %s32, 0
      %p210 = por %p208, %p209
      %p211 = scmp.ne.s32.totalorder %s199, %s200
      %p212 = scmp.eq.s32.totalorder %s33, 1
      %p213 = por %p211, %p212
      %p215 = scmp.ne.s32.totalorder %s200, %s214
      %p216 = scmp.eq.s32.totalorder %s33, 0
      %p217 = por %p215, %p216
      %s219 = sadd.s32 %s218, 1
      %p222 = scmp.eq.s32.totalorder %s27, 1
      %p223 = scmp.ne.s32.totalorder %s218, %s220
      %p224 = scmp.eq.s32.totalorder %s27, 0
      %p225 = por %p223, %p224
      %p226 = scmp.ne.s32.totalorder %s218, %s220
      %p227 = scmp.eq.s32.totalorder %s32, 1
      %p228 = por %p226, %p227
      %p229 = scmp.ne.s32.totalorder %s220, %s221
      %p230 = scmp.eq.s32.totalorder %s32, 0
      %p231 = por %p229, %p230
      %p232 = scmp.ne.s32.totalorder %s220, %s221
      %p233 = scmp.eq.s32.totalorder %s33, 1
      %p234 = por %p232, %p233
      %p236 = scmp.ne.s32.totalorder %s221, %s235
      %p237 = scmp.eq.s32.totalorder %s33, 0
      %p238 = por %p236, %p237
      %s240 = sadd.s32 %s239, 1
      %p243 = scmp.eq.s32.totalorder %s27, 1
      %p244 = scmp.ne.s32.totalorder %s239, %s241
      %p245 = scmp.eq.s32.totalorder %s27, 0
      %p246 = por %p244, %p245
      %p247 = scmp.ne.s32.totalorder %s239, %s241
      %p248 = scmp.eq.s32.totalorder %s32, 1
      %p249 = por %p247, %p248
      %p250 = scmp.ne.s32.totalorder %s241, %s242
      %p251 = scmp.eq.s32.totalorder %s32, 0
      %p252 = por %p250, %p251
      %p253 = scmp.ne.s32.totalorder %s241, %s242
      %p254 = scmp.eq.s32.totalorder %s33, 1
      %p255 = por %p253, %p254
      %p257 = scmp.ne.s32.totalorder %s242, %s256
      %p258 = scmp.eq.s32.totalorder %s33, 0
      %p259 = por %p257, %p258
      %s261 = sadd.s32 %s260, 1
      %p264 = scmp.eq.s32.totalorder %s27, 1
      %p265 = scmp.ne.s32.totalorder %s260, %s262
      %p266 = scmp.eq.s32.totalorder %s27, 0
      %p267 = por %p265, %p266
      %p268 = scmp.ne.s32.totalorder %s260, %s262
      %p269 = scmp.eq.s32.totalorder %s32, 1
      %p270 = por %p268, %p269
      %p271 = scmp.ne.s32.totalorder %s262, %s263
      %p272 = scmp.eq.s32.totalorder %s32, 0
      %p273 = por %p271, %p272
      %p274 = scmp.ne.s32.totalorder %s262, %s263
      %p275 = scmp.eq.s32.totalorder %s33, 1
      %p276 = por %p274, %p275
      %p278 = scmp.ne.s32.totalorder %s263, %s277
      %p279 = scmp.eq.s32.totalorder %s33, 0
      %p280 = por %p278, %p279
      %s282 = sadd.s32 %s281, 1
      %p285 = scmp.eq.s32.totalorder %s27, 1
      %p286 = scmp.ne.s32.totalorder %s281, %s283
      %p287 = scmp.eq.s32.totalorder %s27, 0
      %p288 = por %p286, %p287
      %p289 = scmp.ne.s32.totalorder %s281, %s283
      %p290 = scmp.eq.s32.totalorder %s32, 1
      %p291 = por %p289, %p290
      %p292 = scmp.ne.s32.totalorder %s283, %s284
      %p293 = scmp.eq.s32.totalorder %s32, 0
      %p294 = por %p292, %p293
      %p295 = scmp.ne.s32.totalorder %s283, %s284
      %p296 = scmp.eq.s32.totalorder %s33, 1
      %p297 = por %p295, %p296
      %p299 = scmp.ne.s32.totalorder %s284, %s298
      %p300 = scmp.eq.s32.totalorder %s33, 0
      %p301 = por %p299, %p300
      %s303 = sadd.s32 %s302, 1
      %p306 = scmp.eq.s32.totalorder %s27, 1
      %p307 = scmp.ne.s32.totalorder %s302, %s304
      %p308 = scmp.eq.s32.totalorder %s27, 0
      %p309 = por %p307, %p308
      %p310 = scmp.ne.s32.totalorder %s302, %s304
      %p311 = scmp.eq.s32.totalorder %s32, 1
      %p312 = por %p310, %p311
      %p313 = scmp.ne.s32.totalorder %s304, %s305
      %p314 = scmp.eq.s32.totalorder %s32, 0
      %p315 = por %p313, %p314
      %p316 = scmp.ne.s32.totalorder %s304, %s305
      %p317 = scmp.eq.s32.totalorder %s33, 1
      %p318 = por %p316, %p317
      %p320 = scmp.ne.s32.totalorder %s305, %s319
      %p321 = scmp.eq.s32.totalorder %s33, 0
      %p322 = por %p320, %p321
      %s324 = sadd.s32 %s323, 1
      %p327 = scmp.eq.s32.totalorder %s27, 1
      %p328 = scmp.ne.s32.totalorder %s323, %s325
      %p329 = scmp.eq.s32.totalorder %s27, 0
      %p330 = por %p328, %p329
      %p331 = scmp.ne.s32.totalorder %s323, %s325
      %p332 = scmp.eq.s32.totalorder %s32, 1
      %p333 = por %p331, %p332
      %p334 = scmp.ne.s32.totalorder %s325, %s326
      %p335 = scmp.eq.s32.totalorder %s32, 0
      %p336 = por %p334, %p335
      %p337 = scmp.ne.s32.totalorder %s325, %s326
      %p338 = scmp.eq.s32.totalorder %s33, 1
      %p339 = por %p337, %p338
      %p341 = scmp.ne.s32.totalorder %s326, %s340
      %p342 = scmp.eq.s32.totalorder %s33, 0
      %p343 = por %p341, %p342
      %s345 = sadd.s32 %s344, 1
      %p348 = scmp.eq.s32.totalorder %s27, 1
      %p349 = scmp.ne.s32.totalorder %s344, %s346
      %p350 = scmp.eq.s32.totalorder %s27, 0
      %p351 = por %p349, %p350
      %p352 = scmp.ne.s32.totalorder %s344, %s346
      %p353 = scmp.eq.s32.totalorder %s32, 1
      %p354 = por %p352, %p353
      %p355 = scmp.ne.s32.totalorder %s346, %s347
      %p356 = scmp.eq.s32.totalorder %s32, 0
      %p357 = por %p355, %p356
      %p358 = scmp.ne.s32.totalorder %s346, %s347
      %p359 = scmp.eq.s32.totalorder %s33, 1
      %p360 = por %p358, %p359
      %p362 = scmp.ne.s32.totalorder %s347, %s361
      %p363 = scmp.eq.s32.totalorder %s33, 0
      %p364 = por %p362, %p363
      %s366 = sadd.s32 %s365, 1
      %p369 = scmp.eq.s32.totalorder %s27, 1
      %p370 = scmp.ne.s32.totalorder %s365, %s367
      %p371 = scmp.eq.s32.totalorder %s27, 0
      %p372 = por %p370, %p371
      %p373 = scmp.ne.s32.totalorder %s365, %s367
      %p374 = scmp.eq.s32.totalorder %s32, 1
      %p375 = por %p373, %p374
      %p376 = scmp.ne.s32.totalorder %s367, %s368
      %p377 = scmp.eq.s32.totalorder %s32, 0
      %p378 = por %p376, %p377
      %p379 = scmp.ne.s32.totalorder %s367, %s368
      %p380 = scmp.eq.s32.totalorder %s33, 1
      %p381 = por %p379, %p380
      %p383 = scmp.ne.s32.totalorder %s368, %s382
      %p384 = scmp.eq.s32.totalorder %s33, 0
      %p385 = por %p383, %p384
      %s387 = sadd.s32 %s386, 1
      %p390 = scmp.eq.s32.totalorder %s27, 1
      %p391 = scmp.ne.s32.totalorder %s386, %s388
      %p392 = scmp.eq.s32.totalorder %s27, 0
      %p393 = por %p391, %p392
      %p394 = scmp.ne.s32.totalorder %s386, %s388
      %p395 = scmp.eq.s32.totalorder %s32, 1
      %p396 = por %p394, %p395
      %p397 = scmp.ne.s32.totalorder %s388, %s389
      %p398 = scmp.eq.s32.totalorder %s32, 0
      %p399 = por %p397, %p398
      %p400 = scmp.ne.s32.totalorder %s388, %s389
      %p401 = scmp.eq.s32.totalorder %s33, 1
      %p402 = por %p400, %p401
      %p404 = scmp.ne.s32.totalorder %s389, %s403
      %p405 = scmp.eq.s32.totalorder %s33, 0
      %p406 = por %p404, %p405
      %s408 = sadd.s32 %s407, 1
      %p411 = scmp.eq.s32.totalorder %s27, 1
      %p412 = scmp.ne.s32.totalorder %s407, %s409
      %p413 = scmp.eq.s32.totalorder %s27, 0
      %p414 = por %p412, %p413
      %p415 = scmp.ne.s32.totalorder %s407, %s409
      %p416 = scmp.eq.s32.totalorder %s32, 1
      %p417 = por %p415, %p416
      %p418 = scmp.ne.s32.totalorder %s409, %s410
      %p419 = scmp.eq.s32.totalorder %s32, 0
      %p420 = por %p418, %p419
      %p421 = scmp.ne.s32.totalorder %s409, %s410
      %p422 = scmp.eq.s32.totalorder %s33, 1
      %p423 = por %p421, %p422
      %p425 = scmp.ne.s32.totalorder %s410, %s424
      %p426 = scmp.eq.s32.totalorder %s33, 0
      %p427 = por %p425, %p426
      %s428 = ssub.s32 %s27, %s34
      %p429 = scmp.eq.s32.totalorder %s428, 0
      %s431 = sadd.s32 %s430, 1
      %s432 = scalar_select %p429, %s430, %s431
      %p435 = pneg %p429
      %p436 = scmp.eq.s32.totalorder %s27, 1
      %p437 = por %p435, %p436
      %p438 = scmp.ne.s32.totalorder %s430, %s433
      %p439 = scmp.eq.s32.totalorder %s27, 0
      %p440 = por %p438, %p439
      %p441 = scmp.ne.s32.totalorder %s430, %s433
      %p442 = scmp.eq.s32.totalorder %s32, 1
      %p443 = por %p441, %p442
      %p444 = scmp.ne.s32.totalorder %s433, %s434
      %p445 = scmp.eq.s32.totalorder %s32, 0
      %p446 = por %p444, %p445
      %p447 = scmp.ne.s32.totalorder %s433, %s434
      %p448 = scmp.eq.s32.totalorder %s33, 1
      %p449 = por %p447, %p448
      %p451 = scmp.ne.s32.totalorder %s434, %s450
      %p452 = scmp.eq.s32.totalorder %s33, 0
      %p453 = por %p451, %p452
      %p454 = scmp.le.s32.totalorder 1, %s27
      %p455 = scmp.lt.s32.totalorder %s27, 3
      %p456 = pnand %p454, %p455
      %p457 = pneg %p456
      // Predicated region
      $region9: #{attention_decoder_block.1} parent=5 // pred_check
        _
      $region10: #{attention_decoder_block.1} parent=5 // pred_check_branch
        %459 = sbr.rel (%p456) target = $region12
      $region11: #{attention_decoder_block.1} parent=5 // pred_region
        %s460 = ssub.s32 %s27, 1
        // Predicated region
        $region13: #{attention_decoder_block.1} parent=11 // pred_check
          %p461 = pneg %p126
        $region14: #{attention_decoder_block.1} parent=11 // pred_check_branch
          %463 = sbr.rel (%p461) target = $region16
        $region15: #{attention_decoder_block.1} parent=11 // pred_region
          _
        $region16: #{attention_decoder_block.1} parent=11 // pred_fallthru
          _
        // Predicated region
        $region17: #{attention_decoder_block.1} parent=11 // pred_check
          %p464 = pneg %p147
        $region18: #{attention_decoder_block.1} parent=11 // pred_check_branch
          %466 = sbr.rel (%p464) target = $region20
        $region19: #{attention_decoder_block.1} parent=11 // pred_region
          %468 = vsyncadd [#allocation5], 0
          %s469 = sshll.u32 %s4, 4
          %s470 = int_to_ptr.hbm [resolvable:$true] %s469
          %s471 = sshll.u32 [#allocation4], 4
          %s472 = int_to_ptr.vmem [resolvable:$true] %s471
          %477 = dma.hbm_to_vmem [thread:$0]  %s470, 8192, %s472, [#allocation5], 256, 256, 16
        $region20: #{attention_decoder_block.1} parent=11 // pred_fallthru
          _
        // Predicated region
        $region21: #{attention_decoder_block.1} parent=11 // pred_check
          %p478 = pneg %p168
        $region22: #{attention_decoder_block.1} parent=11 // pred_check_branch
          %480 = sbr.rel (%p478) target = $region24
        $region23: #{attention_decoder_block.1} parent=11 // pred_region
          _
        $region24: #{attention_decoder_block.1} parent=11 // pred_fallthru
          _
        // Predicated region
        $region25: #{attention_decoder_block.1} parent=11 // pred_check
          %p481 = pneg %p189
        $region26: #{attention_decoder_block.1} parent=11 // pred_check_branch
          %483 = sbr.rel (%p481) target = $region28
        $region27: #{attention_decoder_block.1} parent=11 // pred_region
          _
        $region28: #{attention_decoder_block.1} parent=11 // pred_fallthru
          _
        // Predicated region
        $region29: #{attention_decoder_block.1} parent=11 // pred_check
          %p484 = pneg %p210
        $region30: #{attention_decoder_block.1} parent=11 // pred_check_branch
          %486 = sbr.rel (%p484) target = $region32
        $region31: #{attention_decoder_block.1} parent=11 // pred_region
          _
        $region32: #{attention_decoder_block.1} parent=11 // pred_fallthru
          _
        // Predicated region
        $region33: #{attention_decoder_block.1} parent=11 // pred_check
          %p487 = pneg %p231
        $region34: #{attention_decoder_block.1} parent=11 // pred_check_branch
          %489 = sbr.rel (%p487) target = $region36
        $region35: #{attention_decoder_block.1} parent=11 // pred_region
          _
        $region36: #{attention_decoder_block.1} parent=11 // pred_fallthru
          _
        // Predicated region
        $region37: #{attention_decoder_block.1} parent=11 // pred_check
          %p490 = pneg %p252
        $region38: #{attention_decoder_block.1} parent=11 // pred_check_branch
          %492 = sbr.rel (%p490) target = $region40
        $region39: #{attention_decoder_block.1} parent=11 // pred_region
          _
        $region40: #{attention_decoder_block.1} parent=11 // pred_fallthru
          _
        // Predicated region
        $region41: #{attention_decoder_block.1} parent=11 // pred_check
          %p493 = pneg %p273
        $region42: #{attention_decoder_block.1} parent=11 // pred_check_branch
          %495 = sbr.rel (%p493) target = $region44
        $region43: #{attention_decoder_block.1} parent=11 // pred_region
          _
        $region44: #{attention_decoder_block.1} parent=11 // pred_fallthru
          _
        // Predicated region
        $region45: #{attention_decoder_block.1} parent=11 // pred_check
          %p496 = pneg %p294
        $region46: #{attention_decoder_block.1} parent=11 // pred_check_branch
          %498 = sbr.rel (%p496) target = $region48
        $region47: #{attention_decoder_block.1} parent=11 // pred_region
          _
        $region48: #{attention_decoder_block.1} parent=11 // pred_fallthru
          _
        // Predicated region
        $region49: #{attention_decoder_block.1} parent=11 // pred_check
          %p499 = pneg %p315
        $region50: #{attention_decoder_block.1} parent=11 // pred_check_branch
          %501 = sbr.rel (%p499) target = $region52
        $region51: #{attention_decoder_block.1} parent=11 // pred_region
          _
        $region52: #{attention_decoder_block.1} parent=11 // pred_fallthru
          _
        // Predicated region
        $region53: #{attention_decoder_block.1} parent=11 // pred_check
          %p502 = pneg %p336
        $region54: #{attention_decoder_block.1} parent=11 // pred_check_branch
          %504 = sbr.rel (%p502) target = $region56
        $region55: #{attention_decoder_block.1} parent=11 // pred_region
          _
        $region56: #{attention_decoder_block.1} parent=11 // pred_fallthru
          _
        // Predicated region
        $region57: #{attention_decoder_block.1} parent=11 // pred_check
          %p505 = pneg %p357
        $region58: #{attention_decoder_block.1} parent=11 // pred_check_branch
          %507 = sbr.rel (%p505) target = $region60
        $region59: #{attention_decoder_block.1} parent=11 // pred_region
          _
        $region60: #{attention_decoder_block.1} parent=11 // pred_fallthru
          _
        // Predicated region
        $region61: #{attention_decoder_block.1} parent=11 // pred_check
          %p508 = pneg %p378
        $region62: #{attention_decoder_block.1} parent=11 // pred_check_branch
          %510 = sbr.rel (%p508) target = $region64
        $region63: #{attention_decoder_block.1} parent=11 // pred_region
          _
        $region64: #{attention_decoder_block.1} parent=11 // pred_fallthru
          _
        // Predicated region
        $region65: #{attention_decoder_block.1} parent=11 // pred_check
          %p511 = pneg %p399
        $region66: #{attention_decoder_block.1} parent=11 // pred_check_branch
          %513 = sbr.rel (%p511) target = $region68
        $region67: #{attention_decoder_block.1} parent=11 // pred_region
          _
        $region68: #{attention_decoder_block.1} parent=11 // pred_fallthru
          _
        // Predicated region
        $region69: #{attention_decoder_block.1} parent=11 // pred_check
          %p514 = pneg %p420
        $region70: #{attention_decoder_block.1} parent=11 // pred_check_branch
          %516 = sbr.rel (%p514) target = $region72
        $region71: #{attention_decoder_block.1} parent=11 // pred_region
          _
        $region72: #{attention_decoder_block.1} parent=11 // pred_fallthru
          _
      $region12: #{attention_decoder_block.1} parent=5 // pred_fallthru
        _
      %p517 = scmp.lt.s32.totalorder %s27, 2
      // Predicated region
      $region73: #{attention_decoder_block.1} parent=5 // pred_check
        %p518 = pneg %p517
      $region74: #{attention_decoder_block.1} parent=5 // pred_check_branch
        %520 = sbr.rel (%p518) target = $region76
      $region75: #{attention_decoder_block.1} parent=5 // pred_region
        // Predicated region
        $region77: #{attention_decoder_block.1} parent=75 // pred_check
          %p521 = pneg %p47
        $region78: #{attention_decoder_block.1} parent=75 // pred_check_branch
          %523 = sbr.rel (%p521) target = $region80
        $region79: #{attention_decoder_block.1} parent=75 // pred_region
          %p524 = scmp.lt.s32.totalorder %s27, 1
          %s525 = scalar_select %p524, %s27, 1
          %s526 = smul.addr %s525, 8
          %s527 = scalar_lea.vmem %s0, %s526
        $region80: #{attention_decoder_block.1} parent=75 // pred_fallthru
          _
        // Predicated region
        $region81: #{attention_decoder_block.1} parent=75 // pred_check
          %p528 = pneg %p73
        $region82: #{attention_decoder_block.1} parent=75 // pred_check_branch
          %530 = sbr.rel (%p528) target = $region84
        $region83: #{attention_decoder_block.1} parent=75 // pred_region
          %p531 = scmp.lt.s32.totalorder %s27, 1
          %s532 = scalar_select %p531, %s27, 1
          %s533 = smul.addr %s532, 2
          %s534 = smul.addr %s533, 8
          %s535 = scalar_lea.vmem %s1, %s534
        $region84: #{attention_decoder_block.1} parent=75 // pred_fallthru
          _
        // Predicated region
        $region85: #{attention_decoder_block.1} parent=75 // pred_check
          %p536 = pneg %p99
        $region86: #{attention_decoder_block.1} parent=75 // pred_check_branch
          %538 = sbr.rel (%p536) target = $region88
        $region87: #{attention_decoder_block.1} parent=75 // pred_region
          %p539 = scmp.lt.s32.totalorder %s27, 1
          %s540 = scalar_select %p539, %s27, 1
          %s541 = smul.addr %s540, 8
          %s542 = scalar_lea.vmem %s2, %s541
        $region88: #{attention_decoder_block.1} parent=75 // pred_fallthru
          _
      $region76: #{attention_decoder_block.1} parent=5 // pred_fallthru
        _
      %p543 = scmp.le.s32.totalorder 1, %s27
      %p544 = scmp.lt.s32.totalorder %s27, 3
      %p545 = pnand %p543, %p544
      %p546 = pneg %p545
      // Predicated region
      $region89: #{attention_decoder_block.1} parent=5 // pred_check
        _
      $region90: #{attention_decoder_block.1} parent=5 // pred_check_branch
        %548 = sbr.rel (%p545) target = $region92
      $region91: #{attention_decoder_block.1} parent=5 // pred_region
        %s549 = ssub.s32 %s27, 1
        // Predicated region
        $region93: #{attention_decoder_block.1} parent=91 // pred_check
          %p550 = pneg %p147
        $region94: #{attention_decoder_block.1} parent=91 // pred_check_branch
          %552 = sbr.rel (%p550) target = $region96
        $region95: #{attention_decoder_block.1} parent=91 // pred_region
          %554 = dma.done [#allocation5], 8192
        $region96: #{attention_decoder_block.1} parent=91 // pred_fallthru
          _
        %p555 = scmp.lt.s32.totalorder %s32, 1
        %s556 = scalar_select %p555, %s32, 1
        %s557 = smul.addr %s556, 8
        %s558 = scalar_lea.vmem %s0, %s557
        %p559 = pneg %p53
        %p560 = pneg %p50
        %p561 = scmp.lt.s32.totalorder %s32, 1
        %s562 = scalar_select %p561, %s32, 1
        %s563 = smul.addr %s562, 2
        %s564 = smul.addr %s563, 8
        %s565 = scalar_lea.vmem %s1, %s564
        %p566 = pneg %p79
        %p567 = pneg %p76
        %p568 = scmp.lt.s32.totalorder %s32, 1
        %s569 = scalar_select %p568, %s32, 1
        %s570 = smul.addr %s569, 8
        %s571 = scalar_lea.vmem %s2, %s570
        %p572 = pneg %p105
        %p573 = pneg %p102
        %p574 = pneg %p126
        %p575 = pneg %p123
        %p576 = pneg %p147
        %p577 = pneg %p144
        %p578 = pneg %p168
        %p579 = pneg %p165
        %p580 = pneg %p189
        %p581 = pneg %p186
        %p582 = pneg %p210
        %p583 = pneg %p207
        %p584 = pneg %p231
        %p585 = pneg %p228
        %p586 = pneg %p252
        %p587 = pneg %p249
        %p588 = pneg %p273
        %p589 = pneg %p270
        %p590 = pneg %p294
        %p591 = pneg %p291
        %p592 = pneg %p315
        %p593 = pneg %p312
        %p594 = pneg %p336
        %p595 = pneg %p333
        %p596 = pneg %p357
        %p597 = pneg %p354
        %p598 = pneg %p378
        %p599 = pneg %p375
        %p600 = pneg %p399
        %p601 = pneg %p396
        %p602 = pneg %p420
        %p603 = pneg %p417
        %p604 = pneg %p446
        %p605 = pneg %p443
        %p606 = scmp.lt.s32.totalorder %s32, 1
        %s607 = scalar_select %p606, %s32, 1
        %s608 = smul.addr %s607, 2
        %s609 = smul.addr %s608, 8
        %s610 = scalar_lea.vmem %s18, %s609
        %p611 = scmp.lt.s32.totalorder %s32, 1
        %s612 = scalar_select %p611, %s32, 1
        %s613 = smul.addr %s612, 8
        %s614 = scalar_lea.vmem %s0, %s613
        %p615 = scmp.lt.s32.totalorder %s32, 1
        %s616 = scalar_select %p615, %s32, 1
        %s617 = smul.addr %s616, 2
        %s618 = smul.addr %s617, 8
        %s619 = scalar_lea.vmem %s1, %s618
        %p620 = scmp.lt.s32.totalorder %s32, 1
        %s621 = scalar_select %p620, %s32, 1
        %s622 = smul.addr %s621, 8
        %s623 = scalar_lea.vmem %s2, %s622
        %p624 = scmp.lt.s32.totalorder %s32, 1
        %s625 = scalar_select %p624, %s32, 1
        %s626 = smul.addr %s625, 2
        %s627 = smul.addr %s626, 8
        %s628 = scalar_lea.vmem %s18, %s627
        %v629 = vld [vmem:[%s614] sm:$0xff]
        %v630 = vld [vmem:[%s619] sm:$0xff]
        %v631 = vld [vmem:[%s619 + $0x8] sm:$0xff]
        %v632 = vld [vmem:[%s623] sm:$0xff]
        %v633 = vld [vmem:[%s3] sm:$0xff]
        %vm634 = vcmask 64512
        %v636 = vsel %vm634, %v633, 0
        %638 = vmatpush.msra.mxu0 0.0
        %639 = vmatpush.msra.mxu0 0.0
        %640 = vmatpush.msra.mxu0 0.0
        %641 = vmatpush.msra.mxu0 0.0
        %642 = vmatpush.msra.mxu0 0.0
        %643 = vmatpush.msra.mxu0 0.0
        %644 = vmatpush.msra.mxu0 0.0
        %645 = vmatpush.msra.mxu0 0.0
        %646 = vmatpush.msra.mxu0 0.0
        %647 = vmatpush.msra.mxu0 0.0
        %648 = vmatpush.msra.mxu0 0.0
        %649 = vmatpush.msra.mxu0 0.0
        %650 = vmatpush.msra.mxu0 0.0
        %651 = vmatpush.msra.mxu0 0.0
        %652 = vmatpush.msra.mxu0 0.0
        %653 = vmatpush.msra.mxu0 %v629
        %654 = vmatmul.f32.gmra.mxu0 %v636
        %v655 = vpop.f32.mrf.mxu0
        %v656 = vadd.f32 0.0, %v655
        %657 = vdwg.mxu0
        %v658 = vld [vmem:[#allocation4] sm:$0xff]
        %v659 = vld [vmem:[#allocation4 + $0x8] sm:$0xff]
        %v660 = vld [vmem:[#allocation4 + $0x10] sm:$0xff]
        %v661 = vld [vmem:[#allocation4 + $0x18] sm:$0xff]
        %v662 = vld [vmem:[#allocation4 + $0x20] sm:$0xff]
        %v663 = vld [vmem:[#allocation4 + $0x28] sm:$0xff]
        %v664 = vld [vmem:[#allocation4 + $0x30] sm:$0xff]
        %v665 = vld [vmem:[#allocation4 + $0x38] sm:$0xff]
        %v666 = vld [vmem:[#allocation4 + $0x40] sm:$0xff]
        %v667 = vld [vmem:[#allocation4 + $0x48] sm:$0xff]
        %v668 = vld [vmem:[#allocation4 + $0x50] sm:$0xff]
        %v669 = vld [vmem:[#allocation4 + $0x58] sm:$0xff]
        %v670 = vld [vmem:[#allocation4 + $0x60] sm:$0xff]
        %v671 = vld [vmem:[#allocation4 + $0x68] sm:$0xff]
        %v672 = vld [vmem:[#allocation4 + $0x70] sm:$0xff]
        %v673 = vld [vmem:[#allocation4 + $0x78] sm:$0xff]
        %s674 = scalar_lea.vmem %s3, 8
        %v675 = vld [vmem:[%s674] sm:$0xff]
        %v677 = vsel %vm634, %v675, 0
        %679 = vmatpush.msra.mxu0 0.0
        %680 = vmatpush.msra.mxu0 0.0
        %681 = vmatpush.msra.mxu0 0.0
        %682 = vmatpush.msra.mxu0 0.0
        %683 = vmatpush.msra.mxu0 0.0
        %684 = vmatpush.msra.mxu0 0.0
        %685 = vmatpush.msra.mxu0 0.0
        %686 = vmatpush.msra.mxu0 0.0
        %687 = vmatpush.msra.mxu0 0.0
        %688 = vmatpush.msra.mxu0 0.0
        %689 = vmatpush.msra.mxu0 0.0
        %690 = vmatpush.msra.mxu0 0.0
        %691 = vmatpush.msra.mxu0 0.0
        %692 = vmatpush.msra.mxu0 0.0
        %693 = vmatpush.msra.mxu0 0.0
        %694 = vmatpush.msra.mxu0 %v629
        %695 = vmatmul.f32.gmra.mxu0 %v677
        %v696 = vpop.f32.mrf.mxu0
        %v697 = vadd.f32 0.0, %v696
        %698 = vdwg.mxu0
        %s699 = scalar_lea.vmem [#allocation4], 128
        %v700 = vld [vmem:[%s699] sm:$0xff]
        %v701 = vld [vmem:[%s699 + $0x8] sm:$0xff]
        %v702 = vld [vmem:[%s699 + $0x10] sm:$0xff]
        %v703 = vld [vmem:[%s699 + $0x18] sm:$0xff]
        %v704 = vld [vmem:[%s699 + $0x20] sm:$0xff]
        %v705 = vld [vmem:[%s699 + $0x28] sm:$0xff]
        %v706 = vld [vmem:[%s699 + $0x30] sm:$0xff]
        %v707 = vld [vmem:[%s699 + $0x38] sm:$0xff]
        %v708 = vld [vmem:[%s699 + $0x40] sm:$0xff]
        %v709 = vld [vmem:[%s699 + $0x48] sm:$0xff]
        %v710 = vld [vmem:[%s699 + $0x50] sm:$0xff]
        %v711 = vld [vmem:[%s699 + $0x58] sm:$0xff]
        %v712 = vld [vmem:[%s699 + $0x60] sm:$0xff]
        %v713 = vld [vmem:[%s699 + $0x68] sm:$0xff]
        %v714 = vld [vmem:[%s699 + $0x70] sm:$0xff]
        %v715 = vld [vmem:[%s699 + $0x78] sm:$0xff]
        %vm716 = vcmask 523264
        %v718 = vsel %vm716, %v697, 0
        %720 = vmatpush.msra.mxu0 0.0
        %721 = vmatpush.msra.mxu0 0.0
        %722 = vmatpush.msra.mxu0 0.0
        %723 = vmatpush.msra.mxu0 0.0
        %724 = vmatpush.msra.mxu0 0.0
        %725 = vmatpush.msra.mxu0 0.0
        %726 = vmatpush.msra.mxu0 0.0
        %727 = vmatpush.msra.mxu0 0.0
        %728 = vmatpush.msra.mxu0 %v714
        %729 = vmatpush.msra.mxu0 %v712
        %730 = vmatpush.msra.mxu0 %v710
        %731 = vmatpush.msra.mxu0 %v708
        %732 = vmatpush.msra.mxu0 %v706
        %733 = vmatpush.msra.mxu0 %v704
        %734 = vmatpush.msra.mxu0 %v702
        %735 = vmatpush.msra.mxu0 %v700
        %736 = vmatmul.f32.gmra.mxu0 %v718
        %v737 = vpop.f32.mrf.mxu0
        %v738 = vadd.f32 0.0, %v737
        %739 = vdwg.mxu0
        %740 = vmatpush.msra.mxu0 0.0
        %741 = vmatpush.msra.mxu0 0.0
        %742 = vmatpush.msra.mxu0 0.0
        %743 = vmatpush.msra.mxu0 0.0
        %744 = vmatpush.msra.mxu0 0.0
        %745 = vmatpush.msra.mxu0 0.0
        %746 = vmatpush.msra.mxu0 0.0
        %747 = vmatpush.msra.mxu0 0.0
        %748 = vmatpush.msra.mxu0 %v715
        %749 = vmatpush.msra.mxu0 %v713
        %750 = vmatpush.msra.mxu0 %v711
        %751 = vmatpush.msra.mxu0 %v709
        %752 = vmatpush.msra.mxu0 %v707
        %753 = vmatpush.msra.mxu0 %v705
        %754 = vmatpush.msra.mxu0 %v703
        %755 = vmatpush.msra.mxu0 %v701
        %756 = vmatmul.f32.gmra.mxu0 %v718
        %v757 = vpop.f32.mrf.mxu0
        %v758 = vadd.f32 0.0, %v757
        %759 = vdwg.mxu0
        %v761 = vsel %vm716, %v656, 0
        %763 = vmatpush.msra.mxu0 0.0
        %764 = vmatpush.msra.mxu0 0.0
        %765 = vmatpush.msra.mxu0 0.0
        %766 = vmatpush.msra.mxu0 0.0
        %767 = vmatpush.msra.mxu0 0.0
        %768 = vmatpush.msra.mxu0 0.0
        %769 = vmatpush.msra.mxu0 0.0
        %770 = vmatpush.msra.mxu0 0.0
        %771 = vmatpush.msra.mxu0 %v672
        %772 = vmatpush.msra.mxu0 %v670
        %773 = vmatpush.msra.mxu0 %v668
        %774 = vmatpush.msra.mxu0 %v666
        %775 = vmatpush.msra.mxu0 %v664
        %776 = vmatpush.msra.mxu0 %v662
        %777 = vmatpush.msra.mxu0 %v660
        %778 = vmatpush.msra.mxu0 %v658
        %779 = vmatmul.f32.gmra.mxu0 %v761
        %v780 = vpop.f32.mrf.mxu0
        %v781 = vadd.f32 %v738, %v780
        %782 = vdwg.mxu0
        %783 = vmatpush.msra.mxu0 0.0
        %784 = vmatpush.msra.mxu0 0.0
        %785 = vmatpush.msra.mxu0 0.0
        %786 = vmatpush.msra.mxu0 0.0
        %787 = vmatpush.msra.mxu0 0.0
        %788 = vmatpush.msra.mxu0 0.0
        %789 = vmatpush.msra.mxu0 0.0
        %790 = vmatpush.msra.mxu0 0.0
        %791 = vmatpush.msra.mxu0 %v673
        %792 = vmatpush.msra.mxu0 %v671
        %793 = vmatpush.msra.mxu0 %v669
        %794 = vmatpush.msra.mxu0 %v667
        %795 = vmatpush.msra.mxu0 %v665
        %796 = vmatpush.msra.mxu0 %v663
        %797 = vmatpush.msra.mxu0 %v661
        %798 = vmatpush.msra.mxu0 %v659
        %799 = vmatmul.f32.gmra.mxu0 %v761
        %v800 = vpop.f32.mrf.mxu0
        %v801 = vadd.f32 %v758, %v800
        %802 = vdwg.mxu0
        %s803 = scalar_lea.vmem %s3, 16
        %v804 = vld [vmem:[%s803] sm:$0xff]
        %v806 = vsel %vm634, %v804, 0
        %808 = vmatpush.msra.mxu0 0.0
        %809 = vmatpush.msra.mxu0 0.0
        %810 = vmatpush.msra.mxu0 0.0
        %811 = vmatpush.msra.mxu0 0.0
        %812 = vmatpush.msra.mxu0 0.0
        %813 = vmatpush.msra.mxu0 0.0
        %814 = vmatpush.msra.mxu0 0.0
        %815 = vmatpush.msra.mxu0 0.0
        %816 = vmatpush.msra.mxu0 0.0
        %817 = vmatpush.msra.mxu0 0.0
        %818 = vmatpush.msra.mxu0 0.0
        %819 = vmatpush.msra.mxu0 0.0
        %820 = vmatpush.msra.mxu0 0.0
        %821 = vmatpush.msra.mxu0 0.0
        %822 = vmatpush.msra.mxu0 0.0
        %823 = vmatpush.msra.mxu0 %v629
        %824 = vmatmul.f32.gmra.mxu0 %v806
        %v825 = vpop.f32.mrf.mxu0
        %v826 = vadd.f32 0.0, %v825
        %827 = vdwg.mxu0
        %s828 = scalar_lea.vmem [#allocation4], 256
        %v829 = vld [vmem:[%s828] sm:$0xff]
        %v830 = vld [vmem:[%s828 + $0x8] sm:$0xff]
        %v831 = vld [vmem:[%s828 + $0x10] sm:$0xff]
        %v832 = vld [vmem:[%s828 + $0x18] sm:$0xff]
        %v833 = vld [vmem:[%s828 + $0x20] sm:$0xff]
        %v834 = vld [vmem:[%s828 + $0x28] sm:$0xff]
        %v835 = vld [vmem:[%s828 + $0x30] sm:$0xff]
        %v836 = vld [vmem:[%s828 + $0x38] sm:$0xff]
        %v837 = vld [vmem:[%s828 + $0x40] sm:$0xff]
        %v838 = vld [vmem:[%s828 + $0x48] sm:$0xff]
        %v839 = vld [vmem:[%s828 + $0x50] sm:$0xff]
        %v840 = vld [vmem:[%s828 + $0x58] sm:$0xff]
        %v841 = vld [vmem:[%s828 + $0x60] sm:$0xff]
        %v842 = vld [vmem:[%s828 + $0x68] sm:$0xff]
        %v843 = vld [vmem:[%s828 + $0x70] sm:$0xff]
        %v844 = vld [vmem:[%s828 + $0x78] sm:$0xff]
        %v846 = vsel %vm716, %v826, 0
        %848 = vmatpush.msra.mxu0 0.0
        %849 = vmatpush.msra.mxu0 0.0
        %850 = vmatpush.msra.mxu0 0.0
        %851 = vmatpush.msra.mxu0 0.0
        %852 = vmatpush.msra.mxu0 0.0
        %853 = vmatpush.msra.mxu0 0.0
        %854 = vmatpush.msra.mxu0 0.0
        %855 = vmatpush.msra.mxu0 0.0
        %856 = vmatpush.msra.mxu0 %v843
        %857 = vmatpush.msra.mxu0 %v841
        %858 = vmatpush.msra.mxu0 %v839
        %859 = vmatpush.msra.mxu0 %v837
        %860 = vmatpush.msra.mxu0 %v835
        %861 = vmatpush.msra.mxu0 %v833
        %862 = vmatpush.msra.mxu0 %v831
        %863 = vmatpush.msra.mxu0 %v829
        %864 = vmatmul.f32.gmra.mxu0 %v846
        %v865 = vpop.f32.mrf.mxu0
        %v866 = vadd.f32 0.0, %v865
        %867 = vdwg.mxu0
        %868 = vmatpush.msra.mxu0 0.0
        %869 = vmatpush.msra.mxu0 0.0
        %870 = vmatpush.msra.mxu0 0.0
        %871 = vmatpush.msra.mxu0 0.0
        %872 = vmatpush.msra.mxu0 0.0
        %873 = vmatpush.msra.mxu0 0.0
        %874 = vmatpush.msra.mxu0 0.0
        %875 = vmatpush.msra.mxu0 0.0
        %876 = vmatpush.msra.mxu0 %v844
        %877 = vmatpush.msra.mxu0 %v842
        %878 = vmatpush.msra.mxu0 %v840
        %879 = vmatpush.msra.mxu0 %v838
        %880 = vmatpush.msra.mxu0 %v836
        %881 = vmatpush.msra.mxu0 %v834
        %882 = vmatpush.msra.mxu0 %v832
        %883 = vmatpush.msra.mxu0 %v830
        %884 = vmatmul.f32.gmra.mxu0 %v846
        %v885 = vpop.f32.mrf.mxu0
        %v886 = vadd.f32 0.0, %v885
        %887 = vdwg.mxu0
        %v888 = vadd.f32 %v781, %v866
        %v889 = vadd.f32 %v801, %v886
        %s890 = scalar_lea.vmem %s3, 24
        %v891 = vld [vmem:[%s890] sm:$0xff]
        %v893 = vsel %vm634, %v891, 0
        %895 = vmatpush.msra.mxu0 0.0
        %896 = vmatpush.msra.mxu0 0.0
        %897 = vmatpush.msra.mxu0 0.0
        %898 = vmatpush.msra.mxu0 0.0
        %899 = vmatpush.msra.mxu0 0.0
        %900 = vmatpush.msra.mxu0 0.0
        %901 = vmatpush.msra.mxu0 0.0
        %902 = vmatpush.msra.mxu0 0.0
        %903 = vmatpush.msra.mxu0 0.0
        %904 = vmatpush.msra.mxu0 0.0
        %905 = vmatpush.msra.mxu0 0.0
        %906 = vmatpush.msra.mxu0 0.0
        %907 = vmatpush.msra.mxu0 0.0
        %908 = vmatpush.msra.mxu0 0.0
        %909 = vmatpush.msra.mxu0 0.0
        %910 = vmatpush.msra.mxu0 %v629
        %911 = vmatmul.f32.gmra.mxu0 %v893
        %v912 = vpop.f32.mrf.mxu0
        %v913 = vadd.f32 0.0, %v912
        %914 = vdwg.mxu0
        %s915 = scalar_lea.vmem [#allocation4], 384
        %v916 = vld [vmem:[%s915] sm:$0xff]
        %v917 = vld [vmem:[%s915 + $0x8] sm:$0xff]
        %v918 = vld [vmem:[%s915 + $0x10] sm:$0xff]
        %v919 = vld [vmem:[%s915 + $0x18] sm:$0xff]
        %v920 = vld [vmem:[%s915 + $0x20] sm:$0xff]
        %v921 = vld [vmem:[%s915 + $0x28] sm:$0xff]
        %v922 = vld [vmem:[%s915 + $0x30] sm:$0xff]
        %v923 = vld [vmem:[%s915 + $0x38] sm:$0xff]
        %v924 = vld [vmem:[%s915 + $0x40] sm:$0xff]
        %v925 = vld [vmem:[%s915 + $0x48] sm:$0xff]
        %v926 = vld [vmem:[%s915 + $0x50] sm:$0xff]
        %v927 = vld [vmem:[%s915 + $0x58] sm:$0xff]
        %v928 = vld [vmem:[%s915 + $0x60] sm:$0xff]
        %v929 = vld [vmem:[%s915 + $0x68] sm:$0xff]
        %v930 = vld [vmem:[%s915 + $0x70] sm:$0xff]
        %v931 = vld [vmem:[%s915 + $0x78] sm:$0xff]
        %v933 = vsel %vm716, %v913, 0
        %935 = vmatpush.msra.mxu0 0.0
        %936 = vmatpush.msra.mxu0 0.0
        %937 = vmatpush.msra.mxu0 0.0
        %938 = vmatpush.msra.mxu0 0.0
        %939 = vmatpush.msra.mxu0 0.0
        %940 = vmatpush.msra.mxu0 0.0
        %941 = vmatpush.msra.mxu0 0.0
        %942 = vmatpush.msra.mxu0 0.0
        %943 = vmatpush.msra.mxu0 %v930
        %944 = vmatpush.msra.mxu0 %v928
        %945 = vmatpush.msra.mxu0 %v926
        %946 = vmatpush.msra.mxu0 %v924
        %947 = vmatpush.msra.mxu0 %v922
        %948 = vmatpush.msra.mxu0 %v920
        %949 = vmatpush.msra.mxu0 %v918
        %950 = vmatpush.msra.mxu0 %v916
        %951 = vmatmul.f32.gmra.mxu0 %v933
        %v952 = vpop.f32.mrf.mxu0
        %v953 = vadd.f32 0.0, %v952
        %954 = vdwg.mxu0
        %955 = vmatpush.msra.mxu0 0.0
        %956 = vmatpush.msra.mxu0 0.0
        %957 = vmatpush.msra.mxu0 0.0
        %958 = vmatpush.msra.mxu0 0.0
        %959 = vmatpush.msra.mxu0 0.0
        %960 = vmatpush.msra.mxu0 0.0
        %961 = vmatpush.msra.mxu0 0.0
        %962 = vmatpush.msra.mxu0 0.0
        %963 = vmatpush.msra.mxu0 %v931
        %964 = vmatpush.msra.mxu0 %v929
        %965 = vmatpush.msra.mxu0 %v927
        %966 = vmatpush.msra.mxu0 %v925
        %967 = vmatpush.msra.mxu0 %v923
        %968 = vmatpush.msra.mxu0 %v921
        %969 = vmatpush.msra.mxu0 %v919
        %970 = vmatpush.msra.mxu0 %v917
        %971 = vmatmul.f32.gmra.mxu0 %v933
        %v972 = vpop.f32.mrf.mxu0
        %v973 = vadd.f32 0.0, %v972
        %974 = vdwg.mxu0
        %v975 = vadd.f32 %v888, %v953
        %v976 = vadd.f32 %v889, %v973
        %v977 = vld [vmem:[%s5] sm:$0xff]
        %979 = vset.pattern.permute.xlu0 0
        %980 = vperm.xlu0 %979, %v977
        %v981 = vpop.permute.xlu0 %980
        %v983 = vadd.f32 %v975, %v981
        %v984 = vadd.f32 %v976, %v981
        %v985 = vld [vmem:[%s6] sm:$0xf]
        %v986 = vld [vmem:[%s7] sm:$0xf]
        %988 = vset.pattern.permute.xlu0 0
        %989 = vperm.xlu0 %988, %v986
        %v990 = vpop.permute.xlu0 %989
        %v993 = vsel %vm634, %v985, 0
        %995 = vmatpush.msra.mxu0 0.0
        %996 = vmatpush.msra.mxu0 0.0
        %997 = vmatpush.msra.mxu0 0.0
        %998 = vmatpush.msra.mxu0 0.0
        %999 = vmatpush.msra.mxu0 0.0
        %1000 = vmatpush.msra.mxu0 0.0
        %1001 = vmatpush.msra.mxu0 0.0
        %1002 = vmatpush.msra.mxu0 0.0
        %1003 = vmatpush.msra.mxu0 0.0
        %1004 = vmatpush.msra.mxu0 0.0
        %1005 = vmatpush.msra.mxu0 0.0
        %1006 = vmatpush.msra.mxu0 0.0
        %1007 = vmatpush.msra.mxu0 0.0
        %1008 = vmatpush.msra.mxu0 0.0
        %1009 = vmatpush.msra.mxu0 0.0
        %1010 = vmatpush.msra.mxu0 %v632
        %1011 = vmatmul.f32.gmra.mxu0 %v993
        %v1012 = vpop.f32.mrf.mxu0
        %v1013 = vadd.f32 %v990, %v1012
        %1014 = vdwg.mxu0
        %v1015 = vld [vmem:[%s12] sm:$0xff]
        %v1016 = vld [vmem:[%s12 + $0x8] sm:$0xff]
        %v1017 = vld [vmem:[%s12 + $0x10] sm:$0xff]
        %v1018 = vld [vmem:[%s12 + $0x18] sm:$0xff]
        %v1019 = vld [vmem:[%s12 + $0x20] sm:$0xff]
        %v1020 = vld [vmem:[%s12 + $0x28] sm:$0xff]
        %v1021 = vld [vmem:[%s12 + $0x30] sm:$0xff]
        %v1022 = vld [vmem:[%s12 + $0x38] sm:$0xff]
        %v1023 = vld [vmem:[%s12 + $0x40] sm:$0xff]
        %v1024 = vld [vmem:[%s12 + $0x48] sm:$0xff]
        %v1025 = vld [vmem:[%s12 + $0x50] sm:$0xff]
        %v1026 = vld [vmem:[%s12 + $0x58] sm:$0xff]
        %v1027 = vld [vmem:[%s12 + $0x60] sm:$0xff]
        %v1028 = vld [vmem:[%s12 + $0x68] sm:$0xff]
        %v1029 = vld [vmem:[%s12 + $0x70] sm:$0xff]
        %v1030 = vld [vmem:[%s12 + $0x78] sm:$0xff]
        %v1031 = vld [vmem:[%s8] sm:$0xf]
        %v1032 = vld [vmem:[%s9] sm:$0xf]
        %1034 = vset.pattern.permute.xlu0 0
        %1035 = vperm.xlu0 %1034, %v1032
        %v1036 = vpop.permute.xlu0 %1035
        %v1039 = vsel %vm634, %v1031, 0
        %1041 = vmatpush.msra.mxu0 0.0
        %1042 = vmatpush.msra.mxu0 0.0
        %1043 = vmatpush.msra.mxu0 0.0
        %1044 = vmatpush.msra.mxu0 0.0
        %1045 = vmatpush.msra.mxu0 0.0
        %1046 = vmatpush.msra.mxu0 0.0
        %1047 = vmatpush.msra.mxu0 0.0
        %1048 = vmatpush.msra.mxu0 0.0
        %1049 = vmatpush.msra.mxu0 0.0
        %1050 = vmatpush.msra.mxu0 0.0
        %1051 = vmatpush.msra.mxu0 0.0
        %1052 = vmatpush.msra.mxu0 0.0
        %1053 = vmatpush.msra.mxu0 0.0
        %1054 = vmatpush.msra.mxu0 0.0
        %1055 = vmatpush.msra.mxu0 0.0
        %1056 = vmatpush.msra.mxu0 %v630
        %1057 = vmatmul.f32.gmra.mxu0 %v1039
        %v1058 = vpop.f32.mrf.mxu0
        %v1059 = vadd.f32 %v1036, %v1058
        %1060 = vdwg.mxu0
        %1061 = vmatpush.msra.mxu0 0.0
        %1062 = vmatpush.msra.mxu0 0.0
        %1063 = vmatpush.msra.mxu0 0.0
        %1064 = vmatpush.msra.mxu0 0.0
        %1065 = vmatpush.msra.mxu0 0.0
        %1066 = vmatpush.msra.mxu0 0.0
        %1067 = vmatpush.msra.mxu0 0.0
        %1068 = vmatpush.msra.mxu0 0.0
        %1069 = vmatpush.msra.mxu0 0.0
        %1070 = vmatpush.msra.mxu0 0.0
        %1071 = vmatpush.msra.mxu0 0.0
        %1072 = vmatpush.msra.mxu0 0.0
        %1073 = vmatpush.msra.mxu0 0.0
        %1074 = vmatpush.msra.mxu0 0.0
        %1075 = vmatpush.msra.mxu0 0.0
        %1076 = vmatpush.msra.mxu0 %v631
        %1077 = vmatmul.f32.gmra.mxu0 %v1039
        %v1078 = vpop.f32.mrf.mxu0
        %v1079 = vadd.f32 %v1036, %v1078
        %1080 = vdwg.mxu0
        %v1082 = vsel %vm716, %v1013, 0
        %1084 = vmatpush.msra.mxu0 0.0
        %1085 = vmatpush.msra.mxu0 0.0
        %1086 = vmatpush.msra.mxu0 0.0
        %1087 = vmatpush.msra.mxu0 0.0
        %1088 = vmatpush.msra.mxu0 0.0
        %1089 = vmatpush.msra.mxu0 0.0
        %1090 = vmatpush.msra.mxu0 0.0
        %1091 = vmatpush.msra.mxu0 0.0
        %1092 = vmatpush.msra.mxu0 %v1029
        %1093 = vmatpush.msra.mxu0 %v1027
        %1094 = vmatpush.msra.mxu0 %v1025
        %1095 = vmatpush.msra.mxu0 %v1023
        %1096 = vmatpush.msra.mxu0 %v1021
        %1097 = vmatpush.msra.mxu0 %v1019
        %1098 = vmatpush.msra.mxu0 %v1017
        %1099 = vmatpush.msra.mxu0 %v1015
        %1100 = vmatmul.f32.gmra.mxu0 %v1082
        %v1101 = vpop.f32.mrf.mxu0
        %v1102 = vadd.f32 %v1059, %v1101
        %1103 = vdwg.mxu0
        %1104 = vmatpush.msra.mxu0 0.0
        %1105 = vmatpush.msra.mxu0 0.0
        %1106 = vmatpush.msra.mxu0 0.0
        %1107 = vmatpush.msra.mxu0 0.0
        %1108 = vmatpush.msra.mxu0 0.0
        %1109 = vmatpush.msra.mxu0 0.0
        %1110 = vmatpush.msra.mxu0 0.0
        %1111 = vmatpush.msra.mxu0 0.0
        %1112 = vmatpush.msra.mxu0 %v1030
        %1113 = vmatpush.msra.mxu0 %v1028
        %1114 = vmatpush.msra.mxu0 %v1026
        %1115 = vmatpush.msra.mxu0 %v1024
        %1116 = vmatpush.msra.mxu0 %v1022
        %1117 = vmatpush.msra.mxu0 %v1020
        %1118 = vmatpush.msra.mxu0 %v1018
        %1119 = vmatpush.msra.mxu0 %v1016
        %1120 = vmatmul.f32.gmra.mxu0 %v1082
        %v1121 = vpop.f32.mrf.mxu0
        %v1122 = vadd.f32 %v1079, %v1121
        %1123 = vdwg.mxu0
        %v1124 = vmax.f32 %v1102, 0.0
        %v1125 = vmax.f32 %v1122, 0.0
        %v1126 = vld [vmem:[%s10] sm:$0xf]
        %1128 = vset.pattern.permute.xlu0 0
        %1129 = vperm.xlu0 %1128, %v1126
        %v1130 = vpop.permute.xlu0 %1129
        %v1132 = vmul.f32 %v1124, %v1130
        %v1133 = vmul.f32 %v1125, %v1130
        %vm1134 = vcmask 1043456
        %v1135 = vsel %vm1134, %v1132, 0.0
        %v1136 = vrot.slane %v1135, 4
        %v1137 = vadd.f32 %v1135, %v1136
        %v1138 = vrot.slane %v1137, 2
        %v1139 = vadd.f32 %v1137, %v1138
        %v1140 = vrot.slane %v1139, 1
        %v1141 = vadd.f32 %v1139, %v1140
        %v1142 = vsel %vm1134, %v1133, 0.0
        %v1143 = vrot.slane %v1142, 4
        %v1144 = vadd.f32 %v1142, %v1143
        %v1145 = vrot.slane %v1144, 2
        %v1146 = vadd.f32 %v1144, %v1145
        %v1147 = vrot.slane %v1146, 1
        %v1148 = vadd.f32 %v1146, %v1147
        %v1149 = vld [vmem:[#allocation3] sm:$0x1]
        %1151 = vset.pattern.permute.xlu0 0
        %1152 = vperm.xlu0 %1151, %v1149
        %v1153 = vpop.permute.xlu0 %1152
        %v1155 = vperm.slane %v1153, 0
        %v1156 = vadd.f32 %v1141, %v1155
        %v1157 = vadd.f32 %v1148, %v1155
        %v1158 = vxor.u32 %v1156, 2147483648
        %v1159 = vxor.u32 %v1157, 2147483648
        %v1160 = vmul.f32 %v1158, 1.442695
        %v1161 = vpow.pop %v1160
        %v1162 = vmul.f32 %v1159, 1.442695
        %v1163 = vpow.pop %v1162
        %v1164 = vadd.f32 %v1161, 1.0
        %v1165 = vadd.f32 %v1163, 1.0
        %v1166 = vrcp.pop %v1164
        %v1167 = vmul.f32 %v1164, %v1166
        %v1168 = vsub.f32 1.0, %v1167
        %v1169 = vmul.f32 %v1166, %v1168
        %v1170 = vadd.f32 %v1166, %v1169
        %vm1171 = vweird.f32 %v1164
        %vm1172 = vweird.f32 %v1166
        %vm1173 = vmor %vm1171, %vm1172
        %v1174 = vsel %vm1173, %v1166, %v1170
        %v1175 = vand.u32 2147483647, %v1164
        %vm1176 = vcmp.eq.f32.partialorder %v1175, 8.507059e+37
        %v1177 = vand.u32 %v1164, 2147483648
        %v1178 = vor.u32 1.1754944e-38, %v1177
        %v1179 = vsel %vm1176, %v1178, %v1174
        %v1180 = vmul.f32 1.0, %v1179
        %v1181 = vrcp.pop %v1165
        %v1182 = vmul.f32 %v1165, %v1181
        %v1183 = vsub.f32 1.0, %v1182
        %v1184 = vmul.f32 %v1181, %v1183
        %v1185 = vadd.f32 %v1181, %v1184
        %vm1186 = vweird.f32 %v1165
        %vm1187 = vweird.f32 %v1181
        %vm1188 = vmor %vm1186, %vm1187
        %v1189 = vsel %vm1188, %v1181, %v1185
        %v1190 = vand.u32 2147483647, %v1165
        %vm1191 = vcmp.eq.f32.partialorder %v1190, 8.507059e+37
        %v1192 = vand.u32 %v1165, 2147483648
        %v1193 = vor.u32 1.1754944e-38, %v1192
        %v1194 = vsel %vm1191, %v1193, %v1189
        %v1195 = vmul.f32 1.0, %v1194
        %v1196 = vmul.f32 %v630, %v1180
        %v1197 = vmul.f32 %v631, %v1195
        %1198 = vst [vmem:[#allocation2] sm:$0xff] 0.0
        %1199 = vst [vmem:[#allocation2 + $0x20] sm:$0xff] 0.0
        %1200 = vst [vmem:[#allocation2 + $0x18] sm:$0xff] 0.0
        %1201 = vst [vmem:[#allocation2 + $0x38] sm:$0xff] 0.0
        %1202 = vst [vmem:[#allocation2 + $0x8] sm:$0xff] %v983
        %1203 = vst [vmem:[#allocation2 + $0x10] sm:$0xff] %v984
        %1204 = vst [vmem:[#allocation2 + $0x28] sm:$0xff] %v1196
        %1205 = vst [vmem:[#allocation2 + $0x30] sm:$0xff] %v1197
        %v1206 = vld [vmem:[#allocation2] sm:$0xff]
        %v1207 = vld [vmem:[#allocation2 + $0x8] sm:$0xff]
        %v1208 = vld [vmem:[#allocation2 + $0x10] sm:$0xff]
        %v1209 = vld [vmem:[#allocation2 + $0x20] sm:$0xff]
        %v1210 = vld [vmem:[#allocation2 + $0x28] sm:$0xff]
        %v1211 = vld [vmem:[#allocation2 + $0x30] sm:$0xff]
        %v1212 = vld [vmem:[%s17] ss:$2 sm:$0x3]
        %v1214 = vperm.slane %v1212, 0
        %v1215 = vperm.slane %v1212, 1
        %1216 = vrot.lane.b32.xlu0 %v1214, 111
        %v1217 = vpop.permute.xlu0 %1216
        %1218 = vrot.lane.b32.xlu0 %v1215, 111
        %v1219 = vpop.permute.xlu0 %1218
        %vm1220 = vcmask 908288
        %v1221 = vsel %vm1220, %v1217, %v1219
        %v1225 = vmul.f32 %v1206, %v1217
        %v1226 = vmul.f32 %v1207, %v1221
        %v1227 = vmul.f32 %v1208, %v1219
        %v1228 = vmul.f32 %v1209, %v1217
        %v1229 = vmul.f32 %v1210, %v1221
        %v1230 = vmul.f32 %v1211, %v1219
        %v1231 = vld [vmem:[%s13] sm:$0xff]
        %s1232 = scalar_lea.vmem %s13, 8
        %v1233 = vld [vmem:[%s1232] sm:$0xff]
        %1240 = vrot.lane.b32.xlu0 %v1206, 16
        %v1241 = vpop.permute.xlu0 %1240
        %1242 = vrot.lane.b32.xlu0 %v1207, 16
        %v1243 = vpop.permute.xlu0 %1242
        %1244 = vrot.lane.b32.xlu0 %v1208, 16
        %v1245 = vpop.permute.xlu0 %1244
        %1246 = vrot.lane.b32.xlu0 %v1209, 16
        %v1247 = vpop.permute.xlu0 %1246
        %1248 = vrot.lane.b32.xlu0 %v1210, 16
        %v1249 = vpop.permute.xlu0 %1248
        %1250 = vrot.lane.b32.xlu0 %v1211, 16
        %v1251 = vpop.permute.xlu0 %1250
        %vm1252 = vcmask 130048
        %v1253 = vsel %vm1252, %v1241, %v1243
        %v1254 = vsel %vm1252, %v1243, %v1245
        %v1255 = vsel %vm1252, %v1247, %v1249
        %v1256 = vsel %vm1252, %v1249, %v1251
        %v1262 = vsel %vm1252, %v1233, 0
        %1264 = vmatpush.msra.mxu0 0.0
        %1265 = vmatpush.msra.mxu0 0.0
        %1266 = vmatpush.msra.mxu0 0.0
        %1267 = vmatpush.msra.mxu0 0.0
        %1268 = vmatpush.msra.mxu0 0.0
        %1269 = vmatpush.msra.mxu0 0.0
        %1270 = vmatpush.msra.mxu0 0.0
        %1271 = vmatpush.msra.mxu0 0.0
        %1272 = vmatpush.msra.mxu0 0.0
        %1273 = vmatpush.msra.mxu0 0.0
        %1274 = vmatpush.msra.mxu0 0.0
        %1275 = vmatpush.msra.mxu0 0.0
        %1276 = vmatpush.msra.mxu0 0.0
        %1277 = vmatpush.msra.mxu0 0.0
        %1278 = vmatpush.msra.mxu0 %v1255
        %1279 = vmatpush.msra.mxu0 %v1253
        %1280 = vmatmul.f32.gmra.mxu0 %v1262
        %v1281 = vpop.f32.mrf.mxu0
        %v1282 = vadd.f32 0.0, %v1281
        %1283 = vdwg.mxu0
        %1284 = vmatpush.msra.mxu0 0.0
        %1285 = vmatpush.msra.mxu0 0.0
        %1286 = vmatpush.msra.mxu0 0.0
        %1287 = vmatpush.msra.mxu0 0.0
        %1288 = vmatpush.msra.mxu0 0.0
        %1289 = vmatpush.msra.mxu0 0.0
        %1290 = vmatpush.msra.mxu0 0.0
        %1291 = vmatpush.msra.mxu0 0.0
        %1292 = vmatpush.msra.mxu0 0.0
        %1293 = vmatpush.msra.mxu0 0.0
        %1294 = vmatpush.msra.mxu0 0.0
        %1295 = vmatpush.msra.mxu0 0.0
        %1296 = vmatpush.msra.mxu0 0.0
        %1297 = vmatpush.msra.mxu0 0.0
        %1298 = vmatpush.msra.mxu0 %v1256
        %1299 = vmatpush.msra.mxu0 %v1254
        %1300 = vmatmul.f32.gmra.mxu0 %v1262
        %v1301 = vpop.f32.mrf.mxu0
        %v1302 = vadd.f32 0.0, %v1301
        %1303 = vdwg.mxu0
        %1310 = vrot.lane.b32.xlu0 %v1225, 17
        %v1311 = vpop.permute.xlu0 %1310
        %1312 = vrot.lane.b32.xlu0 %v1226, 17
        %v1313 = vpop.permute.xlu0 %1312
        %1314 = vrot.lane.b32.xlu0 %v1227, 17
        %v1315 = vpop.permute.xlu0 %1314
        %1316 = vrot.lane.b32.xlu0 %v1228, 17
        %v1317 = vpop.permute.xlu0 %1316
        %1318 = vrot.lane.b32.xlu0 %v1229, 17
        %v1319 = vpop.permute.xlu0 %1318
        %1320 = vrot.lane.b32.xlu0 %v1230, 17
        %v1321 = vpop.permute.xlu0 %1320
        %vm1322 = vcmask 138240
        %v1323 = vsel %vm1322, %v1311, %v1313
        %v1324 = vsel %vm1322, %v1313, %v1315
        %v1325 = vsel %vm1322, %v1317, %v1319
        %v1326 = vsel %vm1322, %v1319, %v1321
        %v1332 = vsel %vm1252, %v1231, 0
        %1334 = vmatpush.msra.mxu0 0.0
        %1335 = vmatpush.msra.mxu0 0.0
        %1336 = vmatpush.msra.mxu0 0.0
        %1337 = vmatpush.msra.mxu0 0.0
        %1338 = vmatpush.msra.mxu0 0.0
        %1339 = vmatpush.msra.mxu0 0.0
        %1340 = vmatpush.msra.mxu0 0.0
        %1341 = vmatpush.msra.mxu0 0.0
        %1342 = vmatpush.msra.mxu0 0.0
        %1343 = vmatpush.msra.mxu0 0.0
        %1344 = vmatpush.msra.mxu0 0.0
        %1345 = vmatpush.msra.mxu0 0.0
        %1346 = vmatpush.msra.mxu0 0.0
        %1347 = vmatpush.msra.mxu0 0.0
        %1348 = vmatpush.msra.mxu0 %v1325
        %1349 = vmatpush.msra.mxu0 %v1323
        %1350 = vmatmul.f32.gmra.mxu0 %v1332
        %v1351 = vpop.f32.mrf.mxu0
        %v1352 = vadd.f32 %v1282, %v1351
        %1353 = vdwg.mxu0
        %1354 = vmatpush.msra.mxu0 0.0
        %1355 = vmatpush.msra.mxu0 0.0
        %1356 = vmatpush.msra.mxu0 0.0
        %1357 = vmatpush.msra.mxu0 0.0
        %1358 = vmatpush.msra.mxu0 0.0
        %1359 = vmatpush.msra.mxu0 0.0
        %1360 = vmatpush.msra.mxu0 0.0
        %1361 = vmatpush.msra.mxu0 0.0
        %1362 = vmatpush.msra.mxu0 0.0
        %1363 = vmatpush.msra.mxu0 0.0
        %1364 = vmatpush.msra.mxu0 0.0
        %1365 = vmatpush.msra.mxu0 0.0
        %1366 = vmatpush.msra.mxu0 0.0
        %1367 = vmatpush.msra.mxu0 0.0
        %1368 = vmatpush.msra.mxu0 %v1326
        %1369 = vmatpush.msra.mxu0 %v1324
        %1370 = vmatmul.f32.gmra.mxu0 %v1332
        %v1371 = vpop.f32.mrf.mxu0
        %v1372 = vadd.f32 %v1302, %v1371
        %1373 = vdwg.mxu0
        %s1374 = scalar_lea.vmem %s17, 1
        %v1375 = vld [vmem:[%s1374] ss:$2 sm:$0x3]
        %v1377 = vperm.slane %v1375, 0
        %v1378 = vperm.slane %v1375, 1
        %1379 = vrot.lane.b32.xlu0 %v1377, 113
        %v1380 = vpop.permute.xlu0 %1379
        %1381 = vrot.lane.b32.xlu0 %v1378, 113
        %v1382 = vpop.permute.xlu0 %1381
        %vm1383 = vcmask 924672
        %v1384 = vsel %vm1383, %v1380, %v1382
        %v1388 = vmul.f32 %v1206, %v1380
        %v1389 = vmul.f32 %v1207, %v1384
        %v1390 = vmul.f32 %v1208, %v1382
        %v1391 = vmul.f32 %v1209, %v1380
        %v1392 = vmul.f32 %v1210, %v1384
        %v1393 = vmul.f32 %v1211, %v1382
        %s1394 = scalar_lea.vmem %s13, 16
        %v1395 = vld [vmem:[%s1394] sm:$0xff]
        %1402 = vrot.lane.b32.xlu0 %v1388, 15
        %v1403 = vpop.permute.xlu0 %1402
        %1404 = vrot.lane.b32.xlu0 %v1389, 15
        %v1405 = vpop.permute.xlu0 %1404
        %1406 = vrot.lane.b32.xlu0 %v1390, 15
        %v1407 = vpop.permute.xlu0 %1406
        %1408 = vrot.lane.b32.xlu0 %v1391, 15
        %v1409 = vpop.permute.xlu0 %1408
        %1410 = vrot.lane.b32.xlu0 %v1392, 15
        %v1411 = vpop.permute.xlu0 %1410
        %1412 = vrot.lane.b32.xlu0 %v1393, 15
        %v1413 = vpop.permute.xlu0 %1412
        %vm1414 = vcmask 121856
        %v1415 = vsel %vm1414, %v1403, %v1405
        %v1416 = vsel %vm1414, %v1405, %v1407
        %v1417 = vsel %vm1414, %v1409, %v1411
        %v1418 = vsel %vm1414, %v1411, %v1413
        %v1424 = vsel %vm1252, %v1395, 0
        %1426 = vmatpush.msra.mxu0 0.0
        %1427 = vmatpush.msra.mxu0 0.0
        %1428 = vmatpush.msra.mxu0 0.0
        %1429 = vmatpush.msra.mxu0 0.0
        %1430 = vmatpush.msra.mxu0 0.0
        %1431 = vmatpush.msra.mxu0 0.0
        %1432 = vmatpush.msra.mxu0 0.0
        %1433 = vmatpush.msra.mxu0 0.0
        %1434 = vmatpush.msra.mxu0 0.0
        %1435 = vmatpush.msra.mxu0 0.0
        %1436 = vmatpush.msra.mxu0 0.0
        %1437 = vmatpush.msra.mxu0 0.0
        %1438 = vmatpush.msra.mxu0 0.0
        %1439 = vmatpush.msra.mxu0 0.0
        %1440 = vmatpush.msra.mxu0 %v1417
        %1441 = vmatpush.msra.mxu0 %v1415
        %1442 = vmatmul.f32.gmra.mxu0 %v1424
        %v1443 = vpop.f32.mrf.mxu0
        %v1444 = vadd.f32 0.0, %v1443
        %1445 = vdwg.mxu0
        %1446 = vmatpush.msra.mxu0 0.0
        %1447 = vmatpush.msra.mxu0 0.0
        %1448 = vmatpush.msra.mxu0 0.0
        %1449 = vmatpush.msra.mxu0 0.0
        %1450 = vmatpush.msra.mxu0 0.0
        %1451 = vmatpush.msra.mxu0 0.0
        %1452 = vmatpush.msra.mxu0 0.0
        %1453 = vmatpush.msra.mxu0 0.0
        %1454 = vmatpush.msra.mxu0 0.0
        %1455 = vmatpush.msra.mxu0 0.0
        %1456 = vmatpush.msra.mxu0 0.0
        %1457 = vmatpush.msra.mxu0 0.0
        %1458 = vmatpush.msra.mxu0 0.0
        %1459 = vmatpush.msra.mxu0 0.0
        %1460 = vmatpush.msra.mxu0 %v1418
        %1461 = vmatpush.msra.mxu0 %v1416
        %1462 = vmatmul.f32.gmra.mxu0 %v1424
        %v1463 = vpop.f32.mrf.mxu0
        %v1464 = vadd.f32 0.0, %v1463
        %1465 = vdwg.mxu0
        %v1466 = vadd.f32 %v1352, %v1444
        %v1467 = vadd.f32 %v1372, %v1464
        %1468 = vrot.lane.b32.xlu0 %v1214, 127
        %v1469 = vpop.permute.xlu0 %1468
        %1470 = vrot.lane.b32.xlu0 %v1215, 127
        %v1471 = vpop.permute.xlu0 %1470
        %vm1472 = vcmask 1039360
        %v1473 = vsel %vm1472, %v1469, %v1471
        %v1477 = vmul.f32 %v1206, %v1469
        %v1478 = vmul.f32 %v1207, %v1473
        %v1479 = vmul.f32 %v1208, %v1471
        %v1480 = vmul.f32 %v1209, %v1469
        %v1481 = vmul.f32 %v1210, %v1473
        %v1482 = vmul.f32 %v1211, %v1471
        %s1483 = scalar_lea.vmem %s13, 24
        %v1484 = vld [vmem:[%s1483] sm:$0xff]
        %1491 = vrot.lane.b32.xlu0 %v1477, 1
        %v1492 = vpop.permute.xlu0 %1491
        %1493 = vrot.lane.b32.xlu0 %v1478, 1
        %v1494 = vpop.permute.xlu0 %1493
        %1495 = vrot.lane.b32.xlu0 %v1479, 1
        %v1496 = vpop.permute.xlu0 %1495
        %1497 = vrot.lane.b32.xlu0 %v1480, 1
        %v1498 = vpop.permute.xlu0 %1497
        %1499 = vrot.lane.b32.xlu0 %v1481, 1
        %v1500 = vpop.permute.xlu0 %1499
        %1501 = vrot.lane.b32.xlu0 %v1482, 1
        %v1502 = vpop.permute.xlu0 %1501
        %vm1503 = vcmask 7168
        %v1504 = vsel %vm1503, %v1492, %v1494
        %v1505 = vsel %vm1503, %v1494, %v1496
        %v1506 = vsel %vm1503, %v1498, %v1500
        %v1507 = vsel %vm1503, %v1500, %v1502
        %v1513 = vsel %vm1252, %v1484, 0
        %1515 = vmatpush.msra.mxu0 0.0
        %1516 = vmatpush.msra.mxu0 0.0
        %1517 = vmatpush.msra.mxu0 0.0
        %1518 = vmatpush.msra.mxu0 0.0
        %1519 = vmatpush.msra.mxu0 0.0
        %1520 = vmatpush.msra.mxu0 0.0
        %1521 = vmatpush.msra.mxu0 0.0
        %1522 = vmatpush.msra.mxu0 0.0
        %1523 = vmatpush.msra.mxu0 0.0
        %1524 = vmatpush.msra.mxu0 0.0
        %1525 = vmatpush.msra.mxu0 0.0
        %1526 = vmatpush.msra.mxu0 0.0
        %1527 = vmatpush.msra.mxu0 0.0
        %1528 = vmatpush.msra.mxu0 0.0
        %1529 = vmatpush.msra.mxu0 %v1506
        %1530 = vmatpush.msra.mxu0 %v1504
        %1531 = vmatmul.f32.gmra.mxu0 %v1513
        %v1532 = vpop.f32.mrf.mxu0
        %v1533 = vadd.f32 0.0, %v1532
        %1534 = vdwg.mxu0
        %1535 = vmatpush.msra.mxu0 0.0
        %1536 = vmatpush.msra.mxu0 0.0
        %1537 = vmatpush.msra.mxu0 0.0
        %1538 = vmatpush.msra.mxu0 0.0
        %1539 = vmatpush.msra.mxu0 0.0
        %1540 = vmatpush.msra.mxu0 0.0
        %1541 = vmatpush.msra.mxu0 0.0
        %1542 = vmatpush.msra.mxu0 0.0
        %1543 = vmatpush.msra.mxu0 0.0
        %1544 = vmatpush.msra.mxu0 0.0
        %1545 = vmatpush.msra.mxu0 0.0
        %1546 = vmatpush.msra.mxu0 0.0
        %1547 = vmatpush.msra.mxu0 0.0
        %1548 = vmatpush.msra.mxu0 0.0
        %1549 = vmatpush.msra.mxu0 %v1507
        %1550 = vmatpush.msra.mxu0 %v1505
        %1551 = vmatmul.f32.gmra.mxu0 %v1513
        %v1552 = vpop.f32.mrf.mxu0
        %v1553 = vadd.f32 0.0, %v1552
        %1554 = vdwg.mxu0
        %v1555 = vadd.f32 %v1466, %v1533
        %v1556 = vadd.f32 %v1467, %v1553
        %s1557 = scalar_lea.vmem %s13, 32
        %v1558 = vld [vmem:[%s1557] sm:$0xff]
        %v1560 = vsel %vm1252, %v1558, 0
        %1562 = vmatpush.msra.mxu0 0.0
        %1563 = vmatpush.msra.mxu0 0.0
        %1564 = vmatpush.msra.mxu0 0.0
        %1565 = vmatpush.msra.mxu0 0.0
        %1566 = vmatpush.msra.mxu0 0.0
        %1567 = vmatpush.msra.mxu0 0.0
        %1568 = vmatpush.msra.mxu0 0.0
        %1569 = vmatpush.msra.mxu0 0.0
        %1570 = vmatpush.msra.mxu0 0.0
        %1571 = vmatpush.msra.mxu0 0.0
        %1572 = vmatpush.msra.mxu0 0.0
        %1573 = vmatpush.msra.mxu0 0.0
        %1574 = vmatpush.msra.mxu0 0.0
        %1575 = vmatpush.msra.mxu0 0.0
        %1576 = vmatpush.msra.mxu0 %v1210
        %1577 = vmatpush.msra.mxu0 %v1207
        %1578 = vmatmul.f32.gmra.mxu0 %v1560
        %v1579 = vpop.f32.mrf.mxu0
        %v1580 = vadd.f32 0.0, %v1579
        %1581 = vdwg.mxu0
        %1582 = vmatpush.msra.mxu0 0.0
        %1583 = vmatpush.msra.mxu0 0.0
        %1584 = vmatpush.msra.mxu0 0.0
        %1585 = vmatpush.msra.mxu0 0.0
        %1586 = vmatpush.msra.mxu0 0.0
        %1587 = vmatpush.msra.mxu0 0.0
        %1588 = vmatpush.msra.mxu0 0.0
        %1589 = vmatpush.msra.mxu0 0.0
        %1590 = vmatpush.msra.mxu0 0.0
        %1591 = vmatpush.msra.mxu0 0.0
        %1592 = vmatpush.msra.mxu0 0.0
        %1593 = vmatpush.msra.mxu0 0.0
        %1594 = vmatpush.msra.mxu0 0.0
        %1595 = vmatpush.msra.mxu0 0.0
        %1596 = vmatpush.msra.mxu0 %v1211
        %1597 = vmatpush.msra.mxu0 %v1208
        %1598 = vmatmul.f32.gmra.mxu0 %v1560
        %v1599 = vpop.f32.mrf.mxu0
        %v1600 = vadd.f32 0.0, %v1599
        %1601 = vdwg.mxu0
        %v1602 = vadd.f32 %v1555, %v1580
        %v1603 = vadd.f32 %v1556, %v1600
        %v1604 = vld [vmem:[#allocation2 + $0x8] sm:$0xff]
        %v1605 = vld [vmem:[#allocation2 + $0x10] sm:$0xff]
        %v1606 = vld [vmem:[#allocation2 + $0x18] sm:$0xff]
        %v1607 = vld [vmem:[#allocation2 + $0x28] sm:$0xff]
        %v1608 = vld [vmem:[#allocation2 + $0x30] sm:$0xff]
        %v1609 = vld [vmem:[#allocation2 + $0x38] sm:$0xff]
        %1610 = vrot.lane.b32.xlu0 %v1377, 1
        %v1611 = vpop.permute.xlu0 %1610
        %1612 = vrot.lane.b32.xlu0 %v1378, 1
        %v1613 = vpop.permute.xlu0 %1612
        %v1614 = vsel %vm1503, %v1611, %v1613
        %v1618 = vmul.f32 %v1604, %v1611
        %v1619 = vmul.f32 %v1605, %v1614
        %v1620 = vmul.f32 %v1606, %v1613
        %v1621 = vmul.f32 %v1607, %v1611
        %v1622 = vmul.f32 %v1608, %v1614
        %v1623 = vmul.f32 %v1609, %v1613
        %s1624 = scalar_lea.vmem %s13, 40
        %v1625 = vld [vmem:[%s1624] sm:$0xff]
        %1632 = vrot.lane.b32.xlu0 %v1618, 127
        %v1633 = vpop.permute.xlu0 %1632
        %1634 = vrot.lane.b32.xlu0 %v1619, 127
        %v1635 = vpop.permute.xlu0 %1634
        %1636 = vrot.lane.b32.xlu0 %v1620, 127
        %v1637 = vpop.permute.xlu0 %1636
        %1638 = vrot.lane.b32.xlu0 %v1621, 127
        %v1639 = vpop.permute.xlu0 %1638
        %1640 = vrot.lane.b32.xlu0 %v1622, 127
        %v1641 = vpop.permute.xlu0 %1640
        %1642 = vrot.lane.b32.xlu0 %v1623, 127
        %v1643 = vpop.permute.xlu0 %1642
        %v1644 = vsel %vm1472, %v1633, %v1635
        %v1645 = vsel %vm1472, %v1635, %v1637
        %v1646 = vsel %vm1472, %v1639, %v1641
        %v1647 = vsel %vm1472, %v1641, %v1643
        %v1653 = vsel %vm1252, %v1625, 0
        %1655 = vmatpush.msra.mxu0 0.0
        %1656 = vmatpush.msra.mxu0 0.0
        %1657 = vmatpush.msra.mxu0 0.0
        %1658 = vmatpush.msra.mxu0 0.0
        %1659 = vmatpush.msra.mxu0 0.0
        %1660 = vmatpush.msra.mxu0 0.0
        %1661 = vmatpush.msra.mxu0 0.0
        %1662 = vmatpush.msra.mxu0 0.0
        %1663 = vmatpush.msra.mxu0 0.0
        %1664 = vmatpush.msra.mxu0 0.0
        %1665 = vmatpush.msra.mxu0 0.0
        %1666 = vmatpush.msra.mxu0 0.0
        %1667 = vmatpush.msra.mxu0 0.0
        %1668 = vmatpush.msra.mxu0 0.0
        %1669 = vmatpush.msra.mxu0 %v1646
        %1670 = vmatpush.msra.mxu0 %v1644
        %1671 = vmatmul.f32.gmra.mxu0 %v1653
        %v1672 = vpop.f32.mrf.mxu0
        %v1673 = vadd.f32 0.0, %v1672
        %1674 = vdwg.mxu0
        %1675 = vmatpush.msra.mxu0 0.0
        %1676 = vmatpush.msra.mxu0 0.0
        %1677 = vmatpush.msra.mxu0 0.0
        %1678 = vmatpush.msra.mxu0 0.0
        %1679 = vmatpush.msra.mxu0 0.0
        %1680 = vmatpush.msra.mxu0 0.0
        %1681 = vmatpush.msra.mxu0 0.0
        %1682 = vmatpush.msra.mxu0 0.0
        %1683 = vmatpush.msra.mxu0 0.0
        %1684 = vmatpush.msra.mxu0 0.0
        %1685 = vmatpush.msra.mxu0 0.0
        %1686 = vmatpush.msra.mxu0 0.0
        %1687 = vmatpush.msra.mxu0 0.0
        %1688 = vmatpush.msra.mxu0 0.0
        %1689 = vmatpush.msra.mxu0 %v1647
        %1690 = vmatpush.msra.mxu0 %v1645
        %1691 = vmatmul.f32.gmra.mxu0 %v1653
        %v1692 = vpop.f32.mrf.mxu0
        %v1693 = vadd.f32 0.0, %v1692
        %1694 = vdwg.mxu0
        %v1695 = vadd.f32 %v1602, %v1673
        %v1696 = vadd.f32 %v1603, %v1693
        %1697 = vrot.lane.b32.xlu0 %v1214, 15
        %v1698 = vpop.permute.xlu0 %1697
        %1699 = vrot.lane.b32.xlu0 %v1215, 15
        %v1700 = vpop.permute.xlu0 %1699
        %v1701 = vsel %vm1414, %v1698, %v1700
        %v1705 = vmul.f32 %v1604, %v1698
        %v1706 = vmul.f32 %v1605, %v1701
        %v1707 = vmul.f32 %v1606, %v1700
        %v1708 = vmul.f32 %v1607, %v1698
        %v1709 = vmul.f32 %v1608, %v1701
        %v1710 = vmul.f32 %v1609, %v1700
        %s1711 = scalar_lea.vmem %s13, 48
        %v1712 = vld [vmem:[%s1711] sm:$0xff]
        %1719 = vrot.lane.b32.xlu0 %v1705, 113
        %v1720 = vpop.permute.xlu0 %1719
        %1721 = vrot.lane.b32.xlu0 %v1706, 113
        %v1722 = vpop.permute.xlu0 %1721
        %1723 = vrot.lane.b32.xlu0 %v1707, 113
        %v1724 = vpop.permute.xlu0 %1723
        %1725 = vrot.lane.b32.xlu0 %v1708, 113
        %v1726 = vpop.permute.xlu0 %1725
        %1727 = vrot.lane.b32.xlu0 %v1709, 113
        %v1728 = vpop.permute.xlu0 %1727
        %1729 = vrot.lane.b32.xlu0 %v1710, 113
        %v1730 = vpop.permute.xlu0 %1729
        %v1731 = vsel %vm1383, %v1720, %v1722
        %v1732 = vsel %vm1383, %v1722, %v1724
        %v1733 = vsel %vm1383, %v1726, %v1728
        %v1734 = vsel %vm1383, %v1728, %v1730
        %v1740 = vsel %vm1252, %v1712, 0
        %1742 = vmatpush.msra.mxu0 0.0
        %1743 = vmatpush.msra.mxu0 0.0
        %1744 = vmatpush.msra.mxu0 0.0
        %1745 = vmatpush.msra.mxu0 0.0
        %1746 = vmatpush.msra.mxu0 0.0
        %1747 = vmatpush.msra.mxu0 0.0
        %1748 = vmatpush.msra.mxu0 0.0
        %1749 = vmatpush.msra.mxu0 0.0
        %1750 = vmatpush.msra.mxu0 0.0
        %1751 = vmatpush.msra.mxu0 0.0
        %1752 = vmatpush.msra.mxu0 0.0
        %1753 = vmatpush.msra.mxu0 0.0
        %1754 = vmatpush.msra.mxu0 0.0
        %1755 = vmatpush.msra.mxu0 0.0
        %1756 = vmatpush.msra.mxu0 %v1733
        %1757 = vmatpush.msra.mxu0 %v1731
        %1758 = vmatmul.f32.gmra.mxu0 %v1740
        %v1759 = vpop.f32.mrf.mxu0
        %v1760 = vadd.f32 0.0, %v1759
        %1761 = vdwg.mxu0
        %1762 = vmatpush.msra.mxu0 0.0
        %1763 = vmatpush.msra.mxu0 0.0
        %1764 = vmatpush.msra.mxu0 0.0
        %1765 = vmatpush.msra.mxu0 0.0
        %1766 = vmatpush.msra.mxu0 0.0
        %1767 = vmatpush.msra.mxu0 0.0
        %1768 = vmatpush.msra.mxu0 0.0
        %1769 = vmatpush.msra.mxu0 0.0
        %1770 = vmatpush.msra.mxu0 0.0
        %1771 = vmatpush.msra.mxu0 0.0
        %1772 = vmatpush.msra.mxu0 0.0
        %1773 = vmatpush.msra.mxu0 0.0
        %1774 = vmatpush.msra.mxu0 0.0
        %1775 = vmatpush.msra.mxu0 0.0
        %1776 = vmatpush.msra.mxu0 %v1734
        %1777 = vmatpush.msra.mxu0 %v1732
        %1778 = vmatmul.f32.gmra.mxu0 %v1740
        %v1779 = vpop.f32.mrf.mxu0
        %v1780 = vadd.f32 0.0, %v1779
        %1781 = vdwg.mxu0
        %v1782 = vadd.f32 %v1695, %v1760
        %v1783 = vadd.f32 %v1696, %v1780
        %s1784 = scalar_lea.vmem %s13, 56
        %v1785 = vld [vmem:[%s1784] sm:$0xff]
        %1792 = vrot.lane.b32.xlu0 %v1604, 112
        %v1793 = vpop.permute.xlu0 %1792
        %1794 = vrot.lane.b32.xlu0 %v1605, 112
        %v1795 = vpop.permute.xlu0 %1794
        %1796 = vrot.lane.b32.xlu0 %v1606, 112
        %v1797 = vpop.permute.xlu0 %1796
        %1798 = vrot.lane.b32.xlu0 %v1607, 112
        %v1799 = vpop.permute.xlu0 %1798
        %1800 = vrot.lane.b32.xlu0 %v1608, 112
        %v1801 = vpop.permute.xlu0 %1800
        %1802 = vrot.lane.b32.xlu0 %v1609, 112
        %v1803 = vpop.permute.xlu0 %1802
        %vm1804 = vcmask 916480
        %v1805 = vsel %vm1804, %v1793, %v1795
        %v1806 = vsel %vm1804, %v1795, %v1797
        %v1807 = vsel %vm1804, %v1799, %v1801
        %v1808 = vsel %vm1804, %v1801, %v1803
        %v1814 = vsel %vm1252, %v1785, 0
        %1816 = vmatpush.msra.mxu0 0.0
        %1817 = vmatpush.msra.mxu0 0.0
        %1818 = vmatpush.msra.mxu0 0.0
        %1819 = vmatpush.msra.mxu0 0.0
        %1820 = vmatpush.msra.mxu0 0.0
        %1821 = vmatpush.msra.mxu0 0.0
        %1822 = vmatpush.msra.mxu0 0.0
        %1823 = vmatpush.msra.mxu0 0.0
        %1824 = vmatpush.msra.mxu0 0.0
        %1825 = vmatpush.msra.mxu0 0.0
        %1826 = vmatpush.msra.mxu0 0.0
        %1827 = vmatpush.msra.mxu0 0.0
        %1828 = vmatpush.msra.mxu0 0.0
        %1829 = vmatpush.msra.mxu0 0.0
        %1830 = vmatpush.msra.mxu0 %v1807
        %1831 = vmatpush.msra.mxu0 %v1805
        %1832 = vmatmul.f32.gmra.mxu0 %v1814
        %v1833 = vpop.f32.mrf.mxu0
        %v1834 = vadd.f32 0.0, %v1833
        %1835 = vdwg.mxu0
        %1836 = vmatpush.msra.mxu0 0.0
        %1837 = vmatpush.msra.mxu0 0.0
        %1838 = vmatpush.msra.mxu0 0.0
        %1839 = vmatpush.msra.mxu0 0.0
        %1840 = vmatpush.msra.mxu0 0.0
        %1841 = vmatpush.msra.mxu0 0.0
        %1842 = vmatpush.msra.mxu0 0.0
        %1843 = vmatpush.msra.mxu0 0.0
        %1844 = vmatpush.msra.mxu0 0.0
        %1845 = vmatpush.msra.mxu0 0.0
        %1846 = vmatpush.msra.mxu0 0.0
        %1847 = vmatpush.msra.mxu0 0.0
        %1848 = vmatpush.msra.mxu0 0.0
        %1849 = vmatpush.msra.mxu0 0.0
        %1850 = vmatpush.msra.mxu0 %v1808
        %1851 = vmatpush.msra.mxu0 %v1806
        %1852 = vmatmul.f32.gmra.mxu0 %v1814
        %v1853 = vpop.f32.mrf.mxu0
        %v1854 = vadd.f32 0.0, %v1853
        %1855 = vdwg.mxu0
        %v1856 = vadd.f32 %v1782, %v1834
        %v1857 = vadd.f32 %v1783, %v1854
        %1858 = vrot.lane.b32.xlu0 %v1377, 17
        %v1859 = vpop.permute.xlu0 %1858
        %1860 = vrot.lane.b32.xlu0 %v1378, 17
        %v1861 = vpop.permute.xlu0 %1860
        %v1862 = vsel %vm1322, %v1859, %v1861
        %v1866 = vmul.f32 %v1604, %v1859
        %v1867 = vmul.f32 %v1605, %v1862
        %v1868 = vmul.f32 %v1606, %v1861
        %v1869 = vmul.f32 %v1607, %v1859
        %v1870 = vmul.f32 %v1608, %v1862
        %v1871 = vmul.f32 %v1609, %v1861
        %s1872 = scalar_lea.vmem %s13, 64
        %v1873 = vld [vmem:[%s1872] sm:$0xff]
        %1880 = vrot.lane.b32.xlu0 %v1866, 111
        %v1881 = vpop.permute.xlu0 %1880
        %1882 = vrot.lane.b32.xlu0 %v1867, 111
        %v1883 = vpop.permute.xlu0 %1882
        %1884 = vrot.lane.b32.xlu0 %v1868, 111
        %v1885 = vpop.permute.xlu0 %1884
        %1886 = vrot.lane.b32.xlu0 %v1869, 111
        %v1887 = vpop.permute.xlu0 %1886
        %1888 = vrot.lane.b32.xlu0 %v1870, 111
        %v1889 = vpop.permute.xlu0 %1888
        %1890 = vrot.lane.b32.xlu0 %v1871, 111
        %v1891 = vpop.permute.xlu0 %1890
        %v1892 = vsel %vm1220, %v1881, %v1883
        %v1893 = vsel %vm1220, %v1883, %v1885
        %v1894 = vsel %vm1220, %v1887, %v1889
        %v1895 = vsel %vm1220, %v1889, %v1891
        %v1901 = vsel %vm1252, %v1873, 0
        %1903 = vmatpush.msra.mxu0 0.0
        %1904 = vmatpush.msra.mxu0 0.0
        %1905 = vmatpush.msra.mxu0 0.0
        %1906 = vmatpush.msra.mxu0 0.0
        %1907 = vmatpush.msra.mxu0 0.0
        %1908 = vmatpush.msra.mxu0 0.0
        %1909 = vmatpush.msra.mxu0 0.0
        %1910 = vmatpush.msra.mxu0 0.0
        %1911 = vmatpush.msra.mxu0 0.0
        %1912 = vmatpush.msra.mxu0 0.0
        %1913 = vmatpush.msra.mxu0 0.0
        %1914 = vmatpush.msra.mxu0 0.0
        %1915 = vmatpush.msra.mxu0 0.0
        %1916 = vmatpush.msra.mxu0 0.0
        %1917 = vmatpush.msra.mxu0 %v1894
        %1918 = vmatpush.msra.mxu0 %v1892
        %1919 = vmatmul.f32.gmra.mxu0 %v1901
        %v1920 = vpop.f32.mrf.mxu0
        %v1921 = vadd.f32 0.0, %v1920
        %1922 = vdwg.mxu0
        %1923 = vmatpush.msra.mxu0 0.0
        %1924 = vmatpush.msra.mxu0 0.0
        %1925 = vmatpush.msra.mxu0 0.0
        %1926 = vmatpush.msra.mxu0 0.0
        %1927 = vmatpush.msra.mxu0 0.0
        %1928 = vmatpush.msra.mxu0 0.0
        %1929 = vmatpush.msra.mxu0 0.0
        %1930 = vmatpush.msra.mxu0 0.0
        %1931 = vmatpush.msra.mxu0 0.0
        %1932 = vmatpush.msra.mxu0 0.0
        %1933 = vmatpush.msra.mxu0 0.0
        %1934 = vmatpush.msra.mxu0 0.0
        %1935 = vmatpush.msra.mxu0 0.0
        %1936 = vmatpush.msra.mxu0 0.0
        %1937 = vmatpush.msra.mxu0 %v1895
        %1938 = vmatpush.msra.mxu0 %v1893
        %1939 = vmatmul.f32.gmra.mxu0 %v1901
        %v1940 = vpop.f32.mrf.mxu0
        %v1941 = vadd.f32 0.0, %v1940
        %1942 = vdwg.mxu0
        %v1943 = vadd.f32 %v1856, %v1921
        %v1944 = vadd.f32 %v1857, %v1941
        %v1945 = vld [vmem:[%s14] sm:$0xff]
        %1947 = vset.pattern.permute.xlu0 0
        %1948 = vperm.xlu0 %1947, %v1945
        %v1949 = vpop.permute.xlu0 %1948
        %v1951 = vadd.f32 %v1943, %v1949
        %v1952 = vadd.f32 %v1944, %v1949
        %v1953 = vmax.f32 %v1951, 0.0
        %v1954 = vmax.f32 %v1952, 0.0
        %1955 = vst [vmem:[#allocation2 + $0x8] sm:$0xff] %v1953
        %1956 = vst [vmem:[#allocation2 + $0x10] sm:$0xff] %v1954
        %v1957 = vld [vmem:[#allocation2] sm:$0xff]
        %v1958 = vld [vmem:[#allocation2 + $0x8] sm:$0xff]
        %v1959 = vld [vmem:[#allocation2 + $0x10] sm:$0xff]
        %v1960 = vld [vmem:[%s17] ss:$2 sm:$0x3]
        %v1962 = vperm.slane %v1960, 0
        %v1963 = vperm.slane %v1960, 1
        %1964 = vrot.lane.b32.xlu0 %v1962, 111
        %v1965 = vpop.permute.xlu0 %1964
        %1966 = vrot.lane.b32.xlu0 %v1963, 111
        %v1967 = vpop.permute.xlu0 %1966
        %v1968 = vsel %vm1220, %v1965, %v1967
        %v1972 = vmul.f32 %v1957, %v1965
        %v1973 = vmul.f32 %v1958, %v1968
        %v1974 = vmul.f32 %v1959, %v1967
        %v1975 = vld [vmem:[%s15] sm:$0xff]
        %s1976 = scalar_lea.vmem %s15, 8
        %v1977 = vld [vmem:[%s1976] sm:$0xff]
        %1981 = vrot.lane.b32.xlu0 %v1957, 16
        %v1982 = vpop.permute.xlu0 %1981
        %1983 = vrot.lane.b32.xlu0 %v1958, 16
        %v1984 = vpop.permute.xlu0 %1983
        %1985 = vrot.lane.b32.xlu0 %v1959, 16
        %v1986 = vpop.permute.xlu0 %1985
        %v1987 = vsel %vm1252, %v1982, %v1984
        %v1988 = vsel %vm1252, %v1984, %v1986
        %v1992 = vsel %vm634, %v1977, 0
        %1994 = vmatpush.msra.mxu0 0.0
        %1995 = vmatpush.msra.mxu0 0.0
        %1996 = vmatpush.msra.mxu0 0.0
        %1997 = vmatpush.msra.mxu0 0.0
        %1998 = vmatpush.msra.mxu0 0.0
        %1999 = vmatpush.msra.mxu0 0.0
        %2000 = vmatpush.msra.mxu0 0.0
        %2001 = vmatpush.msra.mxu0 0.0
        %2002 = vmatpush.msra.mxu0 0.0
        %2003 = vmatpush.msra.mxu0 0.0
        %2004 = vmatpush.msra.mxu0 0.0
        %2005 = vmatpush.msra.mxu0 0.0
        %2006 = vmatpush.msra.mxu0 0.0
        %2007 = vmatpush.msra.mxu0 0.0
        %2008 = vmatpush.msra.mxu0 0.0
        %2009 = vmatpush.msra.mxu0 %v1987
        %2010 = vmatmul.f32.gmra.mxu0 %v1992
        %v2011 = vpop.f32.mrf.mxu0
        %v2012 = vadd.f32 0.0, %v2011
        %2013 = vdwg.mxu0
        %2014 = vmatpush.msra.mxu0 0.0
        %2015 = vmatpush.msra.mxu0 0.0
        %2016 = vmatpush.msra.mxu0 0.0
        %2017 = vmatpush.msra.mxu0 0.0
        %2018 = vmatpush.msra.mxu0 0.0
        %2019 = vmatpush.msra.mxu0 0.0
        %2020 = vmatpush.msra.mxu0 0.0
        %2021 = vmatpush.msra.mxu0 0.0
        %2022 = vmatpush.msra.mxu0 0.0
        %2023 = vmatpush.msra.mxu0 0.0
        %2024 = vmatpush.msra.mxu0 0.0
        %2025 = vmatpush.msra.mxu0 0.0
        %2026 = vmatpush.msra.mxu0 0.0
        %2027 = vmatpush.msra.mxu0 0.0
        %2028 = vmatpush.msra.mxu0 0.0
        %2029 = vmatpush.msra.mxu0 %v1988
        %2030 = vmatmul.f32.gmra.mxu0 %v1992
        %v2031 = vpop.f32.mrf.mxu0
        %v2032 = vadd.f32 0.0, %v2031
        %2033 = vdwg.mxu0
        %2037 = vrot.lane.b32.xlu0 %v1972, 17
        %v2038 = vpop.permute.xlu0 %2037
        %2039 = vrot.lane.b32.xlu0 %v1973, 17
        %v2040 = vpop.permute.xlu0 %2039
        %2041 = vrot.lane.b32.xlu0 %v1974, 17
        %v2042 = vpop.permute.xlu0 %2041
        %v2043 = vsel %vm1322, %v2038, %v2040
        %v2044 = vsel %vm1322, %v2040, %v2042
        %v2048 = vsel %vm634, %v1975, 0
        %2050 = vmatpush.msra.mxu0 0.0
        %2051 = vmatpush.msra.mxu0 0.0
        %2052 = vmatpush.msra.mxu0 0.0
        %2053 = vmatpush.msra.mxu0 0.0
        %2054 = vmatpush.msra.mxu0 0.0
        %2055 = vmatpush.msra.mxu0 0.0
        %2056 = vmatpush.msra.mxu0 0.0
        %2057 = vmatpush.msra.mxu0 0.0
        %2058 = vmatpush.msra.mxu0 0.0
        %2059 = vmatpush.msra.mxu0 0.0
        %2060 = vmatpush.msra.mxu0 0.0
        %2061 = vmatpush.msra.mxu0 0.0
        %2062 = vmatpush.msra.mxu0 0.0
        %2063 = vmatpush.msra.mxu0 0.0
        %2064 = vmatpush.msra.mxu0 0.0
        %2065 = vmatpush.msra.mxu0 %v2043
        %2066 = vmatmul.f32.gmra.mxu0 %v2048
        %v2067 = vpop.f32.mrf.mxu0
        %v2068 = vadd.f32 %v2012, %v2067
        %2069 = vdwg.mxu0
        %2070 = vmatpush.msra.mxu0 0.0
        %2071 = vmatpush.msra.mxu0 0.0
        %2072 = vmatpush.msra.mxu0 0.0
        %2073 = vmatpush.msra.mxu0 0.0
        %2074 = vmatpush.msra.mxu0 0.0
        %2075 = vmatpush.msra.mxu0 0.0
        %2076 = vmatpush.msra.mxu0 0.0
        %2077 = vmatpush.msra.mxu0 0.0
        %2078 = vmatpush.msra.mxu0 0.0
        %2079 = vmatpush.msra.mxu0 0.0
        %2080 = vmatpush.msra.mxu0 0.0
        %2081 = vmatpush.msra.mxu0 0.0
        %2082 = vmatpush.msra.mxu0 0.0
        %2083 = vmatpush.msra.mxu0 0.0
        %2084 = vmatpush.msra.mxu0 0.0
        %2085 = vmatpush.msra.mxu0 %v2044
        %2086 = vmatmul.f32.gmra.mxu0 %v2048
        %v2087 = vpop.f32.mrf.mxu0
        %v2088 = vadd.f32 %v2032, %v2087
        %2089 = vdwg.mxu0
        %v2090 = vld [vmem:[%s1374] ss:$2 sm:$0x3]
        %v2092 = vperm.slane %v2090, 0
        %v2093 = vperm.slane %v2090, 1
        %2094 = vrot.lane.b32.xlu0 %v2092, 113
        %v2095 = vpop.permute.xlu0 %2094
        %2096 = vrot.lane.b32.xlu0 %v2093, 113
        %v2097 = vpop.permute.xlu0 %2096
        %v2098 = vsel %vm1383, %v2095, %v2097
        %v2102 = vmul.f32 %v1957, %v2095
        %v2103 = vmul.f32 %v1958, %v2098
        %v2104 = vmul.f32 %v1959, %v2097
        %s2105 = scalar_lea.vmem %s15, 16
        %v2106 = vld [vmem:[%s2105] sm:$0xff]
        %2110 = vrot.lane.b32.xlu0 %v2102, 15
        %v2111 = vpop.permute.xlu0 %2110
        %2112 = vrot.lane.b32.xlu0 %v2103, 15
        %v2113 = vpop.permute.xlu0 %2112
        %2114 = vrot.lane.b32.xlu0 %v2104, 15
        %v2115 = vpop.permute.xlu0 %2114
        %v2116 = vsel %vm1414, %v2111, %v2113
        %v2117 = vsel %vm1414, %v2113, %v2115
        %v2121 = vsel %vm634, %v2106, 0
        %2123 = vmatpush.msra.mxu0 0.0
        %2124 = vmatpush.msra.mxu0 0.0
        %2125 = vmatpush.msra.mxu0 0.0
        %2126 = vmatpush.msra.mxu0 0.0
        %2127 = vmatpush.msra.mxu0 0.0
        %2128 = vmatpush.msra.mxu0 0.0
        %2129 = vmatpush.msra.mxu0 0.0
        %2130 = vmatpush.msra.mxu0 0.0
        %2131 = vmatpush.msra.mxu0 0.0
        %2132 = vmatpush.msra.mxu0 0.0
        %2133 = vmatpush.msra.mxu0 0.0
        %2134 = vmatpush.msra.mxu0 0.0
        %2135 = vmatpush.msra.mxu0 0.0
        %2136 = vmatpush.msra.mxu0 0.0
        %2137 = vmatpush.msra.mxu0 0.0
        %2138 = vmatpush.msra.mxu0 %v2116
        %2139 = vmatmul.f32.gmra.mxu0 %v2121
        %v2140 = vpop.f32.mrf.mxu0
        %v2141 = vadd.f32 0.0, %v2140
        %2142 = vdwg.mxu0
        %2143 = vmatpush.msra.mxu0 0.0
        %2144 = vmatpush.msra.mxu0 0.0
        %2145 = vmatpush.msra.mxu0 0.0
        %2146 = vmatpush.msra.mxu0 0.0
        %2147 = vmatpush.msra.mxu0 0.0
        %2148 = vmatpush.msra.mxu0 0.0
        %2149 = vmatpush.msra.mxu0 0.0
        %2150 = vmatpush.msra.mxu0 0.0
        %2151 = vmatpush.msra.mxu0 0.0
        %2152 = vmatpush.msra.mxu0 0.0
        %2153 = vmatpush.msra.mxu0 0.0
        %2154 = vmatpush.msra.mxu0 0.0
        %2155 = vmatpush.msra.mxu0 0.0
        %2156 = vmatpush.msra.mxu0 0.0
        %2157 = vmatpush.msra.mxu0 0.0
        %2158 = vmatpush.msra.mxu0 %v2117
        %2159 = vmatmul.f32.gmra.mxu0 %v2121
        %v2160 = vpop.f32.mrf.mxu0
        %v2161 = vadd.f32 0.0, %v2160
        %2162 = vdwg.mxu0
        %v2163 = vadd.f32 %v2068, %v2141
        %v2164 = vadd.f32 %v2088, %v2161
        %2165 = vrot.lane.b32.xlu0 %v1962, 127
        %v2166 = vpop.permute.xlu0 %2165
        %2167 = vrot.lane.b32.xlu0 %v1963, 127
        %v2168 = vpop.permute.xlu0 %2167
        %v2169 = vsel %vm1472, %v2166, %v2168
        %v2173 = vmul.f32 %v1957, %v2166
        %v2174 = vmul.f32 %v1958, %v2169
        %v2175 = vmul.f32 %v1959, %v2168
        %s2176 = scalar_lea.vmem %s15, 24
        %v2177 = vld [vmem:[%s2176] sm:$0xff]
        %2181 = vrot.lane.b32.xlu0 %v2173, 1
        %v2182 = vpop.permute.xlu0 %2181
        %2183 = vrot.lane.b32.xlu0 %v2174, 1
        %v2184 = vpop.permute.xlu0 %2183
        %2185 = vrot.lane.b32.xlu0 %v2175, 1
        %v2186 = vpop.permute.xlu0 %2185
        %v2187 = vsel %vm1503, %v2182, %v2184
        %v2188 = vsel %vm1503, %v2184, %v2186
        %v2192 = vsel %vm634, %v2177, 0
        %2194 = vmatpush.msra.mxu0 0.0
        %2195 = vmatpush.msra.mxu0 0.0
        %2196 = vmatpush.msra.mxu0 0.0
        %2197 = vmatpush.msra.mxu0 0.0
        %2198 = vmatpush.msra.mxu0 0.0
        %2199 = vmatpush.msra.mxu0 0.0
        %2200 = vmatpush.msra.mxu0 0.0
        %2201 = vmatpush.msra.mxu0 0.0
        %2202 = vmatpush.msra.mxu0 0.0
        %2203 = vmatpush.msra.mxu0 0.0
        %2204 = vmatpush.msra.mxu0 0.0
        %2205 = vmatpush.msra.mxu0 0.0
        %2206 = vmatpush.msra.mxu0 0.0
        %2207 = vmatpush.msra.mxu0 0.0
        %2208 = vmatpush.msra.mxu0 0.0
        %2209 = vmatpush.msra.mxu0 %v2187
        %2210 = vmatmul.f32.gmra.mxu0 %v2192
        %v2211 = vpop.f32.mrf.mxu0
        %v2212 = vadd.f32 0.0, %v2211
        %2213 = vdwg.mxu0
        %2214 = vmatpush.msra.mxu0 0.0
        %2215 = vmatpush.msra.mxu0 0.0
        %2216 = vmatpush.msra.mxu0 0.0
        %2217 = vmatpush.msra.mxu0 0.0
        %2218 = vmatpush.msra.mxu0 0.0
        %2219 = vmatpush.msra.mxu0 0.0
        %2220 = vmatpush.msra.mxu0 0.0
        %2221 = vmatpush.msra.mxu0 0.0
        %2222 = vmatpush.msra.mxu0 0.0
        %2223 = vmatpush.msra.mxu0 0.0
        %2224 = vmatpush.msra.mxu0 0.0
        %2225 = vmatpush.msra.mxu0 0.0
        %2226 = vmatpush.msra.mxu0 0.0
        %2227 = vmatpush.msra.mxu0 0.0
        %2228 = vmatpush.msra.mxu0 0.0
        %2229 = vmatpush.msra.mxu0 %v2188
        %2230 = vmatmul.f32.gmra.mxu0 %v2192
        %v2231 = vpop.f32.mrf.mxu0
        %v2232 = vadd.f32 0.0, %v2231
        %2233 = vdwg.mxu0
        %v2234 = vadd.f32 %v2163, %v2212
        %v2235 = vadd.f32 %v2164, %v2232
        %s2236 = scalar_lea.vmem %s15, 32
        %v2237 = vld [vmem:[%s2236] sm:$0xff]
        %v2239 = vsel %vm634, %v2237, 0
        %2241 = vmatpush.msra.mxu0 0.0
        %2242 = vmatpush.msra.mxu0 0.0
        %2243 = vmatpush.msra.mxu0 0.0
        %2244 = vmatpush.msra.mxu0 0.0
        %2245 = vmatpush.msra.mxu0 0.0
        %2246 = vmatpush.msra.mxu0 0.0
        %2247 = vmatpush.msra.mxu0 0.0
        %2248 = vmatpush.msra.mxu0 0.0
        %2249 = vmatpush.msra.mxu0 0.0
        %2250 = vmatpush.msra.mxu0 0.0
        %2251 = vmatpush.msra.mxu0 0.0
        %2252 = vmatpush.msra.mxu0 0.0
        %2253 = vmatpush.msra.mxu0 0.0
        %2254 = vmatpush.msra.mxu0 0.0
        %2255 = vmatpush.msra.mxu0 0.0
        %2256 = vmatpush.msra.mxu0 %v1958
        %2257 = vmatmul.f32.gmra.mxu0 %v2239
        %v2258 = vpop.f32.mrf.mxu0
        %v2259 = vadd.f32 0.0, %v2258
        %2260 = vdwg.mxu0
        %2261 = vmatpush.msra.mxu0 0.0
        %2262 = vmatpush.msra.mxu0 0.0
        %2263 = vmatpush.msra.mxu0 0.0
        %2264 = vmatpush.msra.mxu0 0.0
        %2265 = vmatpush.msra.mxu0 0.0
        %2266 = vmatpush.msra.mxu0 0.0
        %2267 = vmatpush.msra.mxu0 0.0
        %2268 = vmatpush.msra.mxu0 0.0
        %2269 = vmatpush.msra.mxu0 0.0
        %2270 = vmatpush.msra.mxu0 0.0
        %2271 = vmatpush.msra.mxu0 0.0
        %2272 = vmatpush.msra.mxu0 0.0
        %2273 = vmatpush.msra.mxu0 0.0
        %2274 = vmatpush.msra.mxu0 0.0
        %2275 = vmatpush.msra.mxu0 0.0
        %2276 = vmatpush.msra.mxu0 %v1959
        %2277 = vmatmul.f32.gmra.mxu0 %v2239
        %v2278 = vpop.f32.mrf.mxu0
        %v2279 = vadd.f32 0.0, %v2278
        %2280 = vdwg.mxu0
        %v2281 = vadd.f32 %v2234, %v2259
        %v2282 = vadd.f32 %v2235, %v2279
        %v2283 = vld [vmem:[#allocation2 + $0x8] sm:$0xff]
        %v2284 = vld [vmem:[#allocation2 + $0x10] sm:$0xff]
        %v2285 = vld [vmem:[#allocation2 + $0x18] sm:$0xff]
        %2286 = vrot.lane.b32.xlu0 %v2092, 1
        %v2287 = vpop.permute.xlu0 %2286
        %2288 = vrot.lane.b32.xlu0 %v2093, 1
        %v2289 = vpop.permute.xlu0 %2288
        %v2290 = vsel %vm1503, %v2287, %v2289
        %v2294 = vmul.f32 %v2283, %v2287
        %v2295 = vmul.f32 %v2284, %v2290
        %v2296 = vmul.f32 %v2285, %v2289
        %s2297 = scalar_lea.vmem %s15, 40
        %v2298 = vld [vmem:[%s2297] sm:$0xff]
        %2302 = vrot.lane.b32.xlu0 %v2294, 127
        %v2303 = vpop.permute.xlu0 %2302
        %2304 = vrot.lane.b32.xlu0 %v2295, 127
        %v2305 = vpop.permute.xlu0 %2304
        %2306 = vrot.lane.b32.xlu0 %v2296, 127
        %v2307 = vpop.permute.xlu0 %2306
        %v2308 = vsel %vm1472, %v2303, %v2305
        %v2309 = vsel %vm1472, %v2305, %v2307
        %v2313 = vsel %vm634, %v2298, 0
        %2315 = vmatpush.msra.mxu0 0.0
        %2316 = vmatpush.msra.mxu0 0.0
        %2317 = vmatpush.msra.mxu0 0.0
        %2318 = vmatpush.msra.mxu0 0.0
        %2319 = vmatpush.msra.mxu0 0.0
        %2320 = vmatpush.msra.mxu0 0.0
        %2321 = vmatpush.msra.mxu0 0.0
        %2322 = vmatpush.msra.mxu0 0.0
        %2323 = vmatpush.msra.mxu0 0.0
        %2324 = vmatpush.msra.mxu0 0.0
        %2325 = vmatpush.msra.mxu0 0.0
        %2326 = vmatpush.msra.mxu0 0.0
        %2327 = vmatpush.msra.mxu0 0.0
        %2328 = vmatpush.msra.mxu0 0.0
        %2329 = vmatpush.msra.mxu0 0.0
        %2330 = vmatpush.msra.mxu0 %v2308
        %2331 = vmatmul.f32.gmra.mxu0 %v2313
        %v2332 = vpop.f32.mrf.mxu0
        %v2333 = vadd.f32 0.0, %v2332
        %2334 = vdwg.mxu0
        %2335 = vmatpush.msra.mxu0 0.0
        %2336 = vmatpush.msra.mxu0 0.0
        %2337 = vmatpush.msra.mxu0 0.0
        %2338 = vmatpush.msra.mxu0 0.0
        %2339 = vmatpush.msra.mxu0 0.0
        %2340 = vmatpush.msra.mxu0 0.0
        %2341 = vmatpush.msra.mxu0 0.0
        %2342 = vmatpush.msra.mxu0 0.0
        %2343 = vmatpush.msra.mxu0 0.0
        %2344 = vmatpush.msra.mxu0 0.0
        %2345 = vmatpush.msra.mxu0 0.0
        %2346 = vmatpush.msra.mxu0 0.0
        %2347 = vmatpush.msra.mxu0 0.0
        %2348 = vmatpush.msra.mxu0 0.0
        %2349 = vmatpush.msra.mxu0 0.0
        %2350 = vmatpush.msra.mxu0 %v2309
        %2351 = vmatmul.f32.gmra.mxu0 %v2313
        %v2352 = vpop.f32.mrf.mxu0
        %v2353 = vadd.f32 0.0, %v2352
        %2354 = vdwg.mxu0
        %v2355 = vadd.f32 %v2281, %v2333
        %v2356 = vadd.f32 %v2282, %v2353
        %2357 = vrot.lane.b32.xlu0 %v1962, 15
        %v2358 = vpop.permute.xlu0 %2357
        %2359 = vrot.lane.b32.xlu0 %v1963, 15
        %v2360 = vpop.permute.xlu0 %2359
        %v2361 = vsel %vm1414, %v2358, %v2360
        %v2365 = vmul.f32 %v2283, %v2358
        %v2366 = vmul.f32 %v2284, %v2361
        %v2367 = vmul.f32 %v2285, %v2360
        %s2368 = scalar_lea.vmem %s15, 48
        %v2369 = vld [vmem:[%s2368] sm:$0xff]
        %2373 = vrot.lane.b32.xlu0 %v2365, 113
        %v2374 = vpop.permute.xlu0 %2373
        %2375 = vrot.lane.b32.xlu0 %v2366, 113
        %v2376 = vpop.permute.xlu0 %2375
        %2377 = vrot.lane.b32.xlu0 %v2367, 113
        %v2378 = vpop.permute.xlu0 %2377
        %v2379 = vsel %vm1383, %v2374, %v2376
        %v2380 = vsel %vm1383, %v2376, %v2378
        %v2384 = vsel %vm634, %v2369, 0
        %2386 = vmatpush.msra.mxu0 0.0
        %2387 = vmatpush.msra.mxu0 0.0
        %2388 = vmatpush.msra.mxu0 0.0
        %2389 = vmatpush.msra.mxu0 0.0
        %2390 = vmatpush.msra.mxu0 0.0
        %2391 = vmatpush.msra.mxu0 0.0
        %2392 = vmatpush.msra.mxu0 0.0
        %2393 = vmatpush.msra.mxu0 0.0
        %2394 = vmatpush.msra.mxu0 0.0
        %2395 = vmatpush.msra.mxu0 0.0
        %2396 = vmatpush.msra.mxu0 0.0
        %2397 = vmatpush.msra.mxu0 0.0
        %2398 = vmatpush.msra.mxu0 0.0
        %2399 = vmatpush.msra.mxu0 0.0
        %2400 = vmatpush.msra.mxu0 0.0
        %2401 = vmatpush.msra.mxu0 %v2379
        %2402 = vmatmul.f32.gmra.mxu0 %v2384
        %v2403 = vpop.f32.mrf.mxu0
        %v2404 = vadd.f32 0.0, %v2403
        %2405 = vdwg.mxu0
        %2406 = vmatpush.msra.mxu0 0.0
        %2407 = vmatpush.msra.mxu0 0.0
        %2408 = vmatpush.msra.mxu0 0.0
        %2409 = vmatpush.msra.mxu0 0.0
        %2410 = vmatpush.msra.mxu0 0.0
        %2411 = vmatpush.msra.mxu0 0.0
        %2412 = vmatpush.msra.mxu0 0.0
        %2413 = vmatpush.msra.mxu0 0.0
        %2414 = vmatpush.msra.mxu0 0.0
        %2415 = vmatpush.msra.mxu0 0.0
        %2416 = vmatpush.msra.mxu0 0.0
        %2417 = vmatpush.msra.mxu0 0.0
        %2418 = vmatpush.msra.mxu0 0.0
        %2419 = vmatpush.msra.mxu0 0.0
        %2420 = vmatpush.msra.mxu0 0.0
        %2421 = vmatpush.msra.mxu0 %v2380
        %2422 = vmatmul.f32.gmra.mxu0 %v2384
        %v2423 = vpop.f32.mrf.mxu0
        %v2424 = vadd.f32 0.0, %v2423
        %2425 = vdwg.mxu0
        %v2426 = vadd.f32 %v2355, %v2404
        %v2427 = vadd.f32 %v2356, %v2424
        %s2428 = scalar_lea.vmem %s15, 56
        %v2429 = vld [vmem:[%s2428] sm:$0xff]
        %2433 = vrot.lane.b32.xlu0 %v2283, 112
        %v2434 = vpop.permute.xlu0 %2433
        %2435 = vrot.lane.b32.xlu0 %v2284, 112
        %v2436 = vpop.permute.xlu0 %2435
        %2437 = vrot.lane.b32.xlu0 %v2285, 112
        %v2438 = vpop.permute.xlu0 %2437
        %v2439 = vsel %vm1804, %v2434, %v2436
        %v2440 = vsel %vm1804, %v2436, %v2438
        %v2444 = vsel %vm634, %v2429, 0
        %2446 = vmatpush.msra.mxu0 0.0
        %2447 = vmatpush.msra.mxu0 0.0
        %2448 = vmatpush.msra.mxu0 0.0
        %2449 = vmatpush.msra.mxu0 0.0
        %2450 = vmatpush.msra.mxu0 0.0
        %2451 = vmatpush.msra.mxu0 0.0
        %2452 = vmatpush.msra.mxu0 0.0
        %2453 = vmatpush.msra.mxu0 0.0
        %2454 = vmatpush.msra.mxu0 0.0
        %2455 = vmatpush.msra.mxu0 0.0
        %2456 = vmatpush.msra.mxu0 0.0
        %2457 = vmatpush.msra.mxu0 0.0
        %2458 = vmatpush.msra.mxu0 0.0
        %2459 = vmatpush.msra.mxu0 0.0
        %2460 = vmatpush.msra.mxu0 0.0
        %2461 = vmatpush.msra.mxu0 %v2439
        %2462 = vmatmul.f32.gmra.mxu0 %v2444
        %v2463 = vpop.f32.mrf.mxu0
        %v2464 = vadd.f32 0.0, %v2463
        %2465 = vdwg.mxu0
        %2466 = vmatpush.msra.mxu0 0.0
        %2467 = vmatpush.msra.mxu0 0.0
        %2468 = vmatpush.msra.mxu0 0.0
        %2469 = vmatpush.msra.mxu0 0.0
        %2470 = vmatpush.msra.mxu0 0.0
        %2471 = vmatpush.msra.mxu0 0.0
        %2472 = vmatpush.msra.mxu0 0.0
        %2473 = vmatpush.msra.mxu0 0.0
        %2474 = vmatpush.msra.mxu0 0.0
        %2475 = vmatpush.msra.mxu0 0.0
        %2476 = vmatpush.msra.mxu0 0.0
        %2477 = vmatpush.msra.mxu0 0.0
        %2478 = vmatpush.msra.mxu0 0.0
        %2479 = vmatpush.msra.mxu0 0.0
        %2480 = vmatpush.msra.mxu0 0.0
        %2481 = vmatpush.msra.mxu0 %v2440
        %2482 = vmatmul.f32.gmra.mxu0 %v2444
        %v2483 = vpop.f32.mrf.mxu0
        %v2484 = vadd.f32 0.0, %v2483
        %2485 = vdwg.mxu0
        %v2486 = vadd.f32 %v2426, %v2464
        %v2487 = vadd.f32 %v2427, %v2484
        %2488 = vrot.lane.b32.xlu0 %v2092, 17
        %v2489 = vpop.permute.xlu0 %2488
        %2490 = vrot.lane.b32.xlu0 %v2093, 17
        %v2491 = vpop.permute.xlu0 %2490
        %v2492 = vsel %vm1322, %v2489, %v2491
        %v2496 = vmul.f32 %v2283, %v2489
        %v2497 = vmul.f32 %v2284, %v2492
        %v2498 = vmul.f32 %v2285, %v2491
        %s2499 = scalar_lea.vmem %s15, 64
        %v2500 = vld [vmem:[%s2499] sm:$0xff]
        %2504 = vrot.lane.b32.xlu0 %v2496, 111
        %v2505 = vpop.permute.xlu0 %2504
        %2506 = vrot.lane.b32.xlu0 %v2497, 111
        %v2507 = vpop.permute.xlu0 %2506
        %2508 = vrot.lane.b32.xlu0 %v2498, 111
        %v2509 = vpop.permute.xlu0 %2508
        %v2510 = vsel %vm1220, %v2505, %v2507
        %v2511 = vsel %vm1220, %v2507, %v2509
        %v2515 = vsel %vm634, %v2500, 0
        %2517 = vmatpush.msra.mxu0 0.0
        %2518 = vmatpush.msra.mxu0 0.0
        %2519 = vmatpush.msra.mxu0 0.0
        %2520 = vmatpush.msra.mxu0 0.0
        %2521 = vmatpush.msra.mxu0 0.0
        %2522 = vmatpush.msra.mxu0 0.0
        %2523 = vmatpush.msra.mxu0 0.0
        %2524 = vmatpush.msra.mxu0 0.0
        %2525 = vmatpush.msra.mxu0 0.0
        %2526 = vmatpush.msra.mxu0 0.0
        %2527 = vmatpush.msra.mxu0 0.0
        %2528 = vmatpush.msra.mxu0 0.0
        %2529 = vmatpush.msra.mxu0 0.0
        %2530 = vmatpush.msra.mxu0 0.0
        %2531 = vmatpush.msra.mxu0 0.0
        %2532 = vmatpush.msra.mxu0 %v2510
        %2533 = vmatmul.f32.gmra.mxu0 %v2515
        %v2534 = vpop.f32.mrf.mxu0
        %v2535 = vadd.f32 0.0, %v2534
        %2536 = vdwg.mxu0
        %2537 = vmatpush.msra.mxu0 0.0
        %2538 = vmatpush.msra.mxu0 0.0
        %2539 = vmatpush.msra.mxu0 0.0
        %2540 = vmatpush.msra.mxu0 0.0
        %2541 = vmatpush.msra.mxu0 0.0
        %2542 = vmatpush.msra.mxu0 0.0
        %2543 = vmatpush.msra.mxu0 0.0
        %2544 = vmatpush.msra.mxu0 0.0
        %2545 = vmatpush.msra.mxu0 0.0
        %2546 = vmatpush.msra.mxu0 0.0
        %2547 = vmatpush.msra.mxu0 0.0
        %2548 = vmatpush.msra.mxu0 0.0
        %2549 = vmatpush.msra.mxu0 0.0
        %2550 = vmatpush.msra.mxu0 0.0
        %2551 = vmatpush.msra.mxu0 0.0
        %2552 = vmatpush.msra.mxu0 %v2511
        %2553 = vmatmul.f32.gmra.mxu0 %v2515
        %v2554 = vpop.f32.mrf.mxu0
        %v2555 = vadd.f32 0.0, %v2554
        %2556 = vdwg.mxu0
        %v2557 = vadd.f32 %v2486, %v2535
        %v2558 = vadd.f32 %v2487, %v2555
        %v2559 = vld [vmem:[%s16] sm:$0xff]
        %2561 = vset.pattern.permute.xlu0 0
        %2562 = vperm.xlu0 %2561, %v2559
        %v2563 = vpop.permute.xlu0 %2562
        %v2565 = vadd.f32 %v2557, %v2563
        %v2566 = vadd.f32 %v2558, %v2563
        %v2567 = vmax.f32 %v2565, 0.0
        %v2568 = vmax.f32 %v2566, 0.0
        %2569 = vst [vmem:[%s628] sm:$0xff] %v2567
        %2570 = vst [vmem:[%s628 + $0x8] sm:$0xff] %v2568
        %p2571 = scmp.lt.s32.totalorder %s32, 1
        %s2572 = scalar_select %p2571, %s32, 1
        %s2573 = smul.addr %s2572, 2
        %s2574 = smul.addr %s2573, 8
        %s2575 = scalar_lea.vmem %s18, %s2574
        // Predicated region
        $region97: #{attention_decoder_block.1} parent=91 // pred_check
          %p2576 = pneg %p443
        $region98: #{attention_decoder_block.1} parent=91 // pred_check_branch
          %2578 = sbr.rel (%p2576) target = $region100
        $region99: #{attention_decoder_block.1} parent=91 // pred_region
          _
        $region100: #{attention_decoder_block.1} parent=91 // pred_fallthru
          _
      $region92: #{attention_decoder_block.1} parent=5 // pred_fallthru
        _
      %p2579 = scmp.le.s32.totalorder 2, %s27
      // Predicated region
      $region101: #{attention_decoder_block.1} parent=5 // pred_check
        %p2580 = pneg %p2579
      $region102: #{attention_decoder_block.1} parent=5 // pred_check_branch
        %2582 = sbr.rel (%p2580) target = $region104
      $region103: #{attention_decoder_block.1} parent=5 // pred_region
        %s2583 = ssub.s32 %s27, 2
        // Predicated region
        $region105: #{attention_decoder_block.1} parent=103 // pred_check
          %p2584 = pneg %p449
        $region106: #{attention_decoder_block.1} parent=103 // pred_check_branch
          %2586 = sbr.rel (%p2584) target = $region108
        $region107: #{attention_decoder_block.1} parent=103 // pred_region
          %p2587 = scmp.lt.s32.totalorder %s33, 1
          %s2588 = scalar_select %p2587, %s33, 1
          %s2589 = smul.addr %s2588, 2
          %s2590 = smul.addr %s2589, 8
          %s2591 = scalar_lea.vmem %s18, %s2590
        $region108: #{attention_decoder_block.1} parent=103 // pred_fallthru
          _
      $region104: #{attention_decoder_block.1} parent=5 // pred_fallthru
        _
    $region6: #{attention_decoder_block.1} parent=1 // loop_footer
      %s31 = sadd.s32 1, %s27
    $region7: #{attention_decoder_block.1} parent=1 // loop_footer_branch
      %26 = sbr.rel target = $region3
    $region8: #{attention_decoder_block.1} parent=1 // loop_exit
      _
    %2592 = vsyncpa [#allocation5], 1
    %s2593 = scalar_lea.sflag [#allocation5], 1
    %2594 = vsyncpa %s2593, 1

</llo_original>
